<compile_context>
chip_gen: v6e
topology: v6e:2x2x1
jax: 0.10.0
libtpu: 0.0.40
codegen_flags: <defaults>
</compile_context>

<pallas_src>
import functools

import numpy as np
import jax
import jax.numpy as jnp
from jax import lax
from jax.experimental import pallas as pl
from jax.experimental.pallas import tpu as pltpu


# ----------------------------- Pallas kernel -------------------------------- #

def _mtifb_fused_kernel(c_in, c_out, h, w, nb,
                        sent_ref, img_ref, mask_ref,
                        w_sh_ref, b_sh_ref,
                        w_sc_ref, b_sc_ref,
                        w_of_ref, b_of_ref,
                        o_ref):
    """One batch group (nb elements, sublane-packed) per grid step.

    Flat halo grid: a spatial pixel (r, c) of a (.., wp)-wide padded plane maps
    to flat lane index q = r*wp + c, with wp = W + 4.

    sent_ref : (c_in,  nb, l_0)   sentence, zero-padded by 2, flattened (VMEM)
    img_ref  : (c_out, nb, l_out) image, W padded to wp, flattened (VMEM)
    mask_ref : (1, l_m)           interior mask on the flat halo grid (VMEM)
    w_sh_ref : (c_in*c_in*9,)     flat OIHW 3x3 share-conv weight (SMEM)
    b_sh_ref : (c_in,)            share-conv bias (SMEM)
    w_sc_ref : (c_out*c_in*9,)    flat OIHW 3x3 scale-conv weight (SMEM)
    b_sc_ref : (c_out,)           scale-conv bias (SMEM)
    w_of_ref : (c_out*c_in,)      flat (Cout, Cin) 1x1 offset-conv weight (SMEM)
    b_of_ref : (c_out,)           offset-conv bias (SMEM)
    o_ref    : (c_out, nb, l_out) output (VMEM), lane-dense last dim
    """
    f32 = jnp.float32
    wp = w + 4                      # flat-grid row stride
    l_out = h * wp                  # output flat length
    l_m = l_out + 2 * wp + 2        # masked-share length (covers all scale taps)

    def conv3x3(planes, w_ref, b_ref, n_out, out_len):
        """3x3 conv as 9 uniform flat lane shifts x scalar-weight VPU FMAs.

        Each shifted slice is computed ONCE per (ci, kh, kw) and reused for all
        n_out accumulators; bias is added once at the end (no broadcast init).
        """
        n_in = len(planes)
        accs = [None] * n_out
        for ci in range(n_in):
            p = planes[ci]
            for kh in range(3):
                for kw in range(3):
                    off = kh * wp + kw
                    shifted = p[:, off:off + out_len]          # hoisted slice
                    for co in range(n_out):
                        widx = ((co * n_in + ci) * 3 + kh) * 3 + kw
                        t = w_ref[widx] * shifted
                        accs[co] = t if accs[co] is None else accs[co] + t
        return [accs[co] + b_ref[co] for co in range(n_out)]

    # --- share conv (3x3, Cin -> Cin) on the flat halo grid, masked so the
    #     result equals the zero-'same'-padded share_out plane (halo ring == 0).
    sent_planes = [sent_ref[ci].astype(f32) for ci in range(c_in)]     # (nb, l_0)
    share_raw = conv3x3(sent_planes, w_sh_ref, b_sh_ref, c_in, l_m)
    mask = mask_ref[...].astype(f32)                                   # (1, l_m)
    share = [sr * mask for sr in share_raw]                            # (nb, l_m)

    # --- global average pool: everything outside the interior is exactly 0,
    #     so a flat lane sum gives the exact H*W mean.
    inv_hw = 1.0 / float(h * w)
    pooled = [jnp.sum(sp, axis=1, keepdims=True) * inv_hw for sp in share]  # (nb, 1)

    # --- scale conv + sigmoid, 1x1 offset conv on pooled means, fused output.
    logits = conv3x3(share, w_sc_ref, b_sc_ref, c_out, l_out)          # (nb, l_out)
    for co in range(c_out):
        off_col = None
        for ci in range(c_in):
            t = w_of_ref[co * c_in + ci] * pooled[ci]
            off_col = t if off_col is None else off_col + t
        off_col = off_col + b_of_ref[co]                               # (nb, 1)
        img = img_ref[co].astype(f32)                                  # (nb, l_out)
        o_ref[co] = (img * jax.nn.sigmoid(logits[co]) + off_col).astype(o_ref.dtype)


# ----------------------------- wrapper --------------------------------------- #

def mtifb_forward(image_nchw, sentence_nchw, params):
    """Pallas MTIFB forward. Inputs/outputs are NCHW like the PyTorch module."""
    w_share, b_share, w_scale, b_scale, w_offset, b_offset = params
    n, c_in, h, w = sentence_nchw.shape
    c_out = image_nchw.shape[1]
    out_dtype = image_nchw.dtype

    wp = w + 4
    l_out = h * wp
    l_m = l_out + 2 * wp + 2
    l_0 = l_m + 2 * wp + 2

    nb = min(n, 8)                       # batch per grid step (sublane packing)
    g = -(-n // nb)                      # cdiv
    n_pad = g * nb - n

    # sentence: zero-pad spatially by 2, flatten (H+4, W+4) row-major onto the
    # lane axis (stride wp), pad the flat axis so every tap slice is in-bounds.
    sent = jnp.pad(sentence_nchw, ((0, n_pad), (0, 0), (2, 2), (2, 2)))
    sent = sent.reshape(g * nb, c_in, (h + 4) * wp)
    sent = jnp.pad(sent, ((0, 0), (0, 0), (0, l_0 - (h + 4) * wp)))
    sent = sent.reshape(g, nb, c_in, l_0).transpose(0, 2, 1, 3)        # (g,Ci,nb,l0)

    # image: pad W -> wp so it shares the flat grid of the conv outputs; junk
    # columns (j >= W) are sliced off after the call.
    img = jnp.pad(image_nchw, ((0, n_pad), (0, 0), (0, 0), (0, wp - w)))
    img = img.reshape(g * nb, c_out, l_out)
    img = img.reshape(g, nb, c_out, l_out).transpose(0, 2, 1, 3)       # (g,Co,nb,lo)

    # interior mask on the flat halo grid (host-side constant; avoids in-kernel
    # integer div/mod): 1 where (q//wp, q%wp) is a true pixel of the padded
    # share_out plane.
    q = np.arange(l_m)
    r, c = q // wp, q % wp
    mask = jnp.asarray(((r >= 1) & (r <= h) & (c >= 1) & (c <= w))
                       .astype(np.float32)[None, :])                   # (1, l_m)

    smem = pl.BlockSpec(memory_space=pltpu.MemorySpace.SMEM)
    kernel = functools.partial(_mtifb_fused_kernel, c_in, c_out, h, w, nb)

    itemsize = jnp.dtype(out_dtype).itemsize
    cost = pl.CostEstimate(
        flops=int(2 * n * (c_in + c_out) * c_in * 9 * h * w
                  + 2 * n * c_out * c_in + 3 * n * c_out * h * w),
        transcendentals=int(n * c_out * h * w),
        bytes_accessed=int(sent.size * sent.dtype.itemsize
                           + img.size * img.dtype.itemsize
                           + mask.size * 4
                           + g * c_out * nb * l_out * itemsize),
    )

    out_flat = pl.pallas_call(
        kernel,
        out_shape=jax.ShapeDtypeStruct((g, c_out, nb, l_out), out_dtype),
        grid=(g,),
        in_specs=[
            pl.BlockSpec((None, c_in, nb, l_0), lambda i: (i, 0, 0, 0)),
            pl.BlockSpec((None, c_out, nb, l_out), lambda i: (i, 0, 0, 0)),
            pl.BlockSpec((1, l_m), lambda i: (0, 0)),
            smem, smem, smem, smem, smem, smem,
        ],
        out_specs=pl.BlockSpec((None, c_out, nb, l_out), lambda i: (i, 0, 0, 0)),
        compiler_params=pltpu.CompilerParams(
            dimension_semantics=("parallel",)),
        cost_estimate=cost,
    )(
        sent,
        img,
        mask,
        w_share.astype(jnp.float32).reshape(-1),
        b_share.astype(jnp.float32),
        w_scale.astype(jnp.float32).reshape(-1),
        b_scale.astype(jnp.float32),
        w_offset.astype(jnp.float32).reshape(-1),
        b_offset.astype(jnp.float32),
    )

    # (g, c_out, nb, h*wp) -> (n, c_out, h, w): drop junk columns / pad batch.
    out = out_flat.transpose(0, 2, 1, 3).reshape(g * nb, c_out, h, wp)
    return out[:n, :, :, :w]


# ----------------------------- reference (plain JAX) ------------------------- #

def mtifb_reference(image_nchw, sentence_nchw, params):
    w_share, b_share, w_scale, b_scale, w_offset, b_offset = params
    dn = ("NCHW", "OIHW", "NCHW")
    share = lax.conv_general_dilated(sentence_nchw, w_share, (1, 1), "SAME",
                                     dimension_numbers=dn)
    share = share + b_share[None, :, None, None]
    scale_mask = jax.nn.sigmoid(
        lax.conv_general_dilated(share, w_scale, (1, 1), "SAME",
                                 dimension_numbers=dn)
        + b_scale[None, :, None, None])
    pooled = jnp.mean(share, axis=(2, 3))                    # (N, Cin)
    offset = pooled @ w_offset.T + b_offset                  # (N, Cout)
    return image_nchw * scale_mask + offset[:, :, None, None]


# ----------------------------------- main ------------------------------------ #

if __name__ == "__main__":
    N, C_IN, C_OUT, H, W = 2, 4, 4, 16, 16

    key = jax.random.PRNGKey(0)
    ks = jax.random.split(key, 8)

    image_features = jax.random.normal(ks[0], (N, C_OUT, H, W), jnp.float32)
    sentence_features = jax.random.normal(ks[1], (N, C_IN, H, W), jnp.float32)

    # Parameters in PyTorch layouts: conv weights OIHW, 1x1 conv as (Cout, Cin).
    w_share = jax.random.normal(ks[2], (C_IN, C_IN, 3, 3), jnp.float32) * 0.1
    b_share = jax.random.normal(ks[3], (C_IN,), jnp.float32) * 0.1
    w_scale = jax.random.normal(ks[4], (C_OUT, C_IN, 3, 3), jnp.float32) * 0.1
    b_scale = jax.random.normal(ks[5], (C_OUT,), jnp.float32) * 0.1
    w_offset = jax.random.normal(ks[6], (C_OUT, C_IN), jnp.float32) * 0.1
    b_offset = jax.random.normal(ks[7], (C_OUT,), jnp.float32) * 0.1
    params = (w_share, b_share, w_scale, b_scale, w_offset, b_offset)

    out = mtifb_forward(image_features, sentence_features, params)
    out = jax.block_until_ready(out)

    ref = jax.block_until_ready(
        mtifb_reference(image_features, sentence_features, params))

    assert out.shape == (N, C_OUT, H, W), out.shape
    assert jnp.allclose(out, ref, atol=1e-4, rtol=1e-4), (
        float(jnp.max(jnp.abs(out - ref))))

    print("KERNEL_OK")
</pallas_src>

<mosaic_0001>
module attributes {stable_mosaic.version = 11 : i64} {
  func.func @_mtifb_fused_kernel(%arg0: i32, %arg1: memref<1x4x2x404xf32, #tpu.memory_space<vmem>>, %arg2: memref<1x4x2x320xf32, #tpu.memory_space<vmem>>, %arg3: memref<1x362xf32, #tpu.memory_space<vmem>>, %arg4: memref<144xf32, #tpu.memory_space<smem>>, %arg5: memref<4xf32, #tpu.memory_space<smem>>, %arg6: memref<144xf32, #tpu.memory_space<smem>>, %arg7: memref<4xf32, #tpu.memory_space<smem>>, %arg8: memref<16xf32, #tpu.memory_space<smem>>, %arg9: memref<4xf32, #tpu.memory_space<smem>>, %arg10: memref<1x4x2x320xf32, #tpu.memory_space<vmem>>) attributes {dimension_semantics = [#tpu.dimension_semantics<parallel>], iteration_bounds = array<i64: 1>, scalar_prefetch = 0 : i64, scratch_operands = 0 : i64, tpu.core_type = #tpu.core_type<tc>, window_params = [{transform_indices = @transform_0, window_bounds = array<i64: 1, 4, 2, 404>}, {transform_indices = @transform_1, window_bounds = array<i64: 1, 4, 2, 320>}, {pipeline_mode = #tpu.pipeline_mode<synchronous>, transform_indices = @transform_2, window_bounds = array<i64: 1, 362>}, {transform_indices = @transform_3, window_bounds = array<i64: 144>}, {transform_indices = @transform_4, window_bounds = array<i64: 4>}, {transform_indices = @transform_5, window_bounds = array<i64: 144>}, {transform_indices = @transform_6, window_bounds = array<i64: 4>}, {transform_indices = @transform_7, window_bounds = array<i64: 16>}, {transform_indices = @transform_8, window_bounds = array<i64: 4>}, {transform_indices = @transform_9, window_bounds = array<i64: 1, 4, 2, 320>}]} {
    %c0 = arith.constant 0 : index
    %c0_0 = arith.constant 0 : index
    %c0_1 = arith.constant 0 : index
    %c0_2 = arith.constant 0 : index
    %0 = vector.load %arg1[%c0, %c0_0, %c0_1, %c0_2] : memref<1x4x2x404xf32, #tpu.memory_space<vmem>>, vector<1x1x2x404xf32>
    %1 = vector.shape_cast %0 : vector<1x1x2x404xf32> to vector<2x404xf32>
    %c0_3 = arith.constant 0 : index
    %c1 = arith.constant 1 : index
    %c0_4 = arith.constant 0 : index
    %c0_5 = arith.constant 0 : index
    %2 = vector.load %arg1[%c0_3, %c1, %c0_4, %c0_5] : memref<1x4x2x404xf32, #tpu.memory_space<vmem>>, vector<1x1x2x404xf32>
    %3 = vector.shape_cast %2 : vector<1x1x2x404xf32> to vector<2x404xf32>
    %c0_6 = arith.constant 0 : index
    %c2 = arith.constant 2 : index
    %c0_7 = arith.constant 0 : index
    %c0_8 = arith.constant 0 : index
    %4 = vector.load %arg1[%c0_6, %c2, %c0_7, %c0_8] : memref<1x4x2x404xf32, #tpu.memory_space<vmem>>, vector<1x1x2x404xf32>
    %5 = vector.shape_cast %4 : vector<1x1x2x404xf32> to vector<2x404xf32>
    %c0_9 = arith.constant 0 : index
    %c3 = arith.constant 3 : index
    %c0_10 = arith.constant 0 : index
    %c0_11 = arith.constant 0 : index
    %6 = vector.load %arg1[%c0_9, %c3, %c0_10, %c0_11] : memref<1x4x2x404xf32, #tpu.memory_space<vmem>>, vector<1x1x2x404xf32>
    %7 = vector.shape_cast %6 : vector<1x1x2x404xf32> to vector<2x404xf32>
    %8 = vector.extract_strided_slice %1 {offsets = [0, 0], sizes = [2, 362], strides = [1, 1]} : vector<2x404xf32> to vector<2x362xf32>
    %c0_12 = arith.constant 0 : index
    %9 = memref.load %arg4[%c0_12] : memref<144xf32, #tpu.memory_space<smem>>
    %10 = vector.broadcast %9 : f32 to vector<2x362xf32>
    %11 = arith.mulf %10, %8 : vector<2x362xf32>
    %c36 = arith.constant 36 : index
    %12 = memref.load %arg4[%c36] : memref<144xf32, #tpu.memory_space<smem>>
    %13 = vector.broadcast %12 : f32 to vector<2x362xf32>
    %14 = arith.mulf %13, %8 : vector<2x362xf32>
    %c72 = arith.constant 72 : index
    %15 = memref.load %arg4[%c72] : memref<144xf32, #tpu.memory_space<smem>>
    %16 = vector.broadcast %15 : f32 to vector<2x362xf32>
    %17 = arith.mulf %16, %8 : vector<2x362xf32>
    %c108 = arith.constant 108 : index
    %18 = memref.load %arg4[%c108] : memref<144xf32, #tpu.memory_space<smem>>
    %19 = vector.broadcast %18 : f32 to vector<2x362xf32>
    %20 = arith.mulf %19, %8 : vector<2x362xf32>
    %21 = vector.extract_strided_slice %1 {offsets = [0, 1], sizes = [2, 362], strides = [1, 1]} : vector<2x404xf32> to vector<2x362xf32>
    %c1_13 = arith.constant 1 : index
    %22 = memref.load %arg4[%c1_13] : memref<144xf32, #tpu.memory_space<smem>>
    %23 = vector.broadcast %22 : f32 to vector<2x362xf32>
    %24 = arith.mulf %23, %21 : vector<2x362xf32>
    %25 = arith.addf %11, %24 : vector<2x362xf32>
    %c37 = arith.constant 37 : index
    %26 = memref.load %arg4[%c37] : memref<144xf32, #tpu.memory_space<smem>>
    %27 = vector.broadcast %26 : f32 to vector<2x362xf32>
    %28 = arith.mulf %27, %21 : vector<2x362xf32>
    %29 = arith.addf %14, %28 : vector<2x362xf32>
    %c73 = arith.constant 73 : index
    %30 = memref.load %arg4[%c73] : memref<144xf32, #tpu.memory_space<smem>>
    %31 = vector.broadcast %30 : f32 to vector<2x362xf32>
    %32 = arith.mulf %31, %21 : vector<2x362xf32>
    %33 = arith.addf %17, %32 : vector<2x362xf32>
    %c109 = arith.constant 109 : index
    %34 = memref.load %arg4[%c109] : memref<144xf32, #tpu.memory_space<smem>>
    %35 = vector.broadcast %34 : f32 to vector<2x362xf32>
    %36 = arith.mulf %35, %21 : vector<2x362xf32>
    %37 = arith.addf %20, %36 : vector<2x362xf32>
    %38 = vector.extract_strided_slice %1 {offsets = [0, 2], sizes = [2, 362], strides = [1, 1]} : vector<2x404xf32> to vector<2x362xf32>
    %c2_14 = arith.constant 2 : index
    %39 = memref.load %arg4[%c2_14] : memref<144xf32, #tpu.memory_space<smem>>
    %40 = vector.broadcast %39 : f32 to vector<2x362xf32>
    %41 = arith.mulf %40, %38 : vector<2x362xf32>
    %42 = arith.addf %25, %41 : vector<2x362xf32>
    %c38 = arith.constant 38 : index
    %43 = memref.load %arg4[%c38] : memref<144xf32, #tpu.memory_space<smem>>
    %44 = vector.broadcast %43 : f32 to vector<2x362xf32>
    %45 = arith.mulf %44, %38 : vector<2x362xf32>
    %46 = arith.addf %29, %45 : vector<2x362xf32>
    %c74 = arith.constant 74 : index
    %47 = memref.load %arg4[%c74] : memref<144xf32, #tpu.memory_space<smem>>
    %48 = vector.broadcast %47 : f32 to vector<2x362xf32>
    %49 = arith.mulf %48, %38 : vector<2x362xf32>
    %50 = arith.addf %33, %49 : vector<2x362xf32>
    %c110 = arith.constant 110 : index
    %51 = memref.load %arg4[%c110] : memref<144xf32, #tpu.memory_space<smem>>
    %52 = vector.broadcast %51 : f32 to vector<2x362xf32>
    %53 = arith.mulf %52, %38 : vector<2x362xf32>
    %54 = arith.addf %37, %53 : vector<2x362xf32>
    %55 = vector.extract_strided_slice %1 {offsets = [0, 20], sizes = [2, 362], strides = [1, 1]} : vector<2x404xf32> to vector<2x362xf32>
    %c3_15 = arith.constant 3 : index
    %56 = memref.load %arg4[%c3_15] : memref<144xf32, #tpu.memory_space<smem>>
    %57 = vector.broadcast %56 : f32 to vector<2x362xf32>
    %58 = arith.mulf %57, %55 : vector<2x362xf32>
    %59 = arith.addf %42, %58 : vector<2x362xf32>
    %c39 = arith.constant 39 : index
    %60 = memref.load %arg4[%c39] : memref<144xf32, #tpu.memory_space<smem>>
    %61 = vector.broadcast %60 : f32 to vector<2x362xf32>
    %62 = arith.mulf %61, %55 : vector<2x362xf32>
    %63 = arith.addf %46, %62 : vector<2x362xf32>
    %c75 = arith.constant 75 : index
    %64 = memref.load %arg4[%c75] : memref<144xf32, #tpu.memory_space<smem>>
    %65 = vector.broadcast %64 : f32 to vector<2x362xf32>
    %66 = arith.mulf %65, %55 : vector<2x362xf32>
    %67 = arith.addf %50, %66 : vector<2x362xf32>
    %c111 = arith.constant 111 : index
    %68 = memref.load %arg4[%c111] : memref<144xf32, #tpu.memory_space<smem>>
    %69 = vector.broadcast %68 : f32 to vector<2x362xf32>
    %70 = arith.mulf %69, %55 : vector<2x362xf32>
    %71 = arith.addf %54, %70 : vector<2x362xf32>
    %72 = vector.extract_strided_slice %1 {offsets = [0, 21], sizes = [2, 362], strides = [1, 1]} : vector<2x404xf32> to vector<2x362xf32>
    %c4 = arith.constant 4 : index
    %73 = memref.load %arg4[%c4] : memref<144xf32, #tpu.memory_space<smem>>
    %74 = vector.broadcast %73 : f32 to vector<2x362xf32>
    %75 = arith.mulf %74, %72 : vector<2x362xf32>
    %76 = arith.addf %59, %75 : vector<2x362xf32>
    %c40 = arith.constant 40 : index
    %77 = memref.load %arg4[%c40] : memref<144xf32, #tpu.memory_space<smem>>
    %78 = vector.broadcast %77 : f32 to vector<2x362xf32>
    %79 = arith.mulf %78, %72 : vector<2x362xf32>
    %80 = arith.addf %63, %79 : vector<2x362xf32>
    %c76 = arith.constant 76 : index
    %81 = memref.load %arg4[%c76] : memref<144xf32, #tpu.memory_space<smem>>
    %82 = vector.broadcast %81 : f32 to vector<2x362xf32>
    %83 = arith.mulf %82, %72 : vector<2x362xf32>
    %84 = arith.addf %67, %83 : vector<2x362xf32>
    %c112 = arith.constant 112 : index
    %85 = memref.load %arg4[%c112] : memref<144xf32, #tpu.memory_space<smem>>
    %86 = vector.broadcast %85 : f32 to vector<2x362xf32>
    %87 = arith.mulf %86, %72 : vector<2x362xf32>
    %88 = arith.addf %71, %87 : vector<2x362xf32>
    %89 = vector.extract_strided_slice %1 {offsets = [0, 22], sizes = [2, 362], strides = [1, 1]} : vector<2x404xf32> to vector<2x362xf32>
    %c5 = arith.constant 5 : index
    %90 = memref.load %arg4[%c5] : memref<144xf32, #tpu.memory_space<smem>>
    %91 = vector.broadcast %90 : f32 to vector<2x362xf32>
    %92 = arith.mulf %91, %89 : vector<2x362xf32>
    %93 = arith.addf %76, %92 : vector<2x362xf32>
    %c41 = arith.constant 41 : index
    %94 = memref.load %arg4[%c41] : memref<144xf32, #tpu.memory_space<smem>>
    %95 = vector.broadcast %94 : f32 to vector<2x362xf32>
    %96 = arith.mulf %95, %89 : vector<2x362xf32>
    %97 = arith.addf %80, %96 : vector<2x362xf32>
    %c77 = arith.constant 77 : index
    %98 = memref.load %arg4[%c77] : memref<144xf32, #tpu.memory_space<smem>>
    %99 = vector.broadcast %98 : f32 to vector<2x362xf32>
    %100 = arith.mulf %99, %89 : vector<2x362xf32>
    %101 = arith.addf %84, %100 : vector<2x362xf32>
    %c113 = arith.constant 113 : index
    %102 = memref.load %arg4[%c113] : memref<144xf32, #tpu.memory_space<smem>>
    %103 = vector.broadcast %102 : f32 to vector<2x362xf32>
    %104 = arith.mulf %103, %89 : vector<2x362xf32>
    %105 = arith.addf %88, %104 : vector<2x362xf32>
    %106 = vector.extract_strided_slice %1 {offsets = [0, 40], sizes = [2, 362], strides = [1, 1]} : vector<2x404xf32> to vector<2x362xf32>
    %c6 = arith.constant 6 : index
    %107 = memref.load %arg4[%c6] : memref<144xf32, #tpu.memory_space<smem>>
    %108 = vector.broadcast %107 : f32 to vector<2x362xf32>
    %109 = arith.mulf %108, %106 : vector<2x362xf32>
    %110 = arith.addf %93, %109 : vector<2x362xf32>
    %c42 = arith.constant 42 : index
    %111 = memref.load %arg4[%c42] : memref<144xf32, #tpu.memory_space<smem>>
    %112 = vector.broadcast %111 : f32 to vector<2x362xf32>
    %113 = arith.mulf %112, %106 : vector<2x362xf32>
    %114 = arith.addf %97, %113 : vector<2x362xf32>
    %c78 = arith.constant 78 : index
    %115 = memref.load %arg4[%c78] : memref<144xf32, #tpu.memory_space<smem>>
    %116 = vector.broadcast %115 : f32 to vector<2x362xf32>
    %117 = arith.mulf %116, %106 : vector<2x362xf32>
    %118 = arith.addf %101, %117 : vector<2x362xf32>
    %c114 = arith.constant 114 : index
    %119 = memref.load %arg4[%c114] : memref<144xf32, #tpu.memory_space<smem>>
    %120 = vector.broadcast %119 : f32 to vector<2x362xf32>
    %121 = arith.mulf %120, %106 : vector<2x362xf32>
    %122 = arith.addf %105, %121 : vector<2x362xf32>
    %123 = vector.extract_strided_slice %1 {offsets = [0, 41], sizes = [2, 362], strides = [1, 1]} : vector<2x404xf32> to vector<2x362xf32>
    %c7 = arith.constant 7 : index
    %124 = memref.load %arg4[%c7] : memref<144xf32, #tpu.memory_space<smem>>
    %125 = vector.broadcast %124 : f32 to vector<2x362xf32>
    %126 = arith.mulf %125, %123 : vector<2x362xf32>
    %127 = arith.addf %110, %126 : vector<2x362xf32>
    %c43 = arith.constant 43 : index
    %128 = memref.load %arg4[%c43] : memref<144xf32, #tpu.memory_space<smem>>
    %129 = vector.broadcast %128 : f32 to vector<2x362xf32>
    %130 = arith.mulf %129, %123 : vector<2x362xf32>
    %131 = arith.addf %114, %130 : vector<2x362xf32>
    %c79 = arith.constant 79 : index
    %132 = memref.load %arg4[%c79] : memref<144xf32, #tpu.memory_space<smem>>
    %133 = vector.broadcast %132 : f32 to vector<2x362xf32>
    %134 = arith.mulf %133, %123 : vector<2x362xf32>
    %135 = arith.addf %118, %134 : vector<2x362xf32>
    %c115 = arith.constant 115 : index
    %136 = memref.load %arg4[%c115] : memref<144xf32, #tpu.memory_space<smem>>
    %137 = vector.broadcast %136 : f32 to vector<2x362xf32>
    %138 = arith.mulf %137, %123 : vector<2x362xf32>
    %139 = arith.addf %122, %138 : vector<2x362xf32>
    %140 = vector.extract_strided_slice %1 {offsets = [0, 42], sizes = [2, 362], strides = [1, 1]} : vector<2x404xf32> to vector<2x362xf32>
    %c8 = arith.constant 8 : index
    %141 = memref.load %arg4[%c8] : memref<144xf32, #tpu.memory_space<smem>>
    %142 = vector.broadcast %141 : f32 to vector<2x362xf32>
    %143 = arith.mulf %142, %140 : vector<2x362xf32>
    %144 = arith.addf %127, %143 : vector<2x362xf32>
    %c44 = arith.constant 44 : index
    %145 = memref.load %arg4[%c44] : memref<144xf32, #tpu.memory_space<smem>>
    %146 = vector.broadcast %145 : f32 to vector<2x362xf32>
    %147 = arith.mulf %146, %140 : vector<2x362xf32>
    %148 = arith.addf %131, %147 : vector<2x362xf32>
    %c80 = arith.constant 80 : index
    %149 = memref.load %arg4[%c80] : memref<144xf32, #tpu.memory_space<smem>>
    %150 = vector.broadcast %149 : f32 to vector<2x362xf32>
    %151 = arith.mulf %150, %140 : vector<2x362xf32>
    %152 = arith.addf %135, %151 : vector<2x362xf32>
    %c116 = arith.constant 116 : index
    %153 = memref.load %arg4[%c116] : memref<144xf32, #tpu.memory_space<smem>>
    %154 = vector.broadcast %153 : f32 to vector<2x362xf32>
    %155 = arith.mulf %154, %140 : vector<2x362xf32>
    %156 = arith.addf %139, %155 : vector<2x362xf32>
    %157 = vector.extract_strided_slice %3 {offsets = [0, 0], sizes = [2, 362], strides = [1, 1]} : vector<2x404xf32> to vector<2x362xf32>
    %c9 = arith.constant 9 : index
    %158 = memref.load %arg4[%c9] : memref<144xf32, #tpu.memory_space<smem>>
    %159 = vector.broadcast %158 : f32 to vector<2x362xf32>
    %160 = arith.mulf %159, %157 : vector<2x362xf32>
    %161 = arith.addf %144, %160 : vector<2x362xf32>
    %c45 = arith.constant 45 : index
    %162 = memref.load %arg4[%c45] : memref<144xf32, #tpu.memory_space<smem>>
    %163 = vector.broadcast %162 : f32 to vector<2x362xf32>
    %164 = arith.mulf %163, %157 : vector<2x362xf32>
    %165 = arith.addf %148, %164 : vector<2x362xf32>
    %c81 = arith.constant 81 : index
    %166 = memref.load %arg4[%c81] : memref<144xf32, #tpu.memory_space<smem>>
    %167 = vector.broadcast %166 : f32 to vector<2x362xf32>
    %168 = arith.mulf %167, %157 : vector<2x362xf32>
    %169 = arith.addf %152, %168 : vector<2x362xf32>
    %c117 = arith.constant 117 : index
    %170 = memref.load %arg4[%c117] : memref<144xf32, #tpu.memory_space<smem>>
    %171 = vector.broadcast %170 : f32 to vector<2x362xf32>
    %172 = arith.mulf %171, %157 : vector<2x362xf32>
    %173 = arith.addf %156, %172 : vector<2x362xf32>
    %174 = vector.extract_strided_slice %3 {offsets = [0, 1], sizes = [2, 362], strides = [1, 1]} : vector<2x404xf32> to vector<2x362xf32>
    %c10 = arith.constant 10 : index
    %175 = memref.load %arg4[%c10] : memref<144xf32, #tpu.memory_space<smem>>
    %176 = vector.broadcast %175 : f32 to vector<2x362xf32>
    %177 = arith.mulf %176, %174 : vector<2x362xf32>
    %178 = arith.addf %161, %177 : vector<2x362xf32>
    %c46 = arith.constant 46 : index
    %179 = memref.load %arg4[%c46] : memref<144xf32, #tpu.memory_space<smem>>
    %180 = vector.broadcast %179 : f32 to vector<2x362xf32>
    %181 = arith.mulf %180, %174 : vector<2x362xf32>
    %182 = arith.addf %165, %181 : vector<2x362xf32>
    %c82 = arith.constant 82 : index
    %183 = memref.load %arg4[%c82] : memref<144xf32, #tpu.memory_space<smem>>
    %184 = vector.broadcast %183 : f32 to vector<2x362xf32>
    %185 = arith.mulf %184, %174 : vector<2x362xf32>
    %186 = arith.addf %169, %185 : vector<2x362xf32>
    %c118 = arith.constant 118 : index
    %187 = memref.load %arg4[%c118] : memref<144xf32, #tpu.memory_space<smem>>
    %188 = vector.broadcast %187 : f32 to vector<2x362xf32>
    %189 = arith.mulf %188, %174 : vector<2x362xf32>
    %190 = arith.addf %173, %189 : vector<2x362xf32>
    %191 = vector.extract_strided_slice %3 {offsets = [0, 2], sizes = [2, 362], strides = [1, 1]} : vector<2x404xf32> to vector<2x362xf32>
    %c11 = arith.constant 11 : index
    %192 = memref.load %arg4[%c11] : memref<144xf32, #tpu.memory_space<smem>>
    %193 = vector.broadcast %192 : f32 to vector<2x362xf32>
    %194 = arith.mulf %193, %191 : vector<2x362xf32>
    %195 = arith.addf %178, %194 : vector<2x362xf32>
    %c47 = arith.constant 47 : index
    %196 = memref.load %arg4[%c47] : memref<144xf32, #tpu.memory_space<smem>>
    %197 = vector.broadcast %196 : f32 to vector<2x362xf32>
    %198 = arith.mulf %197, %191 : vector<2x362xf32>
    %199 = arith.addf %182, %198 : vector<2x362xf32>
    %c83 = arith.constant 83 : index
    %200 = memref.load %arg4[%c83] : memref<144xf32, #tpu.memory_space<smem>>
    %201 = vector.broadcast %200 : f32 to vector<2x362xf32>
    %202 = arith.mulf %201, %191 : vector<2x362xf32>
    %203 = arith.addf %186, %202 : vector<2x362xf32>
    %c119 = arith.constant 119 : index
    %204 = memref.load %arg4[%c119] : memref<144xf32, #tpu.memory_space<smem>>
    %205 = vector.broadcast %204 : f32 to vector<2x362xf32>
    %206 = arith.mulf %205, %191 : vector<2x362xf32>
    %207 = arith.addf %190, %206 : vector<2x362xf32>
    %208 = vector.extract_strided_slice %3 {offsets = [0, 20], sizes = [2, 362], strides = [1, 1]} : vector<2x404xf32> to vector<2x362xf32>
    %c12 = arith.constant 12 : index
    %209 = memref.load %arg4[%c12] : memref<144xf32, #tpu.memory_space<smem>>
    %210 = vector.broadcast %209 : f32 to vector<2x362xf32>
    %211 = arith.mulf %210, %208 : vector<2x362xf32>
    %212 = arith.addf %195, %211 : vector<2x362xf32>
    %c48 = arith.constant 48 : index
    %213 = memref.load %arg4[%c48] : memref<144xf32, #tpu.memory_space<smem>>
    %214 = vector.broadcast %213 : f32 to vector<2x362xf32>
    %215 = arith.mulf %214, %208 : vector<2x362xf32>
    %216 = arith.addf %199, %215 : vector<2x362xf32>
    %c84 = arith.constant 84 : index
    %217 = memref.load %arg4[%c84] : memref<144xf32, #tpu.memory_space<smem>>
    %218 = vector.broadcast %217 : f32 to vector<2x362xf32>
    %219 = arith.mulf %218, %208 : vector<2x362xf32>
    %220 = arith.addf %203, %219 : vector<2x362xf32>
    %c120 = arith.constant 120 : index
    %221 = memref.load %arg4[%c120] : memref<144xf32, #tpu.memory_space<smem>>
    %222 = vector.broadcast %221 : f32 to vector<2x362xf32>
    %223 = arith.mulf %222, %208 : vector<2x362xf32>
    %224 = arith.addf %207, %223 : vector<2x362xf32>
    %225 = vector.extract_strided_slice %3 {offsets = [0, 21], sizes = [2, 362], strides = [1, 1]} : vector<2x404xf32> to vector<2x362xf32>
    %c13 = arith.constant 13 : index
    %226 = memref.load %arg4[%c13] : memref<144xf32, #tpu.memory_space<smem>>
    %227 = vector.broadcast %226 : f32 to vector<2x362xf32>
    %228 = arith.mulf %227, %225 : vector<2x362xf32>
    %229 = arith.addf %212, %228 : vector<2x362xf32>
    %c49 = arith.constant 49 : index
    %230 = memref.load %arg4[%c49] : memref<144xf32, #tpu.memory_space<smem>>
    %231 = vector.broadcast %230 : f32 to vector<2x362xf32>
    %232 = arith.mulf %231, %225 : vector<2x362xf32>
    %233 = arith.addf %216, %232 : vector<2x362xf32>
    %c85 = arith.constant 85 : index
    %234 = memref.load %arg4[%c85] : memref<144xf32, #tpu.memory_space<smem>>
    %235 = vector.broadcast %234 : f32 to vector<2x362xf32>
    %236 = arith.mulf %235, %225 : vector<2x362xf32>
    %237 = arith.addf %220, %236 : vector<2x362xf32>
    %c121 = arith.constant 121 : index
    %238 = memref.load %arg4[%c121] : memref<144xf32, #tpu.memory_space<smem>>
    %239 = vector.broadcast %238 : f32 to vector<2x362xf32>
    %240 = arith.mulf %239, %225 : vector<2x362xf32>
    %241 = arith.addf %224, %240 : vector<2x362xf32>
    %242 = vector.extract_strided_slice %3 {offsets = [0, 22], sizes = [2, 362], strides = [1, 1]} : vector<2x404xf32> to vector<2x362xf32>
    %c14 = arith.constant 14 : index
    %243 = memref.load %arg4[%c14] : memref<144xf32, #tpu.memory_space<smem>>
    %244 = vector.broadcast %243 : f32 to vector<2x362xf32>
    %245 = arith.mulf %244, %242 : vector<2x362xf32>
    %246 = arith.addf %229, %245 : vector<2x362xf32>
    %c50 = arith.constant 50 : index
    %247 = memref.load %arg4[%c50] : memref<144xf32, #tpu.memory_space<smem>>
    %248 = vector.broadcast %247 : f32 to vector<2x362xf32>
    %249 = arith.mulf %248, %242 : vector<2x362xf32>
    %250 = arith.addf %233, %249 : vector<2x362xf32>
    %c86 = arith.constant 86 : index
    %251 = memref.load %arg4[%c86] : memref<144xf32, #tpu.memory_space<smem>>
    %252 = vector.broadcast %251 : f32 to vector<2x362xf32>
    %253 = arith.mulf %252, %242 : vector<2x362xf32>
    %254 = arith.addf %237, %253 : vector<2x362xf32>
    %c122 = arith.constant 122 : index
    %255 = memref.load %arg4[%c122] : memref<144xf32, #tpu.memory_space<smem>>
    %256 = vector.broadcast %255 : f32 to vector<2x362xf32>
    %257 = arith.mulf %256, %242 : vector<2x362xf32>
    %258 = arith.addf %241, %257 : vector<2x362xf32>
    %259 = vector.extract_strided_slice %3 {offsets = [0, 40], sizes = [2, 362], strides = [1, 1]} : vector<2x404xf32> to vector<2x362xf32>
    %c15 = arith.constant 15 : index
    %260 = memref.load %arg4[%c15] : memref<144xf32, #tpu.memory_space<smem>>
    %261 = vector.broadcast %260 : f32 to vector<2x362xf32>
    %262 = arith.mulf %261, %259 : vector<2x362xf32>
    %263 = arith.addf %246, %262 : vector<2x362xf32>
    %c51 = arith.constant 51 : index
    %264 = memref.load %arg4[%c51] : memref<144xf32, #tpu.memory_space<smem>>
    %265 = vector.broadcast %264 : f32 to vector<2x362xf32>
    %266 = arith.mulf %265, %259 : vector<2x362xf32>
    %267 = arith.addf %250, %266 : vector<2x362xf32>
    %c87 = arith.constant 87 : index
    %268 = memref.load %arg4[%c87] : memref<144xf32, #tpu.memory_space<smem>>
    %269 = vector.broadcast %268 : f32 to vector<2x362xf32>
    %270 = arith.mulf %269, %259 : vector<2x362xf32>
    %271 = arith.addf %254, %270 : vector<2x362xf32>
    %c123 = arith.constant 123 : index
    %272 = memref.load %arg4[%c123] : memref<144xf32, #tpu.memory_space<smem>>
    %273 = vector.broadcast %272 : f32 to vector<2x362xf32>
    %274 = arith.mulf %273, %259 : vector<2x362xf32>
    %275 = arith.addf %258, %274 : vector<2x362xf32>
    %276 = vector.extract_strided_slice %3 {offsets = [0, 41], sizes = [2, 362], strides = [1, 1]} : vector<2x404xf32> to vector<2x362xf32>
    %c16 = arith.constant 16 : index
    %277 = memref.load %arg4[%c16] : memref<144xf32, #tpu.memory_space<smem>>
    %278 = vector.broadcast %277 : f32 to vector<2x362xf32>
    %279 = arith.mulf %278, %276 : vector<2x362xf32>
    %280 = arith.addf %263, %279 : vector<2x362xf32>
    %c52 = arith.constant 52 : index
    %281 = memref.load %arg4[%c52] : memref<144xf32, #tpu.memory_space<smem>>
    %282 = vector.broadcast %281 : f32 to vector<2x362xf32>
    %283 = arith.mulf %282, %276 : vector<2x362xf32>
    %284 = arith.addf %267, %283 : vector<2x362xf32>
    %c88 = arith.constant 88 : index
    %285 = memref.load %arg4[%c88] : memref<144xf32, #tpu.memory_space<smem>>
    %286 = vector.broadcast %285 : f32 to vector<2x362xf32>
    %287 = arith.mulf %286, %276 : vector<2x362xf32>
    %288 = arith.addf %271, %287 : vector<2x362xf32>
    %c124 = arith.constant 124 : index
    %289 = memref.load %arg4[%c124] : memref<144xf32, #tpu.memory_space<smem>>
    %290 = vector.broadcast %289 : f32 to vector<2x362xf32>
    %291 = arith.mulf %290, %276 : vector<2x362xf32>
    %292 = arith.addf %275, %291 : vector<2x362xf32>
    %293 = vector.extract_strided_slice %3 {offsets = [0, 42], sizes = [2, 362], strides = [1, 1]} : vector<2x404xf32> to vector<2x362xf32>
    %c17 = arith.constant 17 : index
    %294 = memref.load %arg4[%c17] : memref<144xf32, #tpu.memory_space<smem>>
    %295 = vector.broadcast %294 : f32 to vector<2x362xf32>
    %296 = arith.mulf %295, %293 : vector<2x362xf32>
    %297 = arith.addf %280, %296 : vector<2x362xf32>
    %c53 = arith.constant 53 : index
    %298 = memref.load %arg4[%c53] : memref<144xf32, #tpu.memory_space<smem>>
    %299 = vector.broadcast %298 : f32 to vector<2x362xf32>
    %300 = arith.mulf %299, %293 : vector<2x362xf32>
    %301 = arith.addf %284, %300 : vector<2x362xf32>
    %c89 = arith.constant 89 : index
    %302 = memref.load %arg4[%c89] : memref<144xf32, #tpu.memory_space<smem>>
    %303 = vector.broadcast %302 : f32 to vector<2x362xf32>
    %304 = arith.mulf %303, %293 : vector<2x362xf32>
    %305 = arith.addf %288, %304 : vector<2x362xf32>
    %c125 = arith.constant 125 : index
    %306 = memref.load %arg4[%c125] : memref<144xf32, #tpu.memory_space<smem>>
    %307 = vector.broadcast %306 : f32 to vector<2x362xf32>
    %308 = arith.mulf %307, %293 : vector<2x362xf32>
    %309 = arith.addf %292, %308 : vector<2x362xf32>
    %310 = vector.extract_strided_slice %5 {offsets = [0, 0], sizes = [2, 362], strides = [1, 1]} : vector<2x404xf32> to vector<2x362xf32>
    %c18 = arith.constant 18 : index
    %311 = memref.load %arg4[%c18] : memref<144xf32, #tpu.memory_space<smem>>
    %312 = vector.broadcast %311 : f32 to vector<2x362xf32>
    %313 = arith.mulf %312, %310 : vector<2x362xf32>
    %314 = arith.addf %297, %313 : vector<2x362xf32>
    %c54 = arith.constant 54 : index
    %315 = memref.load %arg4[%c54] : memref<144xf32, #tpu.memory_space<smem>>
    %316 = vector.broadcast %315 : f32 to vector<2x362xf32>
    %317 = arith.mulf %316, %310 : vector<2x362xf32>
    %318 = arith.addf %301, %317 : vector<2x362xf32>
    %c90 = arith.constant 90 : index
    %319 = memref.load %arg4[%c90] : memref<144xf32, #tpu.memory_space<smem>>
    %320 = vector.broadcast %319 : f32 to vector<2x362xf32>
    %321 = arith.mulf %320, %310 : vector<2x362xf32>
    %322 = arith.addf %305, %321 : vector<2x362xf32>
    %c126 = arith.constant 126 : index
    %323 = memref.load %arg4[%c126] : memref<144xf32, #tpu.memory_space<smem>>
    %324 = vector.broadcast %323 : f32 to vector<2x362xf32>
    %325 = arith.mulf %324, %310 : vector<2x362xf32>
    %326 = arith.addf %309, %325 : vector<2x362xf32>
    %327 = vector.extract_strided_slice %5 {offsets = [0, 1], sizes = [2, 362], strides = [1, 1]} : vector<2x404xf32> to vector<2x362xf32>
    %c19 = arith.constant 19 : index
    %328 = memref.load %arg4[%c19] : memref<144xf32, #tpu.memory_space<smem>>
    %329 = vector.broadcast %328 : f32 to vector<2x362xf32>
    %330 = arith.mulf %329, %327 : vector<2x362xf32>
    %331 = arith.addf %314, %330 : vector<2x362xf32>
    %c55 = arith.constant 55 : index
    %332 = memref.load %arg4[%c55] : memref<144xf32, #tpu.memory_space<smem>>
    %333 = vector.broadcast %332 : f32 to vector<2x362xf32>
    %334 = arith.mulf %333, %327 : vector<2x362xf32>
    %335 = arith.addf %318, %334 : vector<2x362xf32>
    %c91 = arith.constant 91 : index
    %336 = memref.load %arg4[%c91] : memref<144xf32, #tpu.memory_space<smem>>
    %337 = vector.broadcast %336 : f32 to vector<2x362xf32>
    %338 = arith.mulf %337, %327 : vector<2x362xf32>
    %339 = arith.addf %322, %338 : vector<2x362xf32>
    %c127 = arith.constant 127 : index
    %340 = memref.load %arg4[%c127] : memref<144xf32, #tpu.memory_space<smem>>
    %341 = vector.broadcast %340 : f32 to vector<2x362xf32>
    %342 = arith.mulf %341, %327 : vector<2x362xf32>
    %343 = arith.addf %326, %342 : vector<2x362xf32>
    %344 = vector.extract_strided_slice %5 {offsets = [0, 2], sizes = [2, 362], strides = [1, 1]} : vector<2x404xf32> to vector<2x362xf32>
    %c20 = arith.constant 20 : index
    %345 = memref.load %arg4[%c20] : memref<144xf32, #tpu.memory_space<smem>>
    %346 = vector.broadcast %345 : f32 to vector<2x362xf32>
    %347 = arith.mulf %346, %344 : vector<2x362xf32>
    %348 = arith.addf %331, %347 : vector<2x362xf32>
    %c56 = arith.constant 56 : index
    %349 = memref.load %arg4[%c56] : memref<144xf32, #tpu.memory_space<smem>>
    %350 = vector.broadcast %349 : f32 to vector<2x362xf32>
    %351 = arith.mulf %350, %344 : vector<2x362xf32>
    %352 = arith.addf %335, %351 : vector<2x362xf32>
    %c92 = arith.constant 92 : index
    %353 = memref.load %arg4[%c92] : memref<144xf32, #tpu.memory_space<smem>>
    %354 = vector.broadcast %353 : f32 to vector<2x362xf32>
    %355 = arith.mulf %354, %344 : vector<2x362xf32>
    %356 = arith.addf %339, %355 : vector<2x362xf32>
    %c128 = arith.constant 128 : index
    %357 = memref.load %arg4[%c128] : memref<144xf32, #tpu.memory_space<smem>>
    %358 = vector.broadcast %357 : f32 to vector<2x362xf32>
    %359 = arith.mulf %358, %344 : vector<2x362xf32>
    %360 = arith.addf %343, %359 : vector<2x362xf32>
    %361 = vector.extract_strided_slice %5 {offsets = [0, 20], sizes = [2, 362], strides = [1, 1]} : vector<2x404xf32> to vector<2x362xf32>
    %c21 = arith.constant 21 : index
    %362 = memref.load %arg4[%c21] : memref<144xf32, #tpu.memory_space<smem>>
    %363 = vector.broadcast %362 : f32 to vector<2x362xf32>
    %364 = arith.mulf %363, %361 : vector<2x362xf32>
    %365 = arith.addf %348, %364 : vector<2x362xf32>
    %c57 = arith.constant 57 : index
    %366 = memref.load %arg4[%c57] : memref<144xf32, #tpu.memory_space<smem>>
    %367 = vector.broadcast %366 : f32 to vector<2x362xf32>
    %368 = arith.mulf %367, %361 : vector<2x362xf32>
    %369 = arith.addf %352, %368 : vector<2x362xf32>
    %c93 = arith.constant 93 : index
    %370 = memref.load %arg4[%c93] : memref<144xf32, #tpu.memory_space<smem>>
    %371 = vector.broadcast %370 : f32 to vector<2x362xf32>
    %372 = arith.mulf %371, %361 : vector<2x362xf32>
    %373 = arith.addf %356, %372 : vector<2x362xf32>
    %c129 = arith.constant 129 : index
    %374 = memref.load %arg4[%c129] : memref<144xf32, #tpu.memory_space<smem>>
    %375 = vector.broadcast %374 : f32 to vector<2x362xf32>
    %376 = arith.mulf %375, %361 : vector<2x362xf32>
    %377 = arith.addf %360, %376 : vector<2x362xf32>
    %378 = vector.extract_strided_slice %5 {offsets = [0, 21], sizes = [2, 362], strides = [1, 1]} : vector<2x404xf32> to vector<2x362xf32>
    %c22 = arith.constant 22 : index
    %379 = memref.load %arg4[%c22] : memref<144xf32, #tpu.memory_space<smem>>
    %380 = vector.broadcast %379 : f32 to vector<2x362xf32>
    %381 = arith.mulf %380, %378 : vector<2x362xf32>
    %382 = arith.addf %365, %381 : vector<2x362xf32>
    %c58 = arith.constant 58 : index
    %383 = memref.load %arg4[%c58] : memref<144xf32, #tpu.memory_space<smem>>
    %384 = vector.broadcast %383 : f32 to vector<2x362xf32>
    %385 = arith.mulf %384, %378 : vector<2x362xf32>
    %386 = arith.addf %369, %385 : vector<2x362xf32>
    %c94 = arith.constant 94 : index
    %387 = memref.load %arg4[%c94] : memref<144xf32, #tpu.memory_space<smem>>
    %388 = vector.broadcast %387 : f32 to vector<2x362xf32>
    %389 = arith.mulf %388, %378 : vector<2x362xf32>
    %390 = arith.addf %373, %389 : vector<2x362xf32>
    %c130 = arith.constant 130 : index
    %391 = memref.load %arg4[%c130] : memref<144xf32, #tpu.memory_space<smem>>
    %392 = vector.broadcast %391 : f32 to vector<2x362xf32>
    %393 = arith.mulf %392, %378 : vector<2x362xf32>
    %394 = arith.addf %377, %393 : vector<2x362xf32>
    %395 = vector.extract_strided_slice %5 {offsets = [0, 22], sizes = [2, 362], strides = [1, 1]} : vector<2x404xf32> to vector<2x362xf32>
    %c23 = arith.constant 23 : index
    %396 = memref.load %arg4[%c23] : memref<144xf32, #tpu.memory_space<smem>>
    %397 = vector.broadcast %396 : f32 to vector<2x362xf32>
    %398 = arith.mulf %397, %395 : vector<2x362xf32>
    %399 = arith.addf %382, %398 : vector<2x362xf32>
    %c59 = arith.constant 59 : index
    %400 = memref.load %arg4[%c59] : memref<144xf32, #tpu.memory_space<smem>>
    %401 = vector.broadcast %400 : f32 to vector<2x362xf32>
    %402 = arith.mulf %401, %395 : vector<2x362xf32>
    %403 = arith.addf %386, %402 : vector<2x362xf32>
    %c95 = arith.constant 95 : index
    %404 = memref.load %arg4[%c95] : memref<144xf32, #tpu.memory_space<smem>>
    %405 = vector.broadcast %404 : f32 to vector<2x362xf32>
    %406 = arith.mulf %405, %395 : vector<2x362xf32>
    %407 = arith.addf %390, %406 : vector<2x362xf32>
    %c131 = arith.constant 131 : index
    %408 = memref.load %arg4[%c131] : memref<144xf32, #tpu.memory_space<smem>>
    %409 = vector.broadcast %408 : f32 to vector<2x362xf32>
    %410 = arith.mulf %409, %395 : vector<2x362xf32>
    %411 = arith.addf %394, %410 : vector<2x362xf32>
    %412 = vector.extract_strided_slice %5 {offsets = [0, 40], sizes = [2, 362], strides = [1, 1]} : vector<2x404xf32> to vector<2x362xf32>
    %c24 = arith.constant 24 : index
    %413 = memref.load %arg4[%c24] : memref<144xf32, #tpu.memory_space<smem>>
    %414 = vector.broadcast %413 : f32 to vector<2x362xf32>
    %415 = arith.mulf %414, %412 : vector<2x362xf32>
    %416 = arith.addf %399, %415 : vector<2x362xf32>
    %c60 = arith.constant 60 : index
    %417 = memref.load %arg4[%c60] : memref<144xf32, #tpu.memory_space<smem>>
    %418 = vector.broadcast %417 : f32 to vector<2x362xf32>
    %419 = arith.mulf %418, %412 : vector<2x362xf32>
    %420 = arith.addf %403, %419 : vector<2x362xf32>
    %c96 = arith.constant 96 : index
    %421 = memref.load %arg4[%c96] : memref<144xf32, #tpu.memory_space<smem>>
    %422 = vector.broadcast %421 : f32 to vector<2x362xf32>
    %423 = arith.mulf %422, %412 : vector<2x362xf32>
    %424 = arith.addf %407, %423 : vector<2x362xf32>
    %c132 = arith.constant 132 : index
    %425 = memref.load %arg4[%c132] : memref<144xf32, #tpu.memory_space<smem>>
    %426 = vector.broadcast %425 : f32 to vector<2x362xf32>
    %427 = arith.mulf %426, %412 : vector<2x362xf32>
    %428 = arith.addf %411, %427 : vector<2x362xf32>
    %429 = vector.extract_strided_slice %5 {offsets = [0, 41], sizes = [2, 362], strides = [1, 1]} : vector<2x404xf32> to vector<2x362xf32>
    %c25 = arith.constant 25 : index
    %430 = memref.load %arg4[%c25] : memref<144xf32, #tpu.memory_space<smem>>
    %431 = vector.broadcast %430 : f32 to vector<2x362xf32>
    %432 = arith.mulf %431, %429 : vector<2x362xf32>
    %433 = arith.addf %416, %432 : vector<2x362xf32>
    %c61 = arith.constant 61 : index
    %434 = memref.load %arg4[%c61] : memref<144xf32, #tpu.memory_space<smem>>
    %435 = vector.broadcast %434 : f32 to vector<2x362xf32>
    %436 = arith.mulf %435, %429 : vector<2x362xf32>
    %437 = arith.addf %420, %436 : vector<2x362xf32>
    %c97 = arith.constant 97 : index
    %438 = memref.load %arg4[%c97] : memref<144xf32, #tpu.memory_space<smem>>
    %439 = vector.broadcast %438 : f32 to vector<2x362xf32>
    %440 = arith.mulf %439, %429 : vector<2x362xf32>
    %441 = arith.addf %424, %440 : vector<2x362xf32>
    %c133 = arith.constant 133 : index
    %442 = memref.load %arg4[%c133] : memref<144xf32, #tpu.memory_space<smem>>
    %443 = vector.broadcast %442 : f32 to vector<2x362xf32>
    %444 = arith.mulf %443, %429 : vector<2x362xf32>
    %445 = arith.addf %428, %444 : vector<2x362xf32>
    %446 = vector.extract_strided_slice %5 {offsets = [0, 42], sizes = [2, 362], strides = [1, 1]} : vector<2x404xf32> to vector<2x362xf32>
    %c26 = arith.constant 26 : index
    %447 = memref.load %arg4[%c26] : memref<144xf32, #tpu.memory_space<smem>>
    %448 = vector.broadcast %447 : f32 to vector<2x362xf32>
    %449 = arith.mulf %448, %446 : vector<2x362xf32>
    %450 = arith.addf %433, %449 : vector<2x362xf32>
    %c62 = arith.constant 62 : index
    %451 = memref.load %arg4[%c62] : memref<144xf32, #tpu.memory_space<smem>>
    %452 = vector.broadcast %451 : f32 to vector<2x362xf32>
    %453 = arith.mulf %452, %446 : vector<2x362xf32>
    %454 = arith.addf %437, %453 : vector<2x362xf32>
    %c98 = arith.constant 98 : index
    %455 = memref.load %arg4[%c98] : memref<144xf32, #tpu.memory_space<smem>>
    %456 = vector.broadcast %455 : f32 to vector<2x362xf32>
    %457 = arith.mulf %456, %446 : vector<2x362xf32>
    %458 = arith.addf %441, %457 : vector<2x362xf32>
    %c134 = arith.constant 134 : index
    %459 = memref.load %arg4[%c134] : memref<144xf32, #tpu.memory_space<smem>>
    %460 = vector.broadcast %459 : f32 to vector<2x362xf32>
    %461 = arith.mulf %460, %446 : vector<2x362xf32>
    %462 = arith.addf %445, %461 : vector<2x362xf32>
    %463 = vector.extract_strided_slice %7 {offsets = [0, 0], sizes = [2, 362], strides = [1, 1]} : vector<2x404xf32> to vector<2x362xf32>
    %c27 = arith.constant 27 : index
    %464 = memref.load %arg4[%c27] : memref<144xf32, #tpu.memory_space<smem>>
    %465 = vector.broadcast %464 : f32 to vector<2x362xf32>
    %466 = arith.mulf %465, %463 : vector<2x362xf32>
    %467 = arith.addf %450, %466 : vector<2x362xf32>
    %c63 = arith.constant 63 : index
    %468 = memref.load %arg4[%c63] : memref<144xf32, #tpu.memory_space<smem>>
    %469 = vector.broadcast %468 : f32 to vector<2x362xf32>
    %470 = arith.mulf %469, %463 : vector<2x362xf32>
    %471 = arith.addf %454, %470 : vector<2x362xf32>
    %c99 = arith.constant 99 : index
    %472 = memref.load %arg4[%c99] : memref<144xf32, #tpu.memory_space<smem>>
    %473 = vector.broadcast %472 : f32 to vector<2x362xf32>
    %474 = arith.mulf %473, %463 : vector<2x362xf32>
    %475 = arith.addf %458, %474 : vector<2x362xf32>
    %c135 = arith.constant 135 : index
    %476 = memref.load %arg4[%c135] : memref<144xf32, #tpu.memory_space<smem>>
    %477 = vector.broadcast %476 : f32 to vector<2x362xf32>
    %478 = arith.mulf %477, %463 : vector<2x362xf32>
    %479 = arith.addf %462, %478 : vector<2x362xf32>
    %480 = vector.extract_strided_slice %7 {offsets = [0, 1], sizes = [2, 362], strides = [1, 1]} : vector<2x404xf32> to vector<2x362xf32>
    %c28 = arith.constant 28 : index
    %481 = memref.load %arg4[%c28] : memref<144xf32, #tpu.memory_space<smem>>
    %482 = vector.broadcast %481 : f32 to vector<2x362xf32>
    %483 = arith.mulf %482, %480 : vector<2x362xf32>
    %484 = arith.addf %467, %483 : vector<2x362xf32>
    %c64 = arith.constant 64 : index
    %485 = memref.load %arg4[%c64] : memref<144xf32, #tpu.memory_space<smem>>
    %486 = vector.broadcast %485 : f32 to vector<2x362xf32>
    %487 = arith.mulf %486, %480 : vector<2x362xf32>
    %488 = arith.addf %471, %487 : vector<2x362xf32>
    %c100 = arith.constant 100 : index
    %489 = memref.load %arg4[%c100] : memref<144xf32, #tpu.memory_space<smem>>
    %490 = vector.broadcast %489 : f32 to vector<2x362xf32>
    %491 = arith.mulf %490, %480 : vector<2x362xf32>
    %492 = arith.addf %475, %491 : vector<2x362xf32>
    %c136 = arith.constant 136 : index
    %493 = memref.load %arg4[%c136] : memref<144xf32, #tpu.memory_space<smem>>
    %494 = vector.broadcast %493 : f32 to vector<2x362xf32>
    %495 = arith.mulf %494, %480 : vector<2x362xf32>
    %496 = arith.addf %479, %495 : vector<2x362xf32>
    %497 = vector.extract_strided_slice %7 {offsets = [0, 2], sizes = [2, 362], strides = [1, 1]} : vector<2x404xf32> to vector<2x362xf32>
    %c29 = arith.constant 29 : index
    %498 = memref.load %arg4[%c29] : memref<144xf32, #tpu.memory_space<smem>>
    %499 = vector.broadcast %498 : f32 to vector<2x362xf32>
    %500 = arith.mulf %499, %497 : vector<2x362xf32>
    %501 = arith.addf %484, %500 : vector<2x362xf32>
    %c65 = arith.constant 65 : index
    %502 = memref.load %arg4[%c65] : memref<144xf32, #tpu.memory_space<smem>>
    %503 = vector.broadcast %502 : f32 to vector<2x362xf32>
    %504 = arith.mulf %503, %497 : vector<2x362xf32>
    %505 = arith.addf %488, %504 : vector<2x362xf32>
    %c101 = arith.constant 101 : index
    %506 = memref.load %arg4[%c101] : memref<144xf32, #tpu.memory_space<smem>>
    %507 = vector.broadcast %506 : f32 to vector<2x362xf32>
    %508 = arith.mulf %507, %497 : vector<2x362xf32>
    %509 = arith.addf %492, %508 : vector<2x362xf32>
    %c137 = arith.constant 137 : index
    %510 = memref.load %arg4[%c137] : memref<144xf32, #tpu.memory_space<smem>>
    %511 = vector.broadcast %510 : f32 to vector<2x362xf32>
    %512 = arith.mulf %511, %497 : vector<2x362xf32>
    %513 = arith.addf %496, %512 : vector<2x362xf32>
    %514 = vector.extract_strided_slice %7 {offsets = [0, 20], sizes = [2, 362], strides = [1, 1]} : vector<2x404xf32> to vector<2x362xf32>
    %c30 = arith.constant 30 : index
    %515 = memref.load %arg4[%c30] : memref<144xf32, #tpu.memory_space<smem>>
    %516 = vector.broadcast %515 : f32 to vector<2x362xf32>
    %517 = arith.mulf %516, %514 : vector<2x362xf32>
    %518 = arith.addf %501, %517 : vector<2x362xf32>
    %c66 = arith.constant 66 : index
    %519 = memref.load %arg4[%c66] : memref<144xf32, #tpu.memory_space<smem>>
    %520 = vector.broadcast %519 : f32 to vector<2x362xf32>
    %521 = arith.mulf %520, %514 : vector<2x362xf32>
    %522 = arith.addf %505, %521 : vector<2x362xf32>
    %c102 = arith.constant 102 : index
    %523 = memref.load %arg4[%c102] : memref<144xf32, #tpu.memory_space<smem>>
    %524 = vector.broadcast %523 : f32 to vector<2x362xf32>
    %525 = arith.mulf %524, %514 : vector<2x362xf32>
    %526 = arith.addf %509, %525 : vector<2x362xf32>
    %c138 = arith.constant 138 : index
    %527 = memref.load %arg4[%c138] : memref<144xf32, #tpu.memory_space<smem>>
    %528 = vector.broadcast %527 : f32 to vector<2x362xf32>
    %529 = arith.mulf %528, %514 : vector<2x362xf32>
    %530 = arith.addf %513, %529 : vector<2x362xf32>
    %531 = vector.extract_strided_slice %7 {offsets = [0, 21], sizes = [2, 362], strides = [1, 1]} : vector<2x404xf32> to vector<2x362xf32>
    %c31 = arith.constant 31 : index
    %532 = memref.load %arg4[%c31] : memref<144xf32, #tpu.memory_space<smem>>
    %533 = vector.broadcast %532 : f32 to vector<2x362xf32>
    %534 = arith.mulf %533, %531 : vector<2x362xf32>
    %535 = arith.addf %518, %534 : vector<2x362xf32>
    %c67 = arith.constant 67 : index
    %536 = memref.load %arg4[%c67] : memref<144xf32, #tpu.memory_space<smem>>
    %537 = vector.broadcast %536 : f32 to vector<2x362xf32>
    %538 = arith.mulf %537, %531 : vector<2x362xf32>
    %539 = arith.addf %522, %538 : vector<2x362xf32>
    %c103 = arith.constant 103 : index
    %540 = memref.load %arg4[%c103] : memref<144xf32, #tpu.memory_space<smem>>
    %541 = vector.broadcast %540 : f32 to vector<2x362xf32>
    %542 = arith.mulf %541, %531 : vector<2x362xf32>
    %543 = arith.addf %526, %542 : vector<2x362xf32>
    %c139 = arith.constant 139 : index
    %544 = memref.load %arg4[%c139] : memref<144xf32, #tpu.memory_space<smem>>
    %545 = vector.broadcast %544 : f32 to vector<2x362xf32>
    %546 = arith.mulf %545, %531 : vector<2x362xf32>
    %547 = arith.addf %530, %546 : vector<2x362xf32>
    %548 = vector.extract_strided_slice %7 {offsets = [0, 22], sizes = [2, 362], strides = [1, 1]} : vector<2x404xf32> to vector<2x362xf32>
    %c32 = arith.constant 32 : index
    %549 = memref.load %arg4[%c32] : memref<144xf32, #tpu.memory_space<smem>>
    %550 = vector.broadcast %549 : f32 to vector<2x362xf32>
    %551 = arith.mulf %550, %548 : vector<2x362xf32>
    %552 = arith.addf %535, %551 : vector<2x362xf32>
    %c68 = arith.constant 68 : index
    %553 = memref.load %arg4[%c68] : memref<144xf32, #tpu.memory_space<smem>>
    %554 = vector.broadcast %553 : f32 to vector<2x362xf32>
    %555 = arith.mulf %554, %548 : vector<2x362xf32>
    %556 = arith.addf %539, %555 : vector<2x362xf32>
    %c104 = arith.constant 104 : index
    %557 = memref.load %arg4[%c104] : memref<144xf32, #tpu.memory_space<smem>>
    %558 = vector.broadcast %557 : f32 to vector<2x362xf32>
    %559 = arith.mulf %558, %548 : vector<2x362xf32>
    %560 = arith.addf %543, %559 : vector<2x362xf32>
    %c140 = arith.constant 140 : index
    %561 = memref.load %arg4[%c140] : memref<144xf32, #tpu.memory_space<smem>>
    %562 = vector.broadcast %561 : f32 to vector<2x362xf32>
    %563 = arith.mulf %562, %548 : vector<2x362xf32>
    %564 = arith.addf %547, %563 : vector<2x362xf32>
    %565 = vector.extract_strided_slice %7 {offsets = [0, 40], sizes = [2, 362], strides = [1, 1]} : vector<2x404xf32> to vector<2x362xf32>
    %c33 = arith.constant 33 : index
    %566 = memref.load %arg4[%c33] : memref<144xf32, #tpu.memory_space<smem>>
    %567 = vector.broadcast %566 : f32 to vector<2x362xf32>
    %568 = arith.mulf %567, %565 : vector<2x362xf32>
    %569 = arith.addf %552, %568 : vector<2x362xf32>
    %c69 = arith.constant 69 : index
    %570 = memref.load %arg4[%c69] : memref<144xf32, #tpu.memory_space<smem>>
    %571 = vector.broadcast %570 : f32 to vector<2x362xf32>
    %572 = arith.mulf %571, %565 : vector<2x362xf32>
    %573 = arith.addf %556, %572 : vector<2x362xf32>
    %c105 = arith.constant 105 : index
    %574 = memref.load %arg4[%c105] : memref<144xf32, #tpu.memory_space<smem>>
    %575 = vector.broadcast %574 : f32 to vector<2x362xf32>
    %576 = arith.mulf %575, %565 : vector<2x362xf32>
    %577 = arith.addf %560, %576 : vector<2x362xf32>
    %c141 = arith.constant 141 : index
    %578 = memref.load %arg4[%c141] : memref<144xf32, #tpu.memory_space<smem>>
    %579 = vector.broadcast %578 : f32 to vector<2x362xf32>
    %580 = arith.mulf %579, %565 : vector<2x362xf32>
    %581 = arith.addf %564, %580 : vector<2x362xf32>
    %582 = vector.extract_strided_slice %7 {offsets = [0, 41], sizes = [2, 362], strides = [1, 1]} : vector<2x404xf32> to vector<2x362xf32>
    %c34 = arith.constant 34 : index
    %583 = memref.load %arg4[%c34] : memref<144xf32, #tpu.memory_space<smem>>
    %584 = vector.broadcast %583 : f32 to vector<2x362xf32>
    %585 = arith.mulf %584, %582 : vector<2x362xf32>
    %586 = arith.addf %569, %585 : vector<2x362xf32>
    %c70 = arith.constant 70 : index
    %587 = memref.load %arg4[%c70] : memref<144xf32, #tpu.memory_space<smem>>
    %588 = vector.broadcast %587 : f32 to vector<2x362xf32>
    %589 = arith.mulf %588, %582 : vector<2x362xf32>
    %590 = arith.addf %573, %589 : vector<2x362xf32>
    %c106 = arith.constant 106 : index
    %591 = memref.load %arg4[%c106] : memref<144xf32, #tpu.memory_space<smem>>
    %592 = vector.broadcast %591 : f32 to vector<2x362xf32>
    %593 = arith.mulf %592, %582 : vector<2x362xf32>
    %594 = arith.addf %577, %593 : vector<2x362xf32>
    %c142 = arith.constant 142 : index
    %595 = memref.load %arg4[%c142] : memref<144xf32, #tpu.memory_space<smem>>
    %596 = vector.broadcast %595 : f32 to vector<2x362xf32>
    %597 = arith.mulf %596, %582 : vector<2x362xf32>
    %598 = arith.addf %581, %597 : vector<2x362xf32>
    %599 = vector.extract_strided_slice %7 {offsets = [0, 42], sizes = [2, 362], strides = [1, 1]} : vector<2x404xf32> to vector<2x362xf32>
    %c35 = arith.constant 35 : index
    %600 = memref.load %arg4[%c35] : memref<144xf32, #tpu.memory_space<smem>>
    %601 = vector.broadcast %600 : f32 to vector<2x362xf32>
    %602 = arith.mulf %601, %599 : vector<2x362xf32>
    %603 = arith.addf %586, %602 : vector<2x362xf32>
    %c71 = arith.constant 71 : index
    %604 = memref.load %arg4[%c71] : memref<144xf32, #tpu.memory_space<smem>>
    %605 = vector.broadcast %604 : f32 to vector<2x362xf32>
    %606 = arith.mulf %605, %599 : vector<2x362xf32>
    %607 = arith.addf %590, %606 : vector<2x362xf32>
    %c107 = arith.constant 107 : index
    %608 = memref.load %arg4[%c107] : memref<144xf32, #tpu.memory_space<smem>>
    %609 = vector.broadcast %608 : f32 to vector<2x362xf32>
    %610 = arith.mulf %609, %599 : vector<2x362xf32>
    %611 = arith.addf %594, %610 : vector<2x362xf32>
    %c143 = arith.constant 143 : index
    %612 = memref.load %arg4[%c143] : memref<144xf32, #tpu.memory_space<smem>>
    %613 = vector.broadcast %612 : f32 to vector<2x362xf32>
    %614 = arith.mulf %613, %599 : vector<2x362xf32>
    %615 = arith.addf %598, %614 : vector<2x362xf32>
    %c0_16 = arith.constant 0 : index
    %616 = memref.load %arg5[%c0_16] : memref<4xf32, #tpu.memory_space<smem>>
    %617 = vector.broadcast %616 : f32 to vector<2x362xf32>
    %618 = arith.addf %603, %617 : vector<2x362xf32>
    %c1_17 = arith.constant 1 : index
    %619 = memref.load %arg5[%c1_17] : memref<4xf32, #tpu.memory_space<smem>>
    %620 = vector.broadcast %619 : f32 to vector<2x362xf32>
    %621 = arith.addf %607, %620 : vector<2x362xf32>
    %c2_18 = arith.constant 2 : index
    %622 = memref.load %arg5[%c2_18] : memref<4xf32, #tpu.memory_space<smem>>
    %623 = vector.broadcast %622 : f32 to vector<2x362xf32>
    %624 = arith.addf %611, %623 : vector<2x362xf32>
    %c3_19 = arith.constant 3 : index
    %625 = memref.load %arg5[%c3_19] : memref<4xf32, #tpu.memory_space<smem>>
    %626 = vector.broadcast %625 : f32 to vector<2x362xf32>
    %627 = arith.addf %615, %626 : vector<2x362xf32>
    %c0_20 = arith.constant 0 : index
    %c0_21 = arith.constant 0 : index
    %628 = vector.load %arg3[%c0_20, %c0_21] : memref<1x362xf32, #tpu.memory_space<vmem>>, vector<1x362xf32>
    %629 = vector.broadcast %628 : vector<1x362xf32> to vector<2x362xf32>
    %630 = arith.mulf %618, %629 : vector<2x362xf32>
    %631 = vector.broadcast %628 : vector<1x362xf32> to vector<2x362xf32>
    %632 = arith.mulf %621, %631 : vector<2x362xf32>
    %633 = vector.broadcast %628 : vector<1x362xf32> to vector<2x362xf32>
    %634 = arith.mulf %624, %633 : vector<2x362xf32>
    %635 = vector.broadcast %628 : vector<1x362xf32> to vector<2x362xf32>
    %636 = arith.mulf %627, %635 : vector<2x362xf32>
    %cst = arith.constant dense<0.000000e+00> : vector<2xf32>
    %637 = vector.multi_reduction <add>, %630, %cst [1] : vector<2x362xf32> to vector<2xf32>
    %638 = vector.shape_cast %637 : vector<2xf32> to vector<2x1xf32>
    %cst_22 = arith.constant 3.906250e-03 : f32
    %639 = vector.broadcast %cst_22 : f32 to vector<2x1xf32>
    %640 = arith.mulf %638, %639 : vector<2x1xf32>
    %cst_23 = arith.constant dense<0.000000e+00> : vector<2xf32>
    %641 = vector.multi_reduction <add>, %632, %cst_23 [1] : vector<2x362xf32> to vector<2xf32>
    %642 = vector.shape_cast %641 : vector<2xf32> to vector<2x1xf32>
    %cst_24 = arith.constant 3.906250e-03 : f32
    %643 = vector.broadcast %cst_24 : f32 to vector<2x1xf32>
    %644 = arith.mulf %642, %643 : vector<2x1xf32>
    %cst_25 = arith.constant dense<0.000000e+00> : vector<2xf32>
    %645 = vector.multi_reduction <add>, %634, %cst_25 [1] : vector<2x362xf32> to vector<2xf32>
    %646 = vector.shape_cast %645 : vector<2xf32> to vector<2x1xf32>
    %cst_26 = arith.constant 3.906250e-03 : f32
    %647 = vector.broadcast %cst_26 : f32 to vector<2x1xf32>
    %648 = arith.mulf %646, %647 : vector<2x1xf32>
    %cst_27 = arith.constant dense<0.000000e+00> : vector<2xf32>
    %649 = vector.multi_reduction <add>, %636, %cst_27 [1] : vector<2x362xf32> to vector<2xf32>
    %650 = vector.shape_cast %649 : vector<2xf32> to vector<2x1xf32>
    %cst_28 = arith.constant 3.906250e-03 : f32
    %651 = vector.broadcast %cst_28 : f32 to vector<2x1xf32>
    %652 = arith.mulf %650, %651 : vector<2x1xf32>
    %653 = vector.extract_strided_slice %630 {offsets = [0, 0], sizes = [2, 320], strides = [1, 1]} : vector<2x362xf32> to vector<2x320xf32>
    %c0_29 = arith.constant 0 : index
    %654 = memref.load %arg6[%c0_29] : memref<144xf32, #tpu.memory_space<smem>>
    %655 = vector.broadcast %654 : f32 to vector<2x320xf32>
    %656 = arith.mulf %655, %653 : vector<2x320xf32>
    %c36_30 = arith.constant 36 : index
    %657 = memref.load %arg6[%c36_30] : memref<144xf32, #tpu.memory_space<smem>>
    %658 = vector.broadcast %657 : f32 to vector<2x320xf32>
    %659 = arith.mulf %658, %653 : vector<2x320xf32>
    %c72_31 = arith.constant 72 : index
    %660 = memref.load %arg6[%c72_31] : memref<144xf32, #tpu.memory_space<smem>>
    %661 = vector.broadcast %660 : f32 to vector<2x320xf32>
    %662 = arith.mulf %661, %653 : vector<2x320xf32>
    %c108_32 = arith.constant 108 : index
    %663 = memref.load %arg6[%c108_32] : memref<144xf32, #tpu.memory_space<smem>>
    %664 = vector.broadcast %663 : f32 to vector<2x320xf32>
    %665 = arith.mulf %664, %653 : vector<2x320xf32>
    %666 = vector.extract_strided_slice %630 {offsets = [0, 1], sizes = [2, 320], strides = [1, 1]} : vector<2x362xf32> to vector<2x320xf32>
    %c1_33 = arith.constant 1 : index
    %667 = memref.load %arg6[%c1_33] : memref<144xf32, #tpu.memory_space<smem>>
    %668 = vector.broadcast %667 : f32 to vector<2x320xf32>
    %669 = arith.mulf %668, %666 : vector<2x320xf32>
    %670 = arith.addf %656, %669 : vector<2x320xf32>
    %c37_34 = arith.constant 37 : index
    %671 = memref.load %arg6[%c37_34] : memref<144xf32, #tpu.memory_space<smem>>
    %672 = vector.broadcast %671 : f32 to vector<2x320xf32>
    %673 = arith.mulf %672, %666 : vector<2x320xf32>
    %674 = arith.addf %659, %673 : vector<2x320xf32>
    %c73_35 = arith.constant 73 : index
    %675 = memref.load %arg6[%c73_35] : memref<144xf32, #tpu.memory_space<smem>>
    %676 = vector.broadcast %675 : f32 to vector<2x320xf32>
    %677 = arith.mulf %676, %666 : vector<2x320xf32>
    %678 = arith.addf %662, %677 : vector<2x320xf32>
    %c109_36 = arith.constant 109 : index
    %679 = memref.load %arg6[%c109_36] : memref<144xf32, #tpu.memory_space<smem>>
    %680 = vector.broadcast %679 : f32 to vector<2x320xf32>
    %681 = arith.mulf %680, %666 : vector<2x320xf32>
    %682 = arith.addf %665, %681 : vector<2x320xf32>
    %683 = vector.extract_strided_slice %630 {offsets = [0, 2], sizes = [2, 320], strides = [1, 1]} : vector<2x362xf32> to vector<2x320xf32>
    %c2_37 = arith.constant 2 : index
    %684 = memref.load %arg6[%c2_37] : memref<144xf32, #tpu.memory_space<smem>>
    %685 = vector.broadcast %684 : f32 to vector<2x320xf32>
    %686 = arith.mulf %685, %683 : vector<2x320xf32>
    %687 = arith.addf %670, %686 : vector<2x320xf32>
    %c38_38 = arith.constant 38 : index
    %688 = memref.load %arg6[%c38_38] : memref<144xf32, #tpu.memory_space<smem>>
    %689 = vector.broadcast %688 : f32 to vector<2x320xf32>
    %690 = arith.mulf %689, %683 : vector<2x320xf32>
    %691 = arith.addf %674, %690 : vector<2x320xf32>
    %c74_39 = arith.constant 74 : index
    %692 = memref.load %arg6[%c74_39] : memref<144xf32, #tpu.memory_space<smem>>
    %693 = vector.broadcast %692 : f32 to vector<2x320xf32>
    %694 = arith.mulf %693, %683 : vector<2x320xf32>
    %695 = arith.addf %678, %694 : vector<2x320xf32>
    %c110_40 = arith.constant 110 : index
    %696 = memref.load %arg6[%c110_40] : memref<144xf32, #tpu.memory_space<smem>>
    %697 = vector.broadcast %696 : f32 to vector<2x320xf32>
    %698 = arith.mulf %697, %683 : vector<2x320xf32>
    %699 = arith.addf %682, %698 : vector<2x320xf32>
    %700 = vector.extract_strided_slice %630 {offsets = [0, 20], sizes = [2, 320], strides = [1, 1]} : vector<2x362xf32> to vector<2x320xf32>
    %c3_41 = arith.constant 3 : index
    %701 = memref.load %arg6[%c3_41] : memref<144xf32, #tpu.memory_space<smem>>
    %702 = vector.broadcast %701 : f32 to vector<2x320xf32>
    %703 = arith.mulf %702, %700 : vector<2x320xf32>
    %704 = arith.addf %687, %703 : vector<2x320xf32>
    %c39_42 = arith.constant 39 : index
    %705 = memref.load %arg6[%c39_42] : memref<144xf32, #tpu.memory_space<smem>>
    %706 = vector.broadcast %705 : f32 to vector<2x320xf32>
    %707 = arith.mulf %706, %700 : vector<2x320xf32>
    %708 = arith.addf %691, %707 : vector<2x320xf32>
    %c75_43 = arith.constant 75 : index
    %709 = memref.load %arg6[%c75_43] : memref<144xf32, #tpu.memory_space<smem>>
    %710 = vector.broadcast %709 : f32 to vector<2x320xf32>
    %711 = arith.mulf %710, %700 : vector<2x320xf32>
    %712 = arith.addf %695, %711 : vector<2x320xf32>
    %c111_44 = arith.constant 111 : index
    %713 = memref.load %arg6[%c111_44] : memref<144xf32, #tpu.memory_space<smem>>
    %714 = vector.broadcast %713 : f32 to vector<2x320xf32>
    %715 = arith.mulf %714, %700 : vector<2x320xf32>
    %716 = arith.addf %699, %715 : vector<2x320xf32>
    %717 = vector.extract_strided_slice %630 {offsets = [0, 21], sizes = [2, 320], strides = [1, 1]} : vector<2x362xf32> to vector<2x320xf32>
    %c4_45 = arith.constant 4 : index
    %718 = memref.load %arg6[%c4_45] : memref<144xf32, #tpu.memory_space<smem>>
    %719 = vector.broadcast %718 : f32 to vector<2x320xf32>
    %720 = arith.mulf %719, %717 : vector<2x320xf32>
    %721 = arith.addf %704, %720 : vector<2x320xf32>
    %c40_46 = arith.constant 40 : index
    %722 = memref.load %arg6[%c40_46] : memref<144xf32, #tpu.memory_space<smem>>
    %723 = vector.broadcast %722 : f32 to vector<2x320xf32>
    %724 = arith.mulf %723, %717 : vector<2x320xf32>
    %725 = arith.addf %708, %724 : vector<2x320xf32>
    %c76_47 = arith.constant 76 : index
    %726 = memref.load %arg6[%c76_47] : memref<144xf32, #tpu.memory_space<smem>>
    %727 = vector.broadcast %726 : f32 to vector<2x320xf32>
    %728 = arith.mulf %727, %717 : vector<2x320xf32>
    %729 = arith.addf %712, %728 : vector<2x320xf32>
    %c112_48 = arith.constant 112 : index
    %730 = memref.load %arg6[%c112_48] : memref<144xf32, #tpu.memory_space<smem>>
    %731 = vector.broadcast %730 : f32 to vector<2x320xf32>
    %732 = arith.mulf %731, %717 : vector<2x320xf32>
    %733 = arith.addf %716, %732 : vector<2x320xf32>
    %734 = vector.extract_strided_slice %630 {offsets = [0, 22], sizes = [2, 320], strides = [1, 1]} : vector<2x362xf32> to vector<2x320xf32>
    %c5_49 = arith.constant 5 : index
    %735 = memref.load %arg6[%c5_49] : memref<144xf32, #tpu.memory_space<smem>>
    %736 = vector.broadcast %735 : f32 to vector<2x320xf32>
    %737 = arith.mulf %736, %734 : vector<2x320xf32>
    %738 = arith.addf %721, %737 : vector<2x320xf32>
    %c41_50 = arith.constant 41 : index
    %739 = memref.load %arg6[%c41_50] : memref<144xf32, #tpu.memory_space<smem>>
    %740 = vector.broadcast %739 : f32 to vector<2x320xf32>
    %741 = arith.mulf %740, %734 : vector<2x320xf32>
    %742 = arith.addf %725, %741 : vector<2x320xf32>
    %c77_51 = arith.constant 77 : index
    %743 = memref.load %arg6[%c77_51] : memref<144xf32, #tpu.memory_space<smem>>
    %744 = vector.broadcast %743 : f32 to vector<2x320xf32>
    %745 = arith.mulf %744, %734 : vector<2x320xf32>
    %746 = arith.addf %729, %745 : vector<2x320xf32>
    %c113_52 = arith.constant 113 : index
    %747 = memref.load %arg6[%c113_52] : memref<144xf32, #tpu.memory_space<smem>>
    %748 = vector.broadcast %747 : f32 to vector<2x320xf32>
    %749 = arith.mulf %748, %734 : vector<2x320xf32>
    %750 = arith.addf %733, %749 : vector<2x320xf32>
    %751 = vector.extract_strided_slice %630 {offsets = [0, 40], sizes = [2, 320], strides = [1, 1]} : vector<2x362xf32> to vector<2x320xf32>
    %c6_53 = arith.constant 6 : index
    %752 = memref.load %arg6[%c6_53] : memref<144xf32, #tpu.memory_space<smem>>
    %753 = vector.broadcast %752 : f32 to vector<2x320xf32>
    %754 = arith.mulf %753, %751 : vector<2x320xf32>
    %755 = arith.addf %738, %754 : vector<2x320xf32>
    %c42_54 = arith.constant 42 : index
    %756 = memref.load %arg6[%c42_54] : memref<144xf32, #tpu.memory_space<smem>>
    %757 = vector.broadcast %756 : f32 to vector<2x320xf32>
    %758 = arith.mulf %757, %751 : vector<2x320xf32>
    %759 = arith.addf %742, %758 : vector<2x320xf32>
    %c78_55 = arith.constant 78 : index
    %760 = memref.load %arg6[%c78_55] : memref<144xf32, #tpu.memory_space<smem>>
    %761 = vector.broadcast %760 : f32 to vector<2x320xf32>
    %762 = arith.mulf %761, %751 : vector<2x320xf32>
    %763 = arith.addf %746, %762 : vector<2x320xf32>
    %c114_56 = arith.constant 114 : index
    %764 = memref.load %arg6[%c114_56] : memref<144xf32, #tpu.memory_space<smem>>
    %765 = vector.broadcast %764 : f32 to vector<2x320xf32>
    %766 = arith.mulf %765, %751 : vector<2x320xf32>
    %767 = arith.addf %750, %766 : vector<2x320xf32>
    %768 = vector.extract_strided_slice %630 {offsets = [0, 41], sizes = [2, 320], strides = [1, 1]} : vector<2x362xf32> to vector<2x320xf32>
    %c7_57 = arith.constant 7 : index
    %769 = memref.load %arg6[%c7_57] : memref<144xf32, #tpu.memory_space<smem>>
    %770 = vector.broadcast %769 : f32 to vector<2x320xf32>
    %771 = arith.mulf %770, %768 : vector<2x320xf32>
    %772 = arith.addf %755, %771 : vector<2x320xf32>
    %c43_58 = arith.constant 43 : index
    %773 = memref.load %arg6[%c43_58] : memref<144xf32, #tpu.memory_space<smem>>
    %774 = vector.broadcast %773 : f32 to vector<2x320xf32>
    %775 = arith.mulf %774, %768 : vector<2x320xf32>
    %776 = arith.addf %759, %775 : vector<2x320xf32>
    %c79_59 = arith.constant 79 : index
    %777 = memref.load %arg6[%c79_59] : memref<144xf32, #tpu.memory_space<smem>>
    %778 = vector.broadcast %777 : f32 to vector<2x320xf32>
    %779 = arith.mulf %778, %768 : vector<2x320xf32>
    %780 = arith.addf %763, %779 : vector<2x320xf32>
    %c115_60 = arith.constant 115 : index
    %781 = memref.load %arg6[%c115_60] : memref<144xf32, #tpu.memory_space<smem>>
    %782 = vector.broadcast %781 : f32 to vector<2x320xf32>
    %783 = arith.mulf %782, %768 : vector<2x320xf32>
    %784 = arith.addf %767, %783 : vector<2x320xf32>
    %785 = vector.extract_strided_slice %630 {offsets = [0, 42], sizes = [2, 320], strides = [1, 1]} : vector<2x362xf32> to vector<2x320xf32>
    %c8_61 = arith.constant 8 : index
    %786 = memref.load %arg6[%c8_61] : memref<144xf32, #tpu.memory_space<smem>>
    %787 = vector.broadcast %786 : f32 to vector<2x320xf32>
    %788 = arith.mulf %787, %785 : vector<2x320xf32>
    %789 = arith.addf %772, %788 : vector<2x320xf32>
    %c44_62 = arith.constant 44 : index
    %790 = memref.load %arg6[%c44_62] : memref<144xf32, #tpu.memory_space<smem>>
    %791 = vector.broadcast %790 : f32 to vector<2x320xf32>
    %792 = arith.mulf %791, %785 : vector<2x320xf32>
    %793 = arith.addf %776, %792 : vector<2x320xf32>
    %c80_63 = arith.constant 80 : index
    %794 = memref.load %arg6[%c80_63] : memref<144xf32, #tpu.memory_space<smem>>
    %795 = vector.broadcast %794 : f32 to vector<2x320xf32>
    %796 = arith.mulf %795, %785 : vector<2x320xf32>
    %797 = arith.addf %780, %796 : vector<2x320xf32>
    %c116_64 = arith.constant 116 : index
    %798 = memref.load %arg6[%c116_64] : memref<144xf32, #tpu.memory_space<smem>>
    %799 = vector.broadcast %798 : f32 to vector<2x320xf32>
    %800 = arith.mulf %799, %785 : vector<2x320xf32>
    %801 = arith.addf %784, %800 : vector<2x320xf32>
    %802 = vector.extract_strided_slice %632 {offsets = [0, 0], sizes = [2, 320], strides = [1, 1]} : vector<2x362xf32> to vector<2x320xf32>
    %c9_65 = arith.constant 9 : index
    %803 = memref.load %arg6[%c9_65] : memref<144xf32, #tpu.memory_space<smem>>
    %804 = vector.broadcast %803 : f32 to vector<2x320xf32>
    %805 = arith.mulf %804, %802 : vector<2x320xf32>
    %806 = arith.addf %789, %805 : vector<2x320xf32>
    %c45_66 = arith.constant 45 : index
    %807 = memref.load %arg6[%c45_66] : memref<144xf32, #tpu.memory_space<smem>>
    %808 = vector.broadcast %807 : f32 to vector<2x320xf32>
    %809 = arith.mulf %808, %802 : vector<2x320xf32>
    %810 = arith.addf %793, %809 : vector<2x320xf32>
    %c81_67 = arith.constant 81 : index
    %811 = memref.load %arg6[%c81_67] : memref<144xf32, #tpu.memory_space<smem>>
    %812 = vector.broadcast %811 : f32 to vector<2x320xf32>
    %813 = arith.mulf %812, %802 : vector<2x320xf32>
    %814 = arith.addf %797, %813 : vector<2x320xf32>
    %c117_68 = arith.constant 117 : index
    %815 = memref.load %arg6[%c117_68] : memref<144xf32, #tpu.memory_space<smem>>
    %816 = vector.broadcast %815 : f32 to vector<2x320xf32>
    %817 = arith.mulf %816, %802 : vector<2x320xf32>
    %818 = arith.addf %801, %817 : vector<2x320xf32>
    %819 = vector.extract_strided_slice %632 {offsets = [0, 1], sizes = [2, 320], strides = [1, 1]} : vector<2x362xf32> to vector<2x320xf32>
    %c10_69 = arith.constant 10 : index
    %820 = memref.load %arg6[%c10_69] : memref<144xf32, #tpu.memory_space<smem>>
    %821 = vector.broadcast %820 : f32 to vector<2x320xf32>
    %822 = arith.mulf %821, %819 : vector<2x320xf32>
    %823 = arith.addf %806, %822 : vector<2x320xf32>
    %c46_70 = arith.constant 46 : index
    %824 = memref.load %arg6[%c46_70] : memref<144xf32, #tpu.memory_space<smem>>
    %825 = vector.broadcast %824 : f32 to vector<2x320xf32>
    %826 = arith.mulf %825, %819 : vector<2x320xf32>
    %827 = arith.addf %810, %826 : vector<2x320xf32>
    %c82_71 = arith.constant 82 : index
    %828 = memref.load %arg6[%c82_71] : memref<144xf32, #tpu.memory_space<smem>>
    %829 = vector.broadcast %828 : f32 to vector<2x320xf32>
    %830 = arith.mulf %829, %819 : vector<2x320xf32>
    %831 = arith.addf %814, %830 : vector<2x320xf32>
    %c118_72 = arith.constant 118 : index
    %832 = memref.load %arg6[%c118_72] : memref<144xf32, #tpu.memory_space<smem>>
    %833 = vector.broadcast %832 : f32 to vector<2x320xf32>
    %834 = arith.mulf %833, %819 : vector<2x320xf32>
    %835 = arith.addf %818, %834 : vector<2x320xf32>
    %836 = vector.extract_strided_slice %632 {offsets = [0, 2], sizes = [2, 320], strides = [1, 1]} : vector<2x362xf32> to vector<2x320xf32>
    %c11_73 = arith.constant 11 : index
    %837 = memref.load %arg6[%c11_73] : memref<144xf32, #tpu.memory_space<smem>>
    %838 = vector.broadcast %837 : f32 to vector<2x320xf32>
    %839 = arith.mulf %838, %836 : vector<2x320xf32>
    %840 = arith.addf %823, %839 : vector<2x320xf32>
    %c47_74 = arith.constant 47 : index
    %841 = memref.load %arg6[%c47_74] : memref<144xf32, #tpu.memory_space<smem>>
    %842 = vector.broadcast %841 : f32 to vector<2x320xf32>
    %843 = arith.mulf %842, %836 : vector<2x320xf32>
    %844 = arith.addf %827, %843 : vector<2x320xf32>
    %c83_75 = arith.constant 83 : index
    %845 = memref.load %arg6[%c83_75] : memref<144xf32, #tpu.memory_space<smem>>
    %846 = vector.broadcast %845 : f32 to vector<2x320xf32>
    %847 = arith.mulf %846, %836 : vector<2x320xf32>
    %848 = arith.addf %831, %847 : vector<2x320xf32>
    %c119_76 = arith.constant 119 : index
    %849 = memref.load %arg6[%c119_76] : memref<144xf32, #tpu.memory_space<smem>>
    %850 = vector.broadcast %849 : f32 to vector<2x320xf32>
    %851 = arith.mulf %850, %836 : vector<2x320xf32>
    %852 = arith.addf %835, %851 : vector<2x320xf32>
    %853 = vector.extract_strided_slice %632 {offsets = [0, 20], sizes = [2, 320], strides = [1, 1]} : vector<2x362xf32> to vector<2x320xf32>
    %c12_77 = arith.constant 12 : index
    %854 = memref.load %arg6[%c12_77] : memref<144xf32, #tpu.memory_space<smem>>
    %855 = vector.broadcast %854 : f32 to vector<2x320xf32>
    %856 = arith.mulf %855, %853 : vector<2x320xf32>
    %857 = arith.addf %840, %856 : vector<2x320xf32>
    %c48_78 = arith.constant 48 : index
    %858 = memref.load %arg6[%c48_78] : memref<144xf32, #tpu.memory_space<smem>>
    %859 = vector.broadcast %858 : f32 to vector<2x320xf32>
    %860 = arith.mulf %859, %853 : vector<2x320xf32>
    %861 = arith.addf %844, %860 : vector<2x320xf32>
    %c84_79 = arith.constant 84 : index
    %862 = memref.load %arg6[%c84_79] : memref<144xf32, #tpu.memory_space<smem>>
    %863 = vector.broadcast %862 : f32 to vector<2x320xf32>
    %864 = arith.mulf %863, %853 : vector<2x320xf32>
    %865 = arith.addf %848, %864 : vector<2x320xf32>
    %c120_80 = arith.constant 120 : index
    %866 = memref.load %arg6[%c120_80] : memref<144xf32, #tpu.memory_space<smem>>
    %867 = vector.broadcast %866 : f32 to vector<2x320xf32>
    %868 = arith.mulf %867, %853 : vector<2x320xf32>
    %869 = arith.addf %852, %868 : vector<2x320xf32>
    %870 = vector.extract_strided_slice %632 {offsets = [0, 21], sizes = [2, 320], strides = [1, 1]} : vector<2x362xf32> to vector<2x320xf32>
    %c13_81 = arith.constant 13 : index
    %871 = memref.load %arg6[%c13_81] : memref<144xf32, #tpu.memory_space<smem>>
    %872 = vector.broadcast %871 : f32 to vector<2x320xf32>
    %873 = arith.mulf %872, %870 : vector<2x320xf32>
    %874 = arith.addf %857, %873 : vector<2x320xf32>
    %c49_82 = arith.constant 49 : index
    %875 = memref.load %arg6[%c49_82] : memref<144xf32, #tpu.memory_space<smem>>
    %876 = vector.broadcast %875 : f32 to vector<2x320xf32>
    %877 = arith.mulf %876, %870 : vector<2x320xf32>
    %878 = arith.addf %861, %877 : vector<2x320xf32>
    %c85_83 = arith.constant 85 : index
    %879 = memref.load %arg6[%c85_83] : memref<144xf32, #tpu.memory_space<smem>>
    %880 = vector.broadcast %879 : f32 to vector<2x320xf32>
    %881 = arith.mulf %880, %870 : vector<2x320xf32>
    %882 = arith.addf %865, %881 : vector<2x320xf32>
    %c121_84 = arith.constant 121 : index
    %883 = memref.load %arg6[%c121_84] : memref<144xf32, #tpu.memory_space<smem>>
    %884 = vector.broadcast %883 : f32 to vector<2x320xf32>
    %885 = arith.mulf %884, %870 : vector<2x320xf32>
    %886 = arith.addf %869, %885 : vector<2x320xf32>
    %887 = vector.extract_strided_slice %632 {offsets = [0, 22], sizes = [2, 320], strides = [1, 1]} : vector<2x362xf32> to vector<2x320xf32>
    %c14_85 = arith.constant 14 : index
    %888 = memref.load %arg6[%c14_85] : memref<144xf32, #tpu.memory_space<smem>>
    %889 = vector.broadcast %888 : f32 to vector<2x320xf32>
    %890 = arith.mulf %889, %887 : vector<2x320xf32>
    %891 = arith.addf %874, %890 : vector<2x320xf32>
    %c50_86 = arith.constant 50 : index
    %892 = memref.load %arg6[%c50_86] : memref<144xf32, #tpu.memory_space<smem>>
    %893 = vector.broadcast %892 : f32 to vector<2x320xf32>
    %894 = arith.mulf %893, %887 : vector<2x320xf32>
    %895 = arith.addf %878, %894 : vector<2x320xf32>
    %c86_87 = arith.constant 86 : index
    %896 = memref.load %arg6[%c86_87] : memref<144xf32, #tpu.memory_space<smem>>
    %897 = vector.broadcast %896 : f32 to vector<2x320xf32>
    %898 = arith.mulf %897, %887 : vector<2x320xf32>
    %899 = arith.addf %882, %898 : vector<2x320xf32>
    %c122_88 = arith.constant 122 : index
    %900 = memref.load %arg6[%c122_88] : memref<144xf32, #tpu.memory_space<smem>>
    %901 = vector.broadcast %900 : f32 to vector<2x320xf32>
    %902 = arith.mulf %901, %887 : vector<2x320xf32>
    %903 = arith.addf %886, %902 : vector<2x320xf32>
    %904 = vector.extract_strided_slice %632 {offsets = [0, 40], sizes = [2, 320], strides = [1, 1]} : vector<2x362xf32> to vector<2x320xf32>
    %c15_89 = arith.constant 15 : index
    %905 = memref.load %arg6[%c15_89] : memref<144xf32, #tpu.memory_space<smem>>
    %906 = vector.broadcast %905 : f32 to vector<2x320xf32>
    %907 = arith.mulf %906, %904 : vector<2x320xf32>
    %908 = arith.addf %891, %907 : vector<2x320xf32>
    %c51_90 = arith.constant 51 : index
    %909 = memref.load %arg6[%c51_90] : memref<144xf32, #tpu.memory_space<smem>>
    %910 = vector.broadcast %909 : f32 to vector<2x320xf32>
    %911 = arith.mulf %910, %904 : vector<2x320xf32>
    %912 = arith.addf %895, %911 : vector<2x320xf32>
    %c87_91 = arith.constant 87 : index
    %913 = memref.load %arg6[%c87_91] : memref<144xf32, #tpu.memory_space<smem>>
    %914 = vector.broadcast %913 : f32 to vector<2x320xf32>
    %915 = arith.mulf %914, %904 : vector<2x320xf32>
    %916 = arith.addf %899, %915 : vector<2x320xf32>
    %c123_92 = arith.constant 123 : index
    %917 = memref.load %arg6[%c123_92] : memref<144xf32, #tpu.memory_space<smem>>
    %918 = vector.broadcast %917 : f32 to vector<2x320xf32>
    %919 = arith.mulf %918, %904 : vector<2x320xf32>
    %920 = arith.addf %903, %919 : vector<2x320xf32>
    %921 = vector.extract_strided_slice %632 {offsets = [0, 41], sizes = [2, 320], strides = [1, 1]} : vector<2x362xf32> to vector<2x320xf32>
    %c16_93 = arith.constant 16 : index
    %922 = memref.load %arg6[%c16_93] : memref<144xf32, #tpu.memory_space<smem>>
    %923 = vector.broadcast %922 : f32 to vector<2x320xf32>
    %924 = arith.mulf %923, %921 : vector<2x320xf32>
    %925 = arith.addf %908, %924 : vector<2x320xf32>
    %c52_94 = arith.constant 52 : index
    %926 = memref.load %arg6[%c52_94] : memref<144xf32, #tpu.memory_space<smem>>
    %927 = vector.broadcast %926 : f32 to vector<2x320xf32>
    %928 = arith.mulf %927, %921 : vector<2x320xf32>
    %929 = arith.addf %912, %928 : vector<2x320xf32>
    %c88_95 = arith.constant 88 : index
    %930 = memref.load %arg6[%c88_95] : memref<144xf32, #tpu.memory_space<smem>>
    %931 = vector.broadcast %930 : f32 to vector<2x320xf32>
    %932 = arith.mulf %931, %921 : vector<2x320xf32>
    %933 = arith.addf %916, %932 : vector<2x320xf32>
    %c124_96 = arith.constant 124 : index
    %934 = memref.load %arg6[%c124_96] : memref<144xf32, #tpu.memory_space<smem>>
    %935 = vector.broadcast %934 : f32 to vector<2x320xf32>
    %936 = arith.mulf %935, %921 : vector<2x320xf32>
    %937 = arith.addf %920, %936 : vector<2x320xf32>
    %938 = vector.extract_strided_slice %632 {offsets = [0, 42], sizes = [2, 320], strides = [1, 1]} : vector<2x362xf32> to vector<2x320xf32>
    %c17_97 = arith.constant 17 : index
    %939 = memref.load %arg6[%c17_97] : memref<144xf32, #tpu.memory_space<smem>>
    %940 = vector.broadcast %939 : f32 to vector<2x320xf32>
    %941 = arith.mulf %940, %938 : vector<2x320xf32>
    %942 = arith.addf %925, %941 : vector<2x320xf32>
    %c53_98 = arith.constant 53 : index
    %943 = memref.load %arg6[%c53_98] : memref<144xf32, #tpu.memory_space<smem>>
    %944 = vector.broadcast %943 : f32 to vector<2x320xf32>
    %945 = arith.mulf %944, %938 : vector<2x320xf32>
    %946 = arith.addf %929, %945 : vector<2x320xf32>
    %c89_99 = arith.constant 89 : index
    %947 = memref.load %arg6[%c89_99] : memref<144xf32, #tpu.memory_space<smem>>
    %948 = vector.broadcast %947 : f32 to vector<2x320xf32>
    %949 = arith.mulf %948, %938 : vector<2x320xf32>
    %950 = arith.addf %933, %949 : vector<2x320xf32>
    %c125_100 = arith.constant 125 : index
    %951 = memref.load %arg6[%c125_100] : memref<144xf32, #tpu.memory_space<smem>>
    %952 = vector.broadcast %951 : f32 to vector<2x320xf32>
    %953 = arith.mulf %952, %938 : vector<2x320xf32>
    %954 = arith.addf %937, %953 : vector<2x320xf32>
    %955 = vector.extract_strided_slice %634 {offsets = [0, 0], sizes = [2, 320], strides = [1, 1]} : vector<2x362xf32> to vector<2x320xf32>
    %c18_101 = arith.constant 18 : index
    %956 = memref.load %arg6[%c18_101] : memref<144xf32, #tpu.memory_space<smem>>
    %957 = vector.broadcast %956 : f32 to vector<2x320xf32>
    %958 = arith.mulf %957, %955 : vector<2x320xf32>
    %959 = arith.addf %942, %958 : vector<2x320xf32>
    %c54_102 = arith.constant 54 : index
    %960 = memref.load %arg6[%c54_102] : memref<144xf32, #tpu.memory_space<smem>>
    %961 = vector.broadcast %960 : f32 to vector<2x320xf32>
    %962 = arith.mulf %961, %955 : vector<2x320xf32>
    %963 = arith.addf %946, %962 : vector<2x320xf32>
    %c90_103 = arith.constant 90 : index
    %964 = memref.load %arg6[%c90_103] : memref<144xf32, #tpu.memory_space<smem>>
    %965 = vector.broadcast %964 : f32 to vector<2x320xf32>
    %966 = arith.mulf %965, %955 : vector<2x320xf32>
    %967 = arith.addf %950, %966 : vector<2x320xf32>
    %c126_104 = arith.constant 126 : index
    %968 = memref.load %arg6[%c126_104] : memref<144xf32, #tpu.memory_space<smem>>
    %969 = vector.broadcast %968 : f32 to vector<2x320xf32>
    %970 = arith.mulf %969, %955 : vector<2x320xf32>
    %971 = arith.addf %954, %970 : vector<2x320xf32>
    %972 = vector.extract_strided_slice %634 {offsets = [0, 1], sizes = [2, 320], strides = [1, 1]} : vector<2x362xf32> to vector<2x320xf32>
    %c19_105 = arith.constant 19 : index
    %973 = memref.load %arg6[%c19_105] : memref<144xf32, #tpu.memory_space<smem>>
    %974 = vector.broadcast %973 : f32 to vector<2x320xf32>
    %975 = arith.mulf %974, %972 : vector<2x320xf32>
    %976 = arith.addf %959, %975 : vector<2x320xf32>
    %c55_106 = arith.constant 55 : index
    %977 = memref.load %arg6[%c55_106] : memref<144xf32, #tpu.memory_space<smem>>
    %978 = vector.broadcast %977 : f32 to vector<2x320xf32>
    %979 = arith.mulf %978, %972 : vector<2x320xf32>
    %980 = arith.addf %963, %979 : vector<2x320xf32>
    %c91_107 = arith.constant 91 : index
    %981 = memref.load %arg6[%c91_107] : memref<144xf32, #tpu.memory_space<smem>>
    %982 = vector.broadcast %981 : f32 to vector<2x320xf32>
    %983 = arith.mulf %982, %972 : vector<2x320xf32>
    %984 = arith.addf %967, %983 : vector<2x320xf32>
    %c127_108 = arith.constant 127 : index
    %985 = memref.load %arg6[%c127_108] : memref<144xf32, #tpu.memory_space<smem>>
    %986 = vector.broadcast %985 : f32 to vector<2x320xf32>
    %987 = arith.mulf %986, %972 : vector<2x320xf32>
    %988 = arith.addf %971, %987 : vector<2x320xf32>
    %989 = vector.extract_strided_slice %634 {offsets = [0, 2], sizes = [2, 320], strides = [1, 1]} : vector<2x362xf32> to vector<2x320xf32>
    %c20_109 = arith.constant 20 : index
    %990 = memref.load %arg6[%c20_109] : memref<144xf32, #tpu.memory_space<smem>>
    %991 = vector.broadcast %990 : f32 to vector<2x320xf32>
    %992 = arith.mulf %991, %989 : vector<2x320xf32>
    %993 = arith.addf %976, %992 : vector<2x320xf32>
    %c56_110 = arith.constant 56 : index
    %994 = memref.load %arg6[%c56_110] : memref<144xf32, #tpu.memory_space<smem>>
    %995 = vector.broadcast %994 : f32 to vector<2x320xf32>
    %996 = arith.mulf %995, %989 : vector<2x320xf32>
    %997 = arith.addf %980, %996 : vector<2x320xf32>
    %c92_111 = arith.constant 92 : index
    %998 = memref.load %arg6[%c92_111] : memref<144xf32, #tpu.memory_space<smem>>
    %999 = vector.broadcast %998 : f32 to vector<2x320xf32>
    %1000 = arith.mulf %999, %989 : vector<2x320xf32>
    %1001 = arith.addf %984, %1000 : vector<2x320xf32>
    %c128_112 = arith.constant 128 : index
    %1002 = memref.load %arg6[%c128_112] : memref<144xf32, #tpu.memory_space<smem>>
    %1003 = vector.broadcast %1002 : f32 to vector<2x320xf32>
    %1004 = arith.mulf %1003, %989 : vector<2x320xf32>
    %1005 = arith.addf %988, %1004 : vector<2x320xf32>
    %1006 = vector.extract_strided_slice %634 {offsets = [0, 20], sizes = [2, 320], strides = [1, 1]} : vector<2x362xf32> to vector<2x320xf32>
    %c21_113 = arith.constant 21 : index
    %1007 = memref.load %arg6[%c21_113] : memref<144xf32, #tpu.memory_space<smem>>
    %1008 = vector.broadcast %1007 : f32 to vector<2x320xf32>
    %1009 = arith.mulf %1008, %1006 : vector<2x320xf32>
    %1010 = arith.addf %993, %1009 : vector<2x320xf32>
    %c57_114 = arith.constant 57 : index
    %1011 = memref.load %arg6[%c57_114] : memref<144xf32, #tpu.memory_space<smem>>
    %1012 = vector.broadcast %1011 : f32 to vector<2x320xf32>
    %1013 = arith.mulf %1012, %1006 : vector<2x320xf32>
    %1014 = arith.addf %997, %1013 : vector<2x320xf32>
    %c93_115 = arith.constant 93 : index
    %1015 = memref.load %arg6[%c93_115] : memref<144xf32, #tpu.memory_space<smem>>
    %1016 = vector.broadcast %1015 : f32 to vector<2x320xf32>
    %1017 = arith.mulf %1016, %1006 : vector<2x320xf32>
    %1018 = arith.addf %1001, %1017 : vector<2x320xf32>
    %c129_116 = arith.constant 129 : index
    %1019 = memref.load %arg6[%c129_116] : memref<144xf32, #tpu.memory_space<smem>>
    %1020 = vector.broadcast %1019 : f32 to vector<2x320xf32>
    %1021 = arith.mulf %1020, %1006 : vector<2x320xf32>
    %1022 = arith.addf %1005, %1021 : vector<2x320xf32>
    %1023 = vector.extract_strided_slice %634 {offsets = [0, 21], sizes = [2, 320], strides = [1, 1]} : vector<2x362xf32> to vector<2x320xf32>
    %c22_117 = arith.constant 22 : index
    %1024 = memref.load %arg6[%c22_117] : memref<144xf32, #tpu.memory_space<smem>>
    %1025 = vector.broadcast %1024 : f32 to vector<2x320xf32>
    %1026 = arith.mulf %1025, %1023 : vector<2x320xf32>
    %1027 = arith.addf %1010, %1026 : vector<2x320xf32>
    %c58_118 = arith.constant 58 : index
    %1028 = memref.load %arg6[%c58_118] : memref<144xf32, #tpu.memory_space<smem>>
    %1029 = vector.broadcast %1028 : f32 to vector<2x320xf32>
    %1030 = arith.mulf %1029, %1023 : vector<2x320xf32>
    %1031 = arith.addf %1014, %1030 : vector<2x320xf32>
    %c94_119 = arith.constant 94 : index
    %1032 = memref.load %arg6[%c94_119] : memref<144xf32, #tpu.memory_space<smem>>
    %1033 = vector.broadcast %1032 : f32 to vector<2x320xf32>
    %1034 = arith.mulf %1033, %1023 : vector<2x320xf32>
    %1035 = arith.addf %1018, %1034 : vector<2x320xf32>
    %c130_120 = arith.constant 130 : index
    %1036 = memref.load %arg6[%c130_120] : memref<144xf32, #tpu.memory_space<smem>>
    %1037 = vector.broadcast %1036 : f32 to vector<2x320xf32>
    %1038 = arith.mulf %1037, %1023 : vector<2x320xf32>
    %1039 = arith.addf %1022, %1038 : vector<2x320xf32>
    %1040 = vector.extract_strided_slice %634 {offsets = [0, 22], sizes = [2, 320], strides = [1, 1]} : vector<2x362xf32> to vector<2x320xf32>
    %c23_121 = arith.constant 23 : index
    %1041 = memref.load %arg6[%c23_121] : memref<144xf32, #tpu.memory_space<smem>>
    %1042 = vector.broadcast %1041 : f32 to vector<2x320xf32>
    %1043 = arith.mulf %1042, %1040 : vector<2x320xf32>
    %1044 = arith.addf %1027, %1043 : vector<2x320xf32>
    %c59_122 = arith.constant 59 : index
    %1045 = memref.load %arg6[%c59_122] : memref<144xf32, #tpu.memory_space<smem>>
    %1046 = vector.broadcast %1045 : f32 to vector<2x320xf32>
    %1047 = arith.mulf %1046, %1040 : vector<2x320xf32>
    %1048 = arith.addf %1031, %1047 : vector<2x320xf32>
    %c95_123 = arith.constant 95 : index
    %1049 = memref.load %arg6[%c95_123] : memref<144xf32, #tpu.memory_space<smem>>
    %1050 = vector.broadcast %1049 : f32 to vector<2x320xf32>
    %1051 = arith.mulf %1050, %1040 : vector<2x320xf32>
    %1052 = arith.addf %1035, %1051 : vector<2x320xf32>
    %c131_124 = arith.constant 131 : index
    %1053 = memref.load %arg6[%c131_124] : memref<144xf32, #tpu.memory_space<smem>>
    %1054 = vector.broadcast %1053 : f32 to vector<2x320xf32>
    %1055 = arith.mulf %1054, %1040 : vector<2x320xf32>
    %1056 = arith.addf %1039, %1055 : vector<2x320xf32>
    %1057 = vector.extract_strided_slice %634 {offsets = [0, 40], sizes = [2, 320], strides = [1, 1]} : vector<2x362xf32> to vector<2x320xf32>
    %c24_125 = arith.constant 24 : index
    %1058 = memref.load %arg6[%c24_125] : memref<144xf32, #tpu.memory_space<smem>>
    %1059 = vector.broadcast %1058 : f32 to vector<2x320xf32>
    %1060 = arith.mulf %1059, %1057 : vector<2x320xf32>
    %1061 = arith.addf %1044, %1060 : vector<2x320xf32>
    %c60_126 = arith.constant 60 : index
    %1062 = memref.load %arg6[%c60_126] : memref<144xf32, #tpu.memory_space<smem>>
    %1063 = vector.broadcast %1062 : f32 to vector<2x320xf32>
    %1064 = arith.mulf %1063, %1057 : vector<2x320xf32>
    %1065 = arith.addf %1048, %1064 : vector<2x320xf32>
    %c96_127 = arith.constant 96 : index
    %1066 = memref.load %arg6[%c96_127] : memref<144xf32, #tpu.memory_space<smem>>
    %1067 = vector.broadcast %1066 : f32 to vector<2x320xf32>
    %1068 = arith.mulf %1067, %1057 : vector<2x320xf32>
    %1069 = arith.addf %1052, %1068 : vector<2x320xf32>
    %c132_128 = arith.constant 132 : index
    %1070 = memref.load %arg6[%c132_128] : memref<144xf32, #tpu.memory_space<smem>>
    %1071 = vector.broadcast %1070 : f32 to vector<2x320xf32>
    %1072 = arith.mulf %1071, %1057 : vector<2x320xf32>
    %1073 = arith.addf %1056, %1072 : vector<2x320xf32>
    %1074 = vector.extract_strided_slice %634 {offsets = [0, 41], sizes = [2, 320], strides = [1, 1]} : vector<2x362xf32> to vector<2x320xf32>
    %c25_129 = arith.constant 25 : index
    %1075 = memref.load %arg6[%c25_129] : memref<144xf32, #tpu.memory_space<smem>>
    %1076 = vector.broadcast %1075 : f32 to vector<2x320xf32>
    %1077 = arith.mulf %1076, %1074 : vector<2x320xf32>
    %1078 = arith.addf %1061, %1077 : vector<2x320xf32>
    %c61_130 = arith.constant 61 : index
    %1079 = memref.load %arg6[%c61_130] : memref<144xf32, #tpu.memory_space<smem>>
    %1080 = vector.broadcast %1079 : f32 to vector<2x320xf32>
    %1081 = arith.mulf %1080, %1074 : vector<2x320xf32>
    %1082 = arith.addf %1065, %1081 : vector<2x320xf32>
    %c97_131 = arith.constant 97 : index
    %1083 = memref.load %arg6[%c97_131] : memref<144xf32, #tpu.memory_space<smem>>
    %1084 = vector.broadcast %1083 : f32 to vector<2x320xf32>
    %1085 = arith.mulf %1084, %1074 : vector<2x320xf32>
    %1086 = arith.addf %1069, %1085 : vector<2x320xf32>
    %c133_132 = arith.constant 133 : index
    %1087 = memref.load %arg6[%c133_132] : memref<144xf32, #tpu.memory_space<smem>>
    %1088 = vector.broadcast %1087 : f32 to vector<2x320xf32>
    %1089 = arith.mulf %1088, %1074 : vector<2x320xf32>
    %1090 = arith.addf %1073, %1089 : vector<2x320xf32>
    %1091 = vector.extract_strided_slice %634 {offsets = [0, 42], sizes = [2, 320], strides = [1, 1]} : vector<2x362xf32> to vector<2x320xf32>
    %c26_133 = arith.constant 26 : index
    %1092 = memref.load %arg6[%c26_133] : memref<144xf32, #tpu.memory_space<smem>>
    %1093 = vector.broadcast %1092 : f32 to vector<2x320xf32>
    %1094 = arith.mulf %1093, %1091 : vector<2x320xf32>
    %1095 = arith.addf %1078, %1094 : vector<2x320xf32>
    %c62_134 = arith.constant 62 : index
    %1096 = memref.load %arg6[%c62_134] : memref<144xf32, #tpu.memory_space<smem>>
    %1097 = vector.broadcast %1096 : f32 to vector<2x320xf32>
    %1098 = arith.mulf %1097, %1091 : vector<2x320xf32>
    %1099 = arith.addf %1082, %1098 : vector<2x320xf32>
    %c98_135 = arith.constant 98 : index
    %1100 = memref.load %arg6[%c98_135] : memref<144xf32, #tpu.memory_space<smem>>
    %1101 = vector.broadcast %1100 : f32 to vector<2x320xf32>
    %1102 = arith.mulf %1101, %1091 : vector<2x320xf32>
    %1103 = arith.addf %1086, %1102 : vector<2x320xf32>
    %c134_136 = arith.constant 134 : index
    %1104 = memref.load %arg6[%c134_136] : memref<144xf32, #tpu.memory_space<smem>>
    %1105 = vector.broadcast %1104 : f32 to vector<2x320xf32>
    %1106 = arith.mulf %1105, %1091 : vector<2x320xf32>
    %1107 = arith.addf %1090, %1106 : vector<2x320xf32>
    %1108 = vector.extract_strided_slice %636 {offsets = [0, 0], sizes = [2, 320], strides = [1, 1]} : vector<2x362xf32> to vector<2x320xf32>
    %c27_137 = arith.constant 27 : index
    %1109 = memref.load %arg6[%c27_137] : memref<144xf32, #tpu.memory_space<smem>>
    %1110 = vector.broadcast %1109 : f32 to vector<2x320xf32>
    %1111 = arith.mulf %1110, %1108 : vector<2x320xf32>
    %1112 = arith.addf %1095, %1111 : vector<2x320xf32>
    %c63_138 = arith.constant 63 : index
    %1113 = memref.load %arg6[%c63_138] : memref<144xf32, #tpu.memory_space<smem>>
    %1114 = vector.broadcast %1113 : f32 to vector<2x320xf32>
    %1115 = arith.mulf %1114, %1108 : vector<2x320xf32>
    %1116 = arith.addf %1099, %1115 : vector<2x320xf32>
    %c99_139 = arith.constant 99 : index
    %1117 = memref.load %arg6[%c99_139] : memref<144xf32, #tpu.memory_space<smem>>
    %1118 = vector.broadcast %1117 : f32 to vector<2x320xf32>
    %1119 = arith.mulf %1118, %1108 : vector<2x320xf32>
    %1120 = arith.addf %1103, %1119 : vector<2x320xf32>
    %c135_140 = arith.constant 135 : index
    %1121 = memref.load %arg6[%c135_140] : memref<144xf32, #tpu.memory_space<smem>>
    %1122 = vector.broadcast %1121 : f32 to vector<2x320xf32>
    %1123 = arith.mulf %1122, %1108 : vector<2x320xf32>
    %1124 = arith.addf %1107, %1123 : vector<2x320xf32>
    %1125 = vector.extract_strided_slice %636 {offsets = [0, 1], sizes = [2, 320], strides = [1, 1]} : vector<2x362xf32> to vector<2x320xf32>
    %c28_141 = arith.constant 28 : index
    %1126 = memref.load %arg6[%c28_141] : memref<144xf32, #tpu.memory_space<smem>>
    %1127 = vector.broadcast %1126 : f32 to vector<2x320xf32>
    %1128 = arith.mulf %1127, %1125 : vector<2x320xf32>
    %1129 = arith.addf %1112, %1128 : vector<2x320xf32>
    %c64_142 = arith.constant 64 : index
    %1130 = memref.load %arg6[%c64_142] : memref<144xf32, #tpu.memory_space<smem>>
    %1131 = vector.broadcast %1130 : f32 to vector<2x320xf32>
    %1132 = arith.mulf %1131, %1125 : vector<2x320xf32>
    %1133 = arith.addf %1116, %1132 : vector<2x320xf32>
    %c100_143 = arith.constant 100 : index
    %1134 = memref.load %arg6[%c100_143] : memref<144xf32, #tpu.memory_space<smem>>
    %1135 = vector.broadcast %1134 : f32 to vector<2x320xf32>
    %1136 = arith.mulf %1135, %1125 : vector<2x320xf32>
    %1137 = arith.addf %1120, %1136 : vector<2x320xf32>
    %c136_144 = arith.constant 136 : index
    %1138 = memref.load %arg6[%c136_144] : memref<144xf32, #tpu.memory_space<smem>>
    %1139 = vector.broadcast %1138 : f32 to vector<2x320xf32>
    %1140 = arith.mulf %1139, %1125 : vector<2x320xf32>
    %1141 = arith.addf %1124, %1140 : vector<2x320xf32>
    %1142 = vector.extract_strided_slice %636 {offsets = [0, 2], sizes = [2, 320], strides = [1, 1]} : vector<2x362xf32> to vector<2x320xf32>
    %c29_145 = arith.constant 29 : index
    %1143 = memref.load %arg6[%c29_145] : memref<144xf32, #tpu.memory_space<smem>>
    %1144 = vector.broadcast %1143 : f32 to vector<2x320xf32>
    %1145 = arith.mulf %1144, %1142 : vector<2x320xf32>
    %1146 = arith.addf %1129, %1145 : vector<2x320xf32>
    %c65_146 = arith.constant 65 : index
    %1147 = memref.load %arg6[%c65_146] : memref<144xf32, #tpu.memory_space<smem>>
    %1148 = vector.broadcast %1147 : f32 to vector<2x320xf32>
    %1149 = arith.mulf %1148, %1142 : vector<2x320xf32>
    %1150 = arith.addf %1133, %1149 : vector<2x320xf32>
    %c101_147 = arith.constant 101 : index
    %1151 = memref.load %arg6[%c101_147] : memref<144xf32, #tpu.memory_space<smem>>
    %1152 = vector.broadcast %1151 : f32 to vector<2x320xf32>
    %1153 = arith.mulf %1152, %1142 : vector<2x320xf32>
    %1154 = arith.addf %1137, %1153 : vector<2x320xf32>
    %c137_148 = arith.constant 137 : index
    %1155 = memref.load %arg6[%c137_148] : memref<144xf32, #tpu.memory_space<smem>>
    %1156 = vector.broadcast %1155 : f32 to vector<2x320xf32>
    %1157 = arith.mulf %1156, %1142 : vector<2x320xf32>
    %1158 = arith.addf %1141, %1157 : vector<2x320xf32>
    %1159 = vector.extract_strided_slice %636 {offsets = [0, 20], sizes = [2, 320], strides = [1, 1]} : vector<2x362xf32> to vector<2x320xf32>
    %c30_149 = arith.constant 30 : index
    %1160 = memref.load %arg6[%c30_149] : memref<144xf32, #tpu.memory_space<smem>>
    %1161 = vector.broadcast %1160 : f32 to vector<2x320xf32>
    %1162 = arith.mulf %1161, %1159 : vector<2x320xf32>
    %1163 = arith.addf %1146, %1162 : vector<2x320xf32>
    %c66_150 = arith.constant 66 : index
    %1164 = memref.load %arg6[%c66_150] : memref<144xf32, #tpu.memory_space<smem>>
    %1165 = vector.broadcast %1164 : f32 to vector<2x320xf32>
    %1166 = arith.mulf %1165, %1159 : vector<2x320xf32>
    %1167 = arith.addf %1150, %1166 : vector<2x320xf32>
    %c102_151 = arith.constant 102 : index
    %1168 = memref.load %arg6[%c102_151] : memref<144xf32, #tpu.memory_space<smem>>
    %1169 = vector.broadcast %1168 : f32 to vector<2x320xf32>
    %1170 = arith.mulf %1169, %1159 : vector<2x320xf32>
    %1171 = arith.addf %1154, %1170 : vector<2x320xf32>
    %c138_152 = arith.constant 138 : index
    %1172 = memref.load %arg6[%c138_152] : memref<144xf32, #tpu.memory_space<smem>>
    %1173 = vector.broadcast %1172 : f32 to vector<2x320xf32>
    %1174 = arith.mulf %1173, %1159 : vector<2x320xf32>
    %1175 = arith.addf %1158, %1174 : vector<2x320xf32>
    %1176 = vector.extract_strided_slice %636 {offsets = [0, 21], sizes = [2, 320], strides = [1, 1]} : vector<2x362xf32> to vector<2x320xf32>
    %c31_153 = arith.constant 31 : index
    %1177 = memref.load %arg6[%c31_153] : memref<144xf32, #tpu.memory_space<smem>>
    %1178 = vector.broadcast %1177 : f32 to vector<2x320xf32>
    %1179 = arith.mulf %1178, %1176 : vector<2x320xf32>
    %1180 = arith.addf %1163, %1179 : vector<2x320xf32>
    %c67_154 = arith.constant 67 : index
    %1181 = memref.load %arg6[%c67_154] : memref<144xf32, #tpu.memory_space<smem>>
    %1182 = vector.broadcast %1181 : f32 to vector<2x320xf32>
    %1183 = arith.mulf %1182, %1176 : vector<2x320xf32>
    %1184 = arith.addf %1167, %1183 : vector<2x320xf32>
    %c103_155 = arith.constant 103 : index
    %1185 = memref.load %arg6[%c103_155] : memref<144xf32, #tpu.memory_space<smem>>
    %1186 = vector.broadcast %1185 : f32 to vector<2x320xf32>
    %1187 = arith.mulf %1186, %1176 : vector<2x320xf32>
    %1188 = arith.addf %1171, %1187 : vector<2x320xf32>
    %c139_156 = arith.constant 139 : index
    %1189 = memref.load %arg6[%c139_156] : memref<144xf32, #tpu.memory_space<smem>>
    %1190 = vector.broadcast %1189 : f32 to vector<2x320xf32>
    %1191 = arith.mulf %1190, %1176 : vector<2x320xf32>
    %1192 = arith.addf %1175, %1191 : vector<2x320xf32>
    %1193 = vector.extract_strided_slice %636 {offsets = [0, 22], sizes = [2, 320], strides = [1, 1]} : vector<2x362xf32> to vector<2x320xf32>
    %c32_157 = arith.constant 32 : index
    %1194 = memref.load %arg6[%c32_157] : memref<144xf32, #tpu.memory_space<smem>>
    %1195 = vector.broadcast %1194 : f32 to vector<2x320xf32>
    %1196 = arith.mulf %1195, %1193 : vector<2x320xf32>
    %1197 = arith.addf %1180, %1196 : vector<2x320xf32>
    %c68_158 = arith.constant 68 : index
    %1198 = memref.load %arg6[%c68_158] : memref<144xf32, #tpu.memory_space<smem>>
    %1199 = vector.broadcast %1198 : f32 to vector<2x320xf32>
    %1200 = arith.mulf %1199, %1193 : vector<2x320xf32>
    %1201 = arith.addf %1184, %1200 : vector<2x320xf32>
    %c104_159 = arith.constant 104 : index
    %1202 = memref.load %arg6[%c104_159] : memref<144xf32, #tpu.memory_space<smem>>
    %1203 = vector.broadcast %1202 : f32 to vector<2x320xf32>
    %1204 = arith.mulf %1203, %1193 : vector<2x320xf32>
    %1205 = arith.addf %1188, %1204 : vector<2x320xf32>
    %c140_160 = arith.constant 140 : index
    %1206 = memref.load %arg6[%c140_160] : memref<144xf32, #tpu.memory_space<smem>>
    %1207 = vector.broadcast %1206 : f32 to vector<2x320xf32>
    %1208 = arith.mulf %1207, %1193 : vector<2x320xf32>
    %1209 = arith.addf %1192, %1208 : vector<2x320xf32>
    %1210 = vector.extract_strided_slice %636 {offsets = [0, 40], sizes = [2, 320], strides = [1, 1]} : vector<2x362xf32> to vector<2x320xf32>
    %c33_161 = arith.constant 33 : index
    %1211 = memref.load %arg6[%c33_161] : memref<144xf32, #tpu.memory_space<smem>>
    %1212 = vector.broadcast %1211 : f32 to vector<2x320xf32>
    %1213 = arith.mulf %1212, %1210 : vector<2x320xf32>
    %1214 = arith.addf %1197, %1213 : vector<2x320xf32>
    %c69_162 = arith.constant 69 : index
    %1215 = memref.load %arg6[%c69_162] : memref<144xf32, #tpu.memory_space<smem>>
    %1216 = vector.broadcast %1215 : f32 to vector<2x320xf32>
    %1217 = arith.mulf %1216, %1210 : vector<2x320xf32>
    %1218 = arith.addf %1201, %1217 : vector<2x320xf32>
    %c105_163 = arith.constant 105 : index
    %1219 = memref.load %arg6[%c105_163] : memref<144xf32, #tpu.memory_space<smem>>
    %1220 = vector.broadcast %1219 : f32 to vector<2x320xf32>
    %1221 = arith.mulf %1220, %1210 : vector<2x320xf32>
    %1222 = arith.addf %1205, %1221 : vector<2x320xf32>
    %c141_164 = arith.constant 141 : index
    %1223 = memref.load %arg6[%c141_164] : memref<144xf32, #tpu.memory_space<smem>>
    %1224 = vector.broadcast %1223 : f32 to vector<2x320xf32>
    %1225 = arith.mulf %1224, %1210 : vector<2x320xf32>
    %1226 = arith.addf %1209, %1225 : vector<2x320xf32>
    %1227 = vector.extract_strided_slice %636 {offsets = [0, 41], sizes = [2, 320], strides = [1, 1]} : vector<2x362xf32> to vector<2x320xf32>
    %c34_165 = arith.constant 34 : index
    %1228 = memref.load %arg6[%c34_165] : memref<144xf32, #tpu.memory_space<smem>>
    %1229 = vector.broadcast %1228 : f32 to vector<2x320xf32>
    %1230 = arith.mulf %1229, %1227 : vector<2x320xf32>
    %1231 = arith.addf %1214, %1230 : vector<2x320xf32>
    %c70_166 = arith.constant 70 : index
    %1232 = memref.load %arg6[%c70_166] : memref<144xf32, #tpu.memory_space<smem>>
    %1233 = vector.broadcast %1232 : f32 to vector<2x320xf32>
    %1234 = arith.mulf %1233, %1227 : vector<2x320xf32>
    %1235 = arith.addf %1218, %1234 : vector<2x320xf32>
    %c106_167 = arith.constant 106 : index
    %1236 = memref.load %arg6[%c106_167] : memref<144xf32, #tpu.memory_space<smem>>
    %1237 = vector.broadcast %1236 : f32 to vector<2x320xf32>
    %1238 = arith.mulf %1237, %1227 : vector<2x320xf32>
    %1239 = arith.addf %1222, %1238 : vector<2x320xf32>
    %c142_168 = arith.constant 142 : index
    %1240 = memref.load %arg6[%c142_168] : memref<144xf32, #tpu.memory_space<smem>>
    %1241 = vector.broadcast %1240 : f32 to vector<2x320xf32>
    %1242 = arith.mulf %1241, %1227 : vector<2x320xf32>
    %1243 = arith.addf %1226, %1242 : vector<2x320xf32>
    %1244 = vector.extract_strided_slice %636 {offsets = [0, 42], sizes = [2, 320], strides = [1, 1]} : vector<2x362xf32> to vector<2x320xf32>
    %c35_169 = arith.constant 35 : index
    %1245 = memref.load %arg6[%c35_169] : memref<144xf32, #tpu.memory_space<smem>>
    %1246 = vector.broadcast %1245 : f32 to vector<2x320xf32>
    %1247 = arith.mulf %1246, %1244 : vector<2x320xf32>
    %1248 = arith.addf %1231, %1247 : vector<2x320xf32>
    %c71_170 = arith.constant 71 : index
    %1249 = memref.load %arg6[%c71_170] : memref<144xf32, #tpu.memory_space<smem>>
    %1250 = vector.broadcast %1249 : f32 to vector<2x320xf32>
    %1251 = arith.mulf %1250, %1244 : vector<2x320xf32>
    %1252 = arith.addf %1235, %1251 : vector<2x320xf32>
    %c107_171 = arith.constant 107 : index
    %1253 = memref.load %arg6[%c107_171] : memref<144xf32, #tpu.memory_space<smem>>
    %1254 = vector.broadcast %1253 : f32 to vector<2x320xf32>
    %1255 = arith.mulf %1254, %1244 : vector<2x320xf32>
    %1256 = arith.addf %1239, %1255 : vector<2x320xf32>
    %c143_172 = arith.constant 143 : index
    %1257 = memref.load %arg6[%c143_172] : memref<144xf32, #tpu.memory_space<smem>>
    %1258 = vector.broadcast %1257 : f32 to vector<2x320xf32>
    %1259 = arith.mulf %1258, %1244 : vector<2x320xf32>
    %1260 = arith.addf %1243, %1259 : vector<2x320xf32>
    %c0_173 = arith.constant 0 : index
    %1261 = memref.load %arg7[%c0_173] : memref<4xf32, #tpu.memory_space<smem>>
    %1262 = vector.broadcast %1261 : f32 to vector<2x320xf32>
    %1263 = arith.addf %1248, %1262 : vector<2x320xf32>
    %c1_174 = arith.constant 1 : index
    %1264 = memref.load %arg7[%c1_174] : memref<4xf32, #tpu.memory_space<smem>>
    %1265 = vector.broadcast %1264 : f32 to vector<2x320xf32>
    %1266 = arith.addf %1252, %1265 : vector<2x320xf32>
    %c2_175 = arith.constant 2 : index
    %1267 = memref.load %arg7[%c2_175] : memref<4xf32, #tpu.memory_space<smem>>
    %1268 = vector.broadcast %1267 : f32 to vector<2x320xf32>
    %1269 = arith.addf %1256, %1268 : vector<2x320xf32>
    %c3_176 = arith.constant 3 : index
    %1270 = memref.load %arg7[%c3_176] : memref<4xf32, #tpu.memory_space<smem>>
    %1271 = vector.broadcast %1270 : f32 to vector<2x320xf32>
    %1272 = arith.addf %1260, %1271 : vector<2x320xf32>
    %c0_177 = arith.constant 0 : index
    %1273 = memref.load %arg8[%c0_177] : memref<16xf32, #tpu.memory_space<smem>>
    %1274 = vector.broadcast %1273 : f32 to vector<2x1xf32>
    %1275 = arith.mulf %1274, %640 : vector<2x1xf32>
    %c1_178 = arith.constant 1 : index
    %1276 = memref.load %arg8[%c1_178] : memref<16xf32, #tpu.memory_space<smem>>
    %1277 = vector.broadcast %1276 : f32 to vector<2x1xf32>
    %1278 = arith.mulf %1277, %644 : vector<2x1xf32>
    %1279 = arith.addf %1275, %1278 : vector<2x1xf32>
    %c2_179 = arith.constant 2 : index
    %1280 = memref.load %arg8[%c2_179] : memref<16xf32, #tpu.memory_space<smem>>
    %1281 = vector.broadcast %1280 : f32 to vector<2x1xf32>
    %1282 = arith.mulf %1281, %648 : vector<2x1xf32>
    %1283 = arith.addf %1279, %1282 : vector<2x1xf32>
    %c3_180 = arith.constant 3 : index
    %1284 = memref.load %arg8[%c3_180] : memref<16xf32, #tpu.memory_space<smem>>
    %1285 = vector.broadcast %1284 : f32 to vector<2x1xf32>
    %1286 = arith.mulf %1285, %652 : vector<2x1xf32>
    %1287 = arith.addf %1283, %1286 : vector<2x1xf32>
    %c0_181 = arith.constant 0 : index
    %1288 = memref.load %arg9[%c0_181] : memref<4xf32, #tpu.memory_space<smem>>
    %1289 = vector.broadcast %1288 : f32 to vector<2x1xf32>
    %1290 = arith.addf %1287, %1289 : vector<2x1xf32>
    %c0_182 = arith.constant 0 : index
    %c0_183 = arith.constant 0 : index
    %c0_184 = arith.constant 0 : index
    %c0_185 = arith.constant 0 : index
    %1291 = vector.load %arg2[%c0_182, %c0_183, %c0_184, %c0_185] : memref<1x4x2x320xf32, #tpu.memory_space<vmem>>, vector<1x1x2x320xf32>
    %1292 = vector.shape_cast %1291 : vector<1x1x2x320xf32> to vector<2x320xf32>
    %1293 = arith.negf %1263 : vector<2x320xf32>
    %1294 = math.exp %1293 : vector<2x320xf32>
    %cst_186 = arith.constant 1.000000e+00 : f32
    %1295 = vector.broadcast %cst_186 : f32 to vector<2x320xf32>
    %1296 = arith.addf %1295, %1294 : vector<2x320xf32>
    %1297 = arith.divf %1295, %1296 : vector<2x320xf32>
    %1298 = arith.mulf %1292, %1297 : vector<2x320xf32>
    %1299 = vector.broadcast %1290 : vector<2x1xf32> to vector<2x320xf32>
    %1300 = arith.addf %1298, %1299 : vector<2x320xf32>
    %c0_187 = arith.constant 0 : index
    %c0_188 = arith.constant 0 : index
    %c0_189 = arith.constant 0 : index
    %c0_190 = arith.constant 0 : index
    %1301 = vector.load %arg10[%c0_187, %c0_188, %c0_189, %c0_190] : memref<1x4x2x320xf32, #tpu.memory_space<vmem>>, vector<1x1x2x320xf32>
    %1302 = vector.shape_cast %1301 : vector<1x1x2x320xf32> to vector<2x320xf32>
    %1303 = vector.shape_cast %1300 : vector<2x320xf32> to vector<1x1x2x320xf32>
    tpu.vector_store %arg10[%c0_187, %c0_188, %c0_189, %c0_190], %1303 {strides = array<i32>} : memref<1x4x2x320xf32, #tpu.memory_space<vmem>>, vector<1x1x2x320xf32>,
    %c4_191 = arith.constant 4 : index
    %1304 = memref.load %arg8[%c4_191] : memref<16xf32, #tpu.memory_space<smem>>
    %1305 = vector.broadcast %1304 : f32 to vector<2x1xf32>
    %1306 = arith.mulf %1305, %640 : vector<2x1xf32>
    %c5_192 = arith.constant 5 : index
    %1307 = memref.load %arg8[%c5_192] : memref<16xf32, #tpu.memory_space<smem>>
    %1308 = vector.broadcast %1307 : f32 to vector<2x1xf32>
    %1309 = arith.mulf %1308, %644 : vector<2x1xf32>
    %1310 = arith.addf %1306, %1309 : vector<2x1xf32>
    %c6_193 = arith.constant 6 : index
    %1311 = memref.load %arg8[%c6_193] : memref<16xf32, #tpu.memory_space<smem>>
    %1312 = vector.broadcast %1311 : f32 to vector<2x1xf32>
    %1313 = arith.mulf %1312, %648 : vector<2x1xf32>
    %1314 = arith.addf %1310, %1313 : vector<2x1xf32>
    %c7_194 = arith.constant 7 : index
    %1315 = memref.load %arg8[%c7_194] : memref<16xf32, #tpu.memory_space<smem>>
    %1316 = vector.broadcast %1315 : f32 to vector<2x1xf32>
    %1317 = arith.mulf %1316, %652 : vector<2x1xf32>
    %1318 = arith.addf %1314, %1317 : vector<2x1xf32>
    %c1_195 = arith.constant 1 : index
    %1319 = memref.load %arg9[%c1_195] : memref<4xf32, #tpu.memory_space<smem>>
    %1320 = vector.broadcast %1319 : f32 to vector<2x1xf32>
    %1321 = arith.addf %1318, %1320 : vector<2x1xf32>
    %c0_196 = arith.constant 0 : index
    %c1_197 = arith.constant 1 : index
    %c0_198 = arith.constant 0 : index
    %c0_199 = arith.constant 0 : index
    %1322 = vector.load %arg2[%c0_196, %c1_197, %c0_198, %c0_199] : memref<1x4x2x320xf32, #tpu.memory_space<vmem>>, vector<1x1x2x320xf32>
    %1323 = vector.shape_cast %1322 : vector<1x1x2x320xf32> to vector<2x320xf32>
    %1324 = arith.negf %1266 : vector<2x320xf32>
    %1325 = math.exp %1324 : vector<2x320xf32>
    %cst_200 = arith.constant 1.000000e+00 : f32
    %1326 = vector.broadcast %cst_200 : f32 to vector<2x320xf32>
    %1327 = arith.addf %1326, %1325 : vector<2x320xf32>
    %1328 = arith.divf %1326, %1327 : vector<2x320xf32>
    %1329 = arith.mulf %1323, %1328 : vector<2x320xf32>
    %1330 = vector.broadcast %1321 : vector<2x1xf32> to vector<2x320xf32>
    %1331 = arith.addf %1329, %1330 : vector<2x320xf32>
    %c0_201 = arith.constant 0 : index
    %c1_202 = arith.constant 1 : index
    %c0_203 = arith.constant 0 : index
    %c0_204 = arith.constant 0 : index
    %1332 = vector.load %arg10[%c0_201, %c1_202, %c0_203, %c0_204] : memref<1x4x2x320xf32, #tpu.memory_space<vmem>>, vector<1x1x2x320xf32>
    %1333 = vector.shape_cast %1332 : vector<1x1x2x320xf32> to vector<2x320xf32>
    %1334 = vector.shape_cast %1331 : vector<2x320xf32> to vector<1x1x2x320xf32>
    tpu.vector_store %arg10[%c0_201, %c1_202, %c0_203, %c0_204], %1334 {strides = array<i32>} : memref<1x4x2x320xf32, #tpu.memory_space<vmem>>, vector<1x1x2x320xf32>,
    %c8_205 = arith.constant 8 : index
    %1335 = memref.load %arg8[%c8_205] : memref<16xf32, #tpu.memory_space<smem>>
    %1336 = vector.broadcast %1335 : f32 to vector<2x1xf32>
    %1337 = arith.mulf %1336, %640 : vector<2x1xf32>
    %c9_206 = arith.constant 9 : index
    %1338 = memref.load %arg8[%c9_206] : memref<16xf32, #tpu.memory_space<smem>>
    %1339 = vector.broadcast %1338 : f32 to vector<2x1xf32>
    %1340 = arith.mulf %1339, %644 : vector<2x1xf32>
    %1341 = arith.addf %1337, %1340 : vector<2x1xf32>
    %c10_207 = arith.constant 10 : index
    %1342 = memref.load %arg8[%c10_207] : memref<16xf32, #tpu.memory_space<smem>>
    %1343 = vector.broadcast %1342 : f32 to vector<2x1xf32>
    %1344 = arith.mulf %1343, %648 : vector<2x1xf32>
    %1345 = arith.addf %1341, %1344 : vector<2x1xf32>
    %c11_208 = arith.constant 11 : index
    %1346 = memref.load %arg8[%c11_208] : memref<16xf32, #tpu.memory_space<smem>>
    %1347 = vector.broadcast %1346 : f32 to vector<2x1xf32>
    %1348 = arith.mulf %1347, %652 : vector<2x1xf32>
    %1349 = arith.addf %1345, %1348 : vector<2x1xf32>
    %c2_209 = arith.constant 2 : index
    %1350 = memref.load %arg9[%c2_209] : memref<4xf32, #tpu.memory_space<smem>>
    %1351 = vector.broadcast %1350 : f32 to vector<2x1xf32>
    %1352 = arith.addf %1349, %1351 : vector<2x1xf32>
    %c0_210 = arith.constant 0 : index
    %c2_211 = arith.constant 2 : index
    %c0_212 = arith.constant 0 : index
    %c0_213 = arith.constant 0 : index
    %1353 = vector.load %arg2[%c0_210, %c2_211, %c0_212, %c0_213] : memref<1x4x2x320xf32, #tpu.memory_space<vmem>>, vector<1x1x2x320xf32>
    %1354 = vector.shape_cast %1353 : vector<1x1x2x320xf32> to vector<2x320xf32>
    %1355 = arith.negf %1269 : vector<2x320xf32>
    %1356 = math.exp %1355 : vector<2x320xf32>
    %cst_214 = arith.constant 1.000000e+00 : f32
    %1357 = vector.broadcast %cst_214 : f32 to vector<2x320xf32>
    %1358 = arith.addf %1357, %1356 : vector<2x320xf32>
    %1359 = arith.divf %1357, %1358 : vector<2x320xf32>
    %1360 = arith.mulf %1354, %1359 : vector<2x320xf32>
    %1361 = vector.broadcast %1352 : vector<2x1xf32> to vector<2x320xf32>
    %1362 = arith.addf %1360, %1361 : vector<2x320xf32>
    %c0_215 = arith.constant 0 : index
    %c2_216 = arith.constant 2 : index
    %c0_217 = arith.constant 0 : index
    %c0_218 = arith.constant 0 : index
    %1363 = vector.load %arg10[%c0_215, %c2_216, %c0_217, %c0_218] : memref<1x4x2x320xf32, #tpu.memory_space<vmem>>, vector<1x1x2x320xf32>
    %1364 = vector.shape_cast %1363 : vector<1x1x2x320xf32> to vector<2x320xf32>
    %1365 = vector.shape_cast %1362 : vector<2x320xf32> to vector<1x1x2x320xf32>
    tpu.vector_store %arg10[%c0_215, %c2_216, %c0_217, %c0_218], %1365 {strides = array<i32>} : memref<1x4x2x320xf32, #tpu.memory_space<vmem>>, vector<1x1x2x320xf32>,
    %c12_219 = arith.constant 12 : index
    %1366 = memref.load %arg8[%c12_219] : memref<16xf32, #tpu.memory_space<smem>>
    %1367 = vector.broadcast %1366 : f32 to vector<2x1xf32>
    %1368 = arith.mulf %1367, %640 : vector<2x1xf32>
    %c13_220 = arith.constant 13 : index
    %1369 = memref.load %arg8[%c13_220] : memref<16xf32, #tpu.memory_space<smem>>
    %1370 = vector.broadcast %1369 : f32 to vector<2x1xf32>
    %1371 = arith.mulf %1370, %644 : vector<2x1xf32>
    %1372 = arith.addf %1368, %1371 : vector<2x1xf32>
    %c14_221 = arith.constant 14 : index
    %1373 = memref.load %arg8[%c14_221] : memref<16xf32, #tpu.memory_space<smem>>
    %1374 = vector.broadcast %1373 : f32 to vector<2x1xf32>
    %1375 = arith.mulf %1374, %648 : vector<2x1xf32>
    %1376 = arith.addf %1372, %1375 : vector<2x1xf32>
    %c15_222 = arith.constant 15 : index
    %1377 = memref.load %arg8[%c15_222] : memref<16xf32, #tpu.memory_space<smem>>
    %1378 = vector.broadcast %1377 : f32 to vector<2x1xf32>
    %1379 = arith.mulf %1378, %652 : vector<2x1xf32>
    %1380 = arith.addf %1376, %1379 : vector<2x1xf32>
    %c3_223 = arith.constant 3 : index
    %1381 = memref.load %arg9[%c3_223] : memref<4xf32, #tpu.memory_space<smem>>
    %1382 = vector.broadcast %1381 : f32 to vector<2x1xf32>
    %1383 = arith.addf %1380, %1382 : vector<2x1xf32>
    %c0_224 = arith.constant 0 : index
    %c3_225 = arith.constant 3 : index
    %c0_226 = arith.constant 0 : index
    %c0_227 = arith.constant 0 : index
    %1384 = vector.load %arg2[%c0_224, %c3_225, %c0_226, %c0_227] : memref<1x4x2x320xf32, #tpu.memory_space<vmem>>, vector<1x1x2x320xf32>
    %1385 = vector.shape_cast %1384 : vector<1x1x2x320xf32> to vector<2x320xf32>
    %1386 = arith.negf %1272 : vector<2x320xf32>
    %1387 = math.exp %1386 : vector<2x320xf32>
    %cst_228 = arith.constant 1.000000e+00 : f32
    %1388 = vector.broadcast %cst_228 : f32 to vector<2x320xf32>
    %1389 = arith.addf %1388, %1387 : vector<2x320xf32>
    %1390 = arith.divf %1388, %1389 : vector<2x320xf32>
    %1391 = arith.mulf %1385, %1390 : vector<2x320xf32>
    %1392 = vector.broadcast %1383 : vector<2x1xf32> to vector<2x320xf32>
    %1393 = arith.addf %1391, %1392 : vector<2x320xf32>
    %c0_229 = arith.constant 0 : index
    %c3_230 = arith.constant 3 : index
    %c0_231 = arith.constant 0 : index
    %c0_232 = arith.constant 0 : index
    %1394 = vector.load %arg10[%c0_229, %c3_230, %c0_231, %c0_232] : memref<1x4x2x320xf32, #tpu.memory_space<vmem>>, vector<1x1x2x320xf32>
    %1395 = vector.shape_cast %1394 : vector<1x1x2x320xf32> to vector<2x320xf32>
    %1396 = vector.shape_cast %1393 : vector<2x320xf32> to vector<1x1x2x320xf32>
    tpu.vector_store %arg10[%c0_229, %c3_230, %c0_231, %c0_232], %1396 {strides = array<i32>} : memref<1x4x2x320xf32, #tpu.memory_space<vmem>>, vector<1x1x2x320xf32>,
    return
  }
  func.func @transform_0(%arg0: i32) -> (i32, i32, i32, i32) {
    %c0_i32 = arith.constant 0 : i32
    %c0_i32_0 = arith.constant 0 : i32
    %c0_i32_1 = arith.constant 0 : i32
    %c0_i32_2 = arith.constant 0 : i32
    return %arg0, %c0_i32, %c0_i32_0, %c0_i32_1 : i32, i32, i32, i32
  }
  func.func @transform_1(%arg0: i32) -> (i32, i32, i32, i32) {
    %c0_i32 = arith.constant 0 : i32
    %c0_i32_0 = arith.constant 0 : i32
    %c0_i32_1 = arith.constant 0 : i32
    %c0_i32_2 = arith.constant 0 : i32
    return %arg0, %c0_i32, %c0_i32_0, %c0_i32_1 : i32, i32, i32, i32
  }
  func.func @transform_2(%arg0: i32) -> (i32, i32) {
    %c0_i32 = arith.constant 0 : i32
    %c0_i32_0 = arith.constant 0 : i32
    %c0_i32_1 = arith.constant 0 : i32
    return %c0_i32, %c0_i32_0 : i32, i32
  }
  func.func @transform_3(%arg0: i32) -> i32 {
    %c0_i32 = arith.constant 0 : i32
    %c0_i32_0 = arith.constant 0 : i32
    return %c0_i32 : i32
  }
  func.func @transform_4(%arg0: i32) -> i32 {
    %c0_i32 = arith.constant 0 : i32
    %c0_i32_0 = arith.constant 0 : i32
    return %c0_i32 : i32
  }
  func.func @transform_5(%arg0: i32) -> i32 {
    %c0_i32 = arith.constant 0 : i32
    %c0_i32_0 = arith.constant 0 : i32
    return %c0_i32 : i32
  }
  func.func @transform_6(%arg0: i32) -> i32 {
    %c0_i32 = arith.constant 0 : i32
    %c0_i32_0 = arith.constant 0 : i32
    return %c0_i32 : i32
  }
  func.func @transform_7(%arg0: i32) -> i32 {
    %c0_i32 = arith.constant 0 : i32
    %c0_i32_0 = arith.constant 0 : i32
    return %c0_i32 : i32
  }
  func.func @transform_8(%arg0: i32) -> i32 {
    %c0_i32 = arith.constant 0 : i32
    %c0_i32_0 = arith.constant 0 : i32
    return %c0_i32 : i32
  }
  func.func @transform_9(%arg0: i32) -> (i32, i32, i32, i32) {
    %c0_i32 = arith.constant 0 : i32
    %c0_i32_0 = arith.constant 0 : i32
    %c0_i32_1 = arith.constant 0 : i32
    %c0_i32_2 = arith.constant 0 : i32
    return %arg0, %c0_i32, %c0_i32_0, %c0_i32_1 : i32, i32, i32, i32
  }
}

</mosaic_0001>

<llo_original>
// kernel: tpu_custom_call.1
$region0: #{tpu_custom_call.1}
  #allocation0 [shape = 'u32[]', space=smem, size = 0x4, offset = 0x4, fixed_abs, tag = 'smem constant byte address 0x4 - core index']
  #allocation1 [shape = 'u32[144,128]{1,0:T(1,128)}', space=vmem, size = 0x12000, scoped, tag = 'internal scratch']
  %s0 = inlined_call_operand.hbm [shape: f32[1,4,2,404], index: 0, kind: input, shape index: {}]
  %s1 = inlined_call_operand.hbm [shape: f32[1,4,2,320], index: 1, kind: input, shape index: {}]
  %s2 = inlined_call_operand.vmem [shape: f32[1,362], index: 2, kind: input, shape index: {}]
  %s3 = inlined_call_operand.vmem [shape: f32[144], index: 3, kind: input, shape index: {}]
  %s4 = inlined_call_operand.hbm [shape: f32[4], index: 4, kind: input, shape index: {}]
  %s5 = inlined_call_operand.vmem [shape: f32[144], index: 5, kind: input, shape index: {}]
  %s6 = inlined_call_operand.vmem [shape: f32[4], index: 6, kind: input, shape index: {}]
  %s7 = inlined_call_operand.vmem [shape: f32[16], index: 7, kind: input, shape index: {}]
  %s8 = inlined_call_operand.vmem [shape: f32[4], index: 8, kind: input, shape index: {}]
  %s9 = inlined_call_operand.hbm [shape: f32[1,4,2,320], index: 9, kind: output, shape index: {}]
  %s10 = sld [smem:[#allocation0]]
  $region78: #{tpu_custom_call.1} parent=0
    _
  %s12 = ssub.s32 1, %s10
  %s13 = scalar_select 0, %s12, %s10
  $region1: #{tpu_custom_call.1} parent=0
    #allocation2 [shape = 'u8[16384]{0}', space=vmem, size = 0x4000, scoped, tag = 'input window, operand 0, single buffered']
    #allocation3 [shape = 's32[1]{0}', space=sflag, size = 0x4, scoped, tag = 'scoped memory for tpu_custom_call.1']
    #allocation4 [shape = 's32[1]{0}', space=sflag, size = 0x4, scoped, tag = 'scoped memory for tpu_custom_call.1']
    #allocation5 [shape = 's32[1]{0}', space=sflag, size = 0x4, scoped, tag = 'scoped memory for tpu_custom_call.1']
    #allocation6 [shape = 's32[1]{0}', space=sflag, size = 0x4, scoped, tag = 'scoped memory for tpu_custom_call.1']
    #allocation7 [shape = 'u8[12288]{0}', space=vmem, size = 0x3000, scoped, tag = 'input window, operand 1, single buffered']
    #allocation8 [shape = 's32[1]{0}', space=sflag, size = 0x4, scoped, tag = 'scoped memory for tpu_custom_call.1']
    #allocation9 [shape = 'u8[1024]{0}', space=smem, size = 0x400, scoped, tag = 'input window, operand 3, single buffered']
    #allocation10 [shape = 'u8[512]{0}', space=smem, size = 0x200, scoped, tag = 'input window, operand 4, single buffered']
    #allocation11 [shape = 'u8[1024]{0}', space=smem, size = 0x400, scoped, tag = 'input window, operand 5, single buffered']
    #allocation12 [shape = 's32[1]{0}', space=sflag, size = 0x4, scoped, tag = 'scoped memory for tpu_custom_call.1']
    #allocation13 [shape = 'u8[512]{0}', space=smem, size = 0x200, scoped, tag = 'input window, operand 6, single buffered']
    #allocation14 [shape = 'u8[512]{0}', space=smem, size = 0x200, scoped, tag = 'input window, operand 7, single buffered']
    #allocation15 [shape = 's32[1]{0}', space=sflag, size = 0x4, scoped, tag = 'scoped memory for tpu_custom_call.1']
    #allocation16 [shape = 'u8[512]{0}', space=smem, size = 0x200, scoped, tag = 'input window, operand 8, single buffered']
    #allocation17 [shape = 'u8[12288]{0}', space=vmem, size = 0x3000, scoped, tag = 'output window, operand 0, single buffered']
    %14 = vsyncpa [#allocation3], 0
    %15 = vsyncpa [#allocation8], 0
    %16 = vsyncpa [#allocation6], 0
    %17 = vsyncpa [#allocation5], 0
    %18 = vsyncpa [#allocation12], 0
    %19 = vsyncpa [#allocation15], 0
    %20 = vsyncpa [#allocation4], 0
    // Predicated region
    $region2: #{tpu_custom_call.1} parent=1 // pred_check
      _
    $region3: #{tpu_custom_call.1} parent=1 // pred_check_branch
      %22 = sbr.rel (0) target = $region5
    $region4: #{tpu_custom_call.1} parent=1 // pred_region
      %s24 = ssub.s32 512, 512
      %25 = vsyncadd [#allocation3], %s24
      %s26 = sshll.u32 [#allocation2], 4
      %s27 = int_to_ptr.vmem [resolvable:$true] %s26
      %32 = dma.hbm_to_vmem [thread:$0]  %s0, 512, %s27, [#allocation3], 128, 128, 8
    $region5: #{tpu_custom_call.1} parent=1 // pred_fallthru
      _
    // Predicated region
    $region6: #{tpu_custom_call.1} parent=1 // pred_check
      _
    $region7: #{tpu_custom_call.1} parent=1 // pred_check_branch
      %34 = sbr.rel (0) target = $region9
    $region8: #{tpu_custom_call.1} parent=1 // pred_region
      %s36 = ssub.s32 384, 384
      %37 = vsyncadd [#allocation8], %s36
      %s38 = sshll.u32 [#allocation7], 4
      %s39 = int_to_ptr.vmem [resolvable:$true] %s38
      %44 = dma.hbm_to_vmem [thread:$0]  %s1, 384, %s39, [#allocation8], 96, 96, 6
    $region9: #{tpu_custom_call.1} parent=1 // pred_fallthru
      _
    // Predicated region
    $region10: #{tpu_custom_call.1} parent=1 // pred_check
      _
    $region11: #{tpu_custom_call.1} parent=1 // pred_check_branch
      %46 = sbr.rel (0) target = $region13
    $region12: #{tpu_custom_call.1} parent=1 // pred_region
      _
    $region13: #{tpu_custom_call.1} parent=1 // pred_fallthru
      _
    // Predicated region
    $region14: #{tpu_custom_call.1} parent=1 // pred_check
      _
    $region15: #{tpu_custom_call.1} parent=1 // pred_check_branch
      %48 = sbr.rel (0) target = $region17
    $region16: #{tpu_custom_call.1} parent=1 // pred_region
      %s50 = ssub.s32 32, 32
      %51 = vsyncadd [#allocation6], %s50
      %s53 = sshll.u32 %s3, 4
      %s54 = int_to_ptr.vmem [resolvable:$true] %s53
      %56 = dma.vmem_to_smem %s54, 32, [#allocation9], [#allocation6]
    $region17: #{tpu_custom_call.1} parent=1 // pred_fallthru
      _
    // Predicated region
    $region18: #{tpu_custom_call.1} parent=1 // pred_check
      _
    $region19: #{tpu_custom_call.1} parent=1 // pred_check_branch
      %58 = sbr.rel (0) target = $region21
    $region20: #{tpu_custom_call.1} parent=1 // pred_region
      %s60 = ssub.s32 16, 16
      %61 = vsyncadd [#allocation5], %s60
      %64 = dma.hbm_to_smem %s4, 16, [#allocation10], [#allocation5]
    $region21: #{tpu_custom_call.1} parent=1 // pred_fallthru
      _
    // Predicated region
    $region22: #{tpu_custom_call.1} parent=1 // pred_check
      _
    $region23: #{tpu_custom_call.1} parent=1 // pred_check_branch
      %66 = sbr.rel (0) target = $region25
    $region24: #{tpu_custom_call.1} parent=1 // pred_region
      %s68 = ssub.s32 32, 32
      %69 = vsyncadd [#allocation12], %s68
      %s71 = sshll.u32 %s5, 4
      %s72 = int_to_ptr.vmem [resolvable:$true] %s71
      %74 = dma.vmem_to_smem %s72, 32, [#allocation11], [#allocation12]
    $region25: #{tpu_custom_call.1} parent=1 // pred_fallthru
      _
    // Predicated region
    $region26: #{tpu_custom_call.1} parent=1 // pred_check
      _
    $region27: #{tpu_custom_call.1} parent=1 // pred_check_branch
      %76 = sbr.rel (0) target = $region29
    $region28: #{tpu_custom_call.1} parent=1 // pred_region
      %s78 = ssub.s32 16, 16
      %79 = vsyncadd [#allocation12], %s78
      %s81 = sshll.u32 %s6, 4
      %s82 = int_to_ptr.vmem [resolvable:$true] %s81
      %84 = dma.vmem_to_smem %s82, 16, [#allocation13], [#allocation12]
    $region29: #{tpu_custom_call.1} parent=1 // pred_fallthru
      _
    // Predicated region
    $region30: #{tpu_custom_call.1} parent=1 // pred_check
      _
    $region31: #{tpu_custom_call.1} parent=1 // pred_check_branch
      %86 = sbr.rel (0) target = $region33
    $region32: #{tpu_custom_call.1} parent=1 // pred_region
      %s88 = ssub.s32 16, 16
      %89 = vsyncadd [#allocation15], %s88
      %s91 = sshll.u32 %s7, 4
      %s92 = int_to_ptr.vmem [resolvable:$true] %s91
      %94 = dma.vmem_to_smem %s92, 16, [#allocation14], [#allocation15]
    $region33: #{tpu_custom_call.1} parent=1 // pred_fallthru
      _
    // Predicated region
    $region34: #{tpu_custom_call.1} parent=1 // pred_check
      _
    $region35: #{tpu_custom_call.1} parent=1 // pred_check_branch
      %96 = sbr.rel (0) target = $region37
    $region36: #{tpu_custom_call.1} parent=1 // pred_region
      %s98 = ssub.s32 16, 16
      %99 = vsyncadd [#allocation15], %s98
      %s101 = sshll.u32 %s8, 4
      %s102 = int_to_ptr.vmem [resolvable:$true] %s101
      %104 = dma.vmem_to_smem %s102, 16, [#allocation16], [#allocation15]
    $region37: #{tpu_custom_call.1} parent=1 // pred_fallthru
      _
    // Predicated region
    $region38: #{tpu_custom_call.1} parent=1 // pred_check
      _
    $region39: #{tpu_custom_call.1} parent=1 // pred_check_branch
      %106 = sbr.rel (0) target = $region41
    $region40: #{tpu_custom_call.1} parent=1 // pred_region
      %107 = dma.done [#allocation3], 512
    $region41: #{tpu_custom_call.1} parent=1 // pred_fallthru
      _
    // Predicated region
    $region42: #{tpu_custom_call.1} parent=1 // pred_check
      _
    $region43: #{tpu_custom_call.1} parent=1 // pred_check_branch
      %109 = sbr.rel (0) target = $region45
    $region44: #{tpu_custom_call.1} parent=1 // pred_region
      %110 = dma.done [#allocation8], 384
    $region45: #{tpu_custom_call.1} parent=1 // pred_fallthru
      _
    // Predicated region
    $region46: #{tpu_custom_call.1} parent=1 // pred_check
      _
    $region47: #{tpu_custom_call.1} parent=1 // pred_check_branch
      %112 = sbr.rel (0) target = $region49
    $region48: #{tpu_custom_call.1} parent=1 // pred_region
      %113 = dma.done [#allocation6], 32
    $region49: #{tpu_custom_call.1} parent=1 // pred_fallthru
      _
    // Predicated region
    $region50: #{tpu_custom_call.1} parent=1 // pred_check
      _
    $region51: #{tpu_custom_call.1} parent=1 // pred_check_branch
      %115 = sbr.rel (0) target = $region53
    $region52: #{tpu_custom_call.1} parent=1 // pred_region
      %116 = dma.done [#allocation5], 16
    $region53: #{tpu_custom_call.1} parent=1 // pred_fallthru
      _
    // Predicated region
    $region54: #{tpu_custom_call.1} parent=1 // pred_check
      _
    $region55: #{tpu_custom_call.1} parent=1 // pred_check_branch
      %118 = sbr.rel (0) target = $region57
    $region56: #{tpu_custom_call.1} parent=1 // pred_region
      %119 = dma.done [#allocation12], 32
    $region57: #{tpu_custom_call.1} parent=1 // pred_fallthru
      _
    // Predicated region
    $region58: #{tpu_custom_call.1} parent=1 // pred_check
      _
    $region59: #{tpu_custom_call.1} parent=1 // pred_check_branch
      %121 = sbr.rel (0) target = $region61
    $region60: #{tpu_custom_call.1} parent=1 // pred_region
      %122 = dma.done [#allocation12], 16
    $region61: #{tpu_custom_call.1} parent=1 // pred_fallthru
      _
    // Predicated region
    $region62: #{tpu_custom_call.1} parent=1 // pred_check
      _
    $region63: #{tpu_custom_call.1} parent=1 // pred_check_branch
      %124 = sbr.rel (0) target = $region65
    $region64: #{tpu_custom_call.1} parent=1 // pred_region
      %125 = dma.done [#allocation15], 16
    $region65: #{tpu_custom_call.1} parent=1 // pred_fallthru
      _
    // Predicated region
    $region66: #{tpu_custom_call.1} parent=1 // pred_check
      _
    $region67: #{tpu_custom_call.1} parent=1 // pred_check_branch
      %127 = sbr.rel (0) target = $region69
    $region68: #{tpu_custom_call.1} parent=1 // pred_region
      %128 = dma.done [#allocation15], 16
    $region69: #{tpu_custom_call.1} parent=1 // pred_fallthru
      _
    %129 = sfence
    %v130 = vld [vmem:[#allocation2] sm:$0xff]
    %s131 = scalar_lea.vmem [#allocation2], 8
    %v132 = vld [vmem:[%s131] sm:$0xff]
    %s133 = scalar_lea.vmem [#allocation2], 16
    %v134 = vld [vmem:[%s133] sm:$0xff]
    %s135 = scalar_lea.vmem [#allocation2], 24
    %v136 = vld [vmem:[%s135] sm:$0xff]
    %s137 = sld [smem:[#allocation9]]
    %v138 = vstv %s137
    %v139 = vmul.f32 %v138, %v130
    %s140 = sld [smem:[#allocation9 + $0x24]]
    %v141 = vstv %s140
    %v142 = vmul.f32 %v141, %v130
    %s143 = sld [smem:[#allocation9 + $0x48]]
    %v144 = vstv %s143
    %v145 = vmul.f32 %v144, %v130
    %s146 = sld [smem:[#allocation9 + $0x6c]]
    %v147 = vstv %s146
    %v148 = vmul.f32 %v147, %v130
    %s149 = sld [smem:[#allocation9 + $0x1]]
    %v150 = vstv %s149
    %v151 = vmul.f32 %v150, %v130
    %153 = vrot.lane.b32.xlu0 %v151, 127
    %v154 = vpop.permute.xlu0 %153
    %v155 = vrot.slane %v154, 2
    %vm156 = vcmask 1039360
    %v157 = vsel %vm156, %v154, %v155
    %v159 = vadd.f32 %v139, %v157
    %s160 = sld [smem:[#allocation9 + $0x25]]
    %v161 = vstv %s160
    %v162 = vmul.f32 %v161, %v130
    %164 = vrot.lane.b32.xlu0 %v162, 127
    %v165 = vpop.permute.xlu0 %164
    %v166 = vrot.slane %v165, 2
    %v167 = vsel %vm156, %v165, %v166
    %v169 = vadd.f32 %v142, %v167
    %s170 = sld [smem:[#allocation9 + $0x49]]
    %v171 = vstv %s170
    %v172 = vmul.f32 %v171, %v130
    %174 = vrot.lane.b32.xlu0 %v172, 127
    %v175 = vpop.permute.xlu0 %174
    %v176 = vrot.slane %v175, 2
    %v177 = vsel %vm156, %v175, %v176
    %v179 = vadd.f32 %v145, %v177
    %s180 = sld [smem:[#allocation9 + $0x6d]]
    %v181 = vstv %s180
    %v182 = vmul.f32 %v181, %v130
    %184 = vrot.lane.b32.xlu0 %v182, 127
    %v185 = vpop.permute.xlu0 %184
    %v186 = vrot.slane %v185, 2
    %v187 = vsel %vm156, %v185, %v186
    %v189 = vadd.f32 %v148, %v187
    %s190 = sld [smem:[#allocation9 + $0x2]]
    %v191 = vstv %s190
    %v192 = vmul.f32 %v191, %v130
    %194 = vrot.lane.b32.xlu0 %v192, 126
    %v195 = vpop.permute.xlu0 %194
    %v196 = vrot.slane %v195, 2
    %vm197 = vcmask 1031168
    %v198 = vsel %vm197, %v195, %v196
    %v200 = vadd.f32 %v159, %v198
    %s201 = sld [smem:[#allocation9 + $0x26]]
    %v202 = vstv %s201
    %v203 = vmul.f32 %v202, %v130
    %205 = vrot.lane.b32.xlu0 %v203, 126
    %v206 = vpop.permute.xlu0 %205
    %v207 = vrot.slane %v206, 2
    %v208 = vsel %vm197, %v206, %v207
    %v210 = vadd.f32 %v169, %v208
    %s211 = sld [smem:[#allocation9 + $0x4a]]
    %v212 = vstv %s211
    %v213 = vmul.f32 %v212, %v130
    %215 = vrot.lane.b32.xlu0 %v213, 126
    %v216 = vpop.permute.xlu0 %215
    %v217 = vrot.slane %v216, 2
    %v218 = vsel %vm197, %v216, %v217
    %v220 = vadd.f32 %v179, %v218
    %s221 = sld [smem:[#allocation9 + $0x6e]]
    %v222 = vstv %s221
    %v223 = vmul.f32 %v222, %v130
    %225 = vrot.lane.b32.xlu0 %v223, 126
    %v226 = vpop.permute.xlu0 %225
    %v227 = vrot.slane %v226, 2
    %v228 = vsel %vm197, %v226, %v227
    %v230 = vadd.f32 %v189, %v228
    %s231 = sld [smem:[#allocation9 + $0x3]]
    %v232 = vstv %s231
    %v233 = vmul.f32 %v232, %v130
    %235 = vrot.lane.b32.xlu0 %v233, 108
    %v236 = vpop.permute.xlu0 %235
    %v237 = vrot.slane %v236, 2
    %vm238 = vcmask 883712
    %v239 = vsel %vm238, %v236, %v237
    %v241 = vadd.f32 %v200, %v239
    %s242 = sld [smem:[#allocation9 + $0x27]]
    %v243 = vstv %s242
    %v244 = vmul.f32 %v243, %v130
    %246 = vrot.lane.b32.xlu0 %v244, 108
    %v247 = vpop.permute.xlu0 %246
    %v248 = vrot.slane %v247, 2
    %v249 = vsel %vm238, %v247, %v248
    %v251 = vadd.f32 %v210, %v249
    %s252 = sld [smem:[#allocation9 + $0x4b]]
    %v253 = vstv %s252
    %v254 = vmul.f32 %v253, %v130
    %256 = vrot.lane.b32.xlu0 %v254, 108
    %v257 = vpop.permute.xlu0 %256
    %v258 = vrot.slane %v257, 2
    %v259 = vsel %vm238, %v257, %v258
    %v261 = vadd.f32 %v220, %v259
    %s262 = sld [smem:[#allocation9 + $0x6f]]
    %v263 = vstv %s262
    %v264 = vmul.f32 %v263, %v130
    %266 = vrot.lane.b32.xlu0 %v264, 108
    %v267 = vpop.permute.xlu0 %266
    %v268 = vrot.slane %v267, 2
    %v269 = vsel %vm238, %v267, %v268
    %v271 = vadd.f32 %v230, %v269
    %s272 = sld [smem:[#allocation9 + $0x4]]
    %v273 = vstv %s272
    %v274 = vmul.f32 %v273, %v130
    %276 = vrot.lane.b32.xlu0 %v274, 107
    %v277 = vpop.permute.xlu0 %276
    %v278 = vrot.slane %v277, 2
    %vm279 = vcmask 875520
    %v280 = vsel %vm279, %v277, %v278
    %v282 = vadd.f32 %v241, %v280
    %s283 = sld [smem:[#allocation9 + $0x28]]
    %v284 = vstv %s283
    %v285 = vmul.f32 %v284, %v130
    %287 = vrot.lane.b32.xlu0 %v285, 107
    %v288 = vpop.permute.xlu0 %287
    %v289 = vrot.slane %v288, 2
    %v290 = vsel %vm279, %v288, %v289
    %v292 = vadd.f32 %v251, %v290
    %s293 = sld [smem:[#allocation9 + $0x4c]]
    %v294 = vstv %s293
    %v295 = vmul.f32 %v294, %v130
    %297 = vrot.lane.b32.xlu0 %v295, 107
    %v298 = vpop.permute.xlu0 %297
    %v299 = vrot.slane %v298, 2
    %v300 = vsel %vm279, %v298, %v299
    %v302 = vadd.f32 %v261, %v300
    %s303 = sld [smem:[#allocation9 + $0x70]]
    %v304 = vstv %s303
    %v305 = vmul.f32 %v304, %v130
    %307 = vrot.lane.b32.xlu0 %v305, 107
    %v308 = vpop.permute.xlu0 %307
    %v309 = vrot.slane %v308, 2
    %v310 = vsel %vm279, %v308, %v309
    %v312 = vadd.f32 %v271, %v310
    %s313 = sld [smem:[#allocation9 + $0x5]]
    %v314 = vstv %s313
    %v315 = vmul.f32 %v314, %v130
    %317 = vrot.lane.b32.xlu0 %v315, 106
    %v318 = vpop.permute.xlu0 %317
    %v319 = vrot.slane %v318, 2
    %vm320 = vcmask 867328
    %v321 = vsel %vm320, %v318, %v319
    %v323 = vadd.f32 %v282, %v321
    %s324 = sld [smem:[#allocation9 + $0x29]]
    %v325 = vstv %s324
    %v326 = vmul.f32 %v325, %v130
    %328 = vrot.lane.b32.xlu0 %v326, 106
    %v329 = vpop.permute.xlu0 %328
    %v330 = vrot.slane %v329, 2
    %v331 = vsel %vm320, %v329, %v330
    %v333 = vadd.f32 %v292, %v331
    %s334 = sld [smem:[#allocation9 + $0x4d]]
    %v335 = vstv %s334
    %v336 = vmul.f32 %v335, %v130
    %338 = vrot.lane.b32.xlu0 %v336, 106
    %v339 = vpop.permute.xlu0 %338
    %v340 = vrot.slane %v339, 2
    %v341 = vsel %vm320, %v339, %v340
    %v343 = vadd.f32 %v302, %v341
    %s344 = sld [smem:[#allocation9 + $0x71]]
    %v345 = vstv %s344
    %v346 = vmul.f32 %v345, %v130
    %348 = vrot.lane.b32.xlu0 %v346, 106
    %v349 = vpop.permute.xlu0 %348
    %v350 = vrot.slane %v349, 2
    %v351 = vsel %vm320, %v349, %v350
    %v353 = vadd.f32 %v312, %v351
    %s354 = sld [smem:[#allocation9 + $0x6]]
    %v355 = vstv %s354
    %v356 = vmul.f32 %v355, %v130
    %358 = vrot.lane.b32.xlu0 %v356, 88
    %v359 = vpop.permute.xlu0 %358
    %v360 = vrot.slane %v359, 2
    %vm361 = vcmask 719872
    %v362 = vsel %vm361, %v359, %v360
    %v364 = vadd.f32 %v323, %v362
    %s365 = sld [smem:[#allocation9 + $0x2a]]
    %v366 = vstv %s365
    %v367 = vmul.f32 %v366, %v130
    %369 = vrot.lane.b32.xlu0 %v367, 88
    %v370 = vpop.permute.xlu0 %369
    %v371 = vrot.slane %v370, 2
    %v372 = vsel %vm361, %v370, %v371
    %v374 = vadd.f32 %v333, %v372
    %s375 = sld [smem:[#allocation9 + $0x4e]]
    %v376 = vstv %s375
    %v377 = vmul.f32 %v376, %v130
    %379 = vrot.lane.b32.xlu0 %v377, 88
    %v380 = vpop.permute.xlu0 %379
    %v381 = vrot.slane %v380, 2
    %v382 = vsel %vm361, %v380, %v381
    %v384 = vadd.f32 %v343, %v382
    %s385 = sld [smem:[#allocation9 + $0x72]]
    %v386 = vstv %s385
    %v387 = vmul.f32 %v386, %v130
    %389 = vrot.lane.b32.xlu0 %v387, 88
    %v390 = vpop.permute.xlu0 %389
    %v391 = vrot.slane %v390, 2
    %v392 = vsel %vm361, %v390, %v391
    %v394 = vadd.f32 %v353, %v392
    %s395 = sld [smem:[#allocation9 + $0x7]]
    %v396 = vstv %s395
    %v397 = vmul.f32 %v396, %v130
    %399 = vrot.lane.b32.xlu0 %v397, 87
    %v400 = vpop.permute.xlu0 %399
    %v401 = vrot.slane %v400, 2
    %vm402 = vcmask 711680
    %v403 = vsel %vm402, %v400, %v401
    %v405 = vadd.f32 %v364, %v403
    %s406 = sld [smem:[#allocation9 + $0x2b]]
    %v407 = vstv %s406
    %v408 = vmul.f32 %v407, %v130
    %410 = vrot.lane.b32.xlu0 %v408, 87
    %v411 = vpop.permute.xlu0 %410
    %v412 = vrot.slane %v411, 2
    %v413 = vsel %vm402, %v411, %v412
    %v415 = vadd.f32 %v374, %v413
    %s416 = sld [smem:[#allocation9 + $0x4f]]
    %v417 = vstv %s416
    %v418 = vmul.f32 %v417, %v130
    %420 = vrot.lane.b32.xlu0 %v418, 87
    %v421 = vpop.permute.xlu0 %420
    %v422 = vrot.slane %v421, 2
    %v423 = vsel %vm402, %v421, %v422
    %v425 = vadd.f32 %v384, %v423
    %s426 = sld [smem:[#allocation9 + $0x73]]
    %v427 = vstv %s426
    %v428 = vmul.f32 %v427, %v130
    %430 = vrot.lane.b32.xlu0 %v428, 87
    %v431 = vpop.permute.xlu0 %430
    %v432 = vrot.slane %v431, 2
    %v433 = vsel %vm402, %v431, %v432
    %v435 = vadd.f32 %v394, %v433
    %s436 = sld [smem:[#allocation9 + $0x8]]
    %v437 = vstv %s436
    %v438 = vmul.f32 %v437, %v130
    %440 = vrot.lane.b32.xlu0 %v438, 86
    %v441 = vpop.permute.xlu0 %440
    %v442 = vrot.slane %v441, 2
    %vm443 = vcmask 703488
    %v444 = vsel %vm443, %v441, %v442
    %v446 = vadd.f32 %v405, %v444
    %s447 = sld [smem:[#allocation9 + $0x2c]]
    %v448 = vstv %s447
    %v449 = vmul.f32 %v448, %v130
    %451 = vrot.lane.b32.xlu0 %v449, 86
    %v452 = vpop.permute.xlu0 %451
    %v453 = vrot.slane %v452, 2
    %v454 = vsel %vm443, %v452, %v453
    %v456 = vadd.f32 %v415, %v454
    %s457 = sld [smem:[#allocation9 + $0x50]]
    %v458 = vstv %s457
    %v459 = vmul.f32 %v458, %v130
    %461 = vrot.lane.b32.xlu0 %v459, 86
    %v462 = vpop.permute.xlu0 %461
    %v463 = vrot.slane %v462, 2
    %v464 = vsel %vm443, %v462, %v463
    %v466 = vadd.f32 %v425, %v464
    %s467 = sld [smem:[#allocation9 + $0x74]]
    %v468 = vstv %s467
    %v469 = vmul.f32 %v468, %v130
    %471 = vrot.lane.b32.xlu0 %v469, 86
    %v472 = vpop.permute.xlu0 %471
    %v473 = vrot.slane %v472, 2
    %v474 = vsel %vm443, %v472, %v473
    %v476 = vadd.f32 %v435, %v474
    %s477 = sld [smem:[#allocation9 + $0x9]]
    %v478 = vstv %s477
    %v479 = vmul.f32 %v478, %v132
    %v480 = vadd.f32 %v446, %v479
    %s481 = sld [smem:[#allocation9 + $0x2d]]
    %v482 = vstv %s481
    %v483 = vmul.f32 %v482, %v132
    %v484 = vadd.f32 %v456, %v483
    %s485 = sld [smem:[#allocation9 + $0x51]]
    %v486 = vstv %s485
    %v487 = vmul.f32 %v486, %v132
    %v488 = vadd.f32 %v466, %v487
    %s489 = sld [smem:[#allocation9 + $0x75]]
    %v490 = vstv %s489
    %v491 = vmul.f32 %v490, %v132
    %v492 = vadd.f32 %v476, %v491
    %s493 = sld [smem:[#allocation9 + $0xa]]
    %v494 = vstv %s493
    %v495 = vmul.f32 %v494, %v132
    %497 = vrot.lane.b32.xlu0 %v495, 127
    %v498 = vpop.permute.xlu0 %497
    %v499 = vrot.slane %v498, 2
    %v500 = vsel %vm156, %v498, %v499
    %v502 = vadd.f32 %v480, %v500
    %s503 = sld [smem:[#allocation9 + $0x2e]]
    %v504 = vstv %s503
    %v505 = vmul.f32 %v504, %v132
    %507 = vrot.lane.b32.xlu0 %v505, 127
    %v508 = vpop.permute.xlu0 %507
    %v509 = vrot.slane %v508, 2
    %v510 = vsel %vm156, %v508, %v509
    %v512 = vadd.f32 %v484, %v510
    %s513 = sld [smem:[#allocation9 + $0x52]]
    %v514 = vstv %s513
    %v515 = vmul.f32 %v514, %v132
    %517 = vrot.lane.b32.xlu0 %v515, 127
    %v518 = vpop.permute.xlu0 %517
    %v519 = vrot.slane %v518, 2
    %v520 = vsel %vm156, %v518, %v519
    %v522 = vadd.f32 %v488, %v520
    %s523 = sld [smem:[#allocation9 + $0x76]]
    %v524 = vstv %s523
    %v525 = vmul.f32 %v524, %v132
    %527 = vrot.lane.b32.xlu0 %v525, 127
    %v528 = vpop.permute.xlu0 %527
    %v529 = vrot.slane %v528, 2
    %v530 = vsel %vm156, %v528, %v529
    %v532 = vadd.f32 %v492, %v530
    %s533 = sld [smem:[#allocation9 + $0xb]]
    %v534 = vstv %s533
    %v535 = vmul.f32 %v534, %v132
    %537 = vrot.lane.b32.xlu0 %v535, 126
    %v538 = vpop.permute.xlu0 %537
    %v539 = vrot.slane %v538, 2
    %v540 = vsel %vm197, %v538, %v539
    %v542 = vadd.f32 %v502, %v540
    %s543 = sld [smem:[#allocation9 + $0x2f]]
    %v544 = vstv %s543
    %v545 = vmul.f32 %v544, %v132
    %547 = vrot.lane.b32.xlu0 %v545, 126
    %v548 = vpop.permute.xlu0 %547
    %v549 = vrot.slane %v548, 2
    %v550 = vsel %vm197, %v548, %v549
    %v552 = vadd.f32 %v512, %v550
    %s553 = sld [smem:[#allocation9 + $0x53]]
    %v554 = vstv %s553
    %v555 = vmul.f32 %v554, %v132
    %557 = vrot.lane.b32.xlu0 %v555, 126
    %v558 = vpop.permute.xlu0 %557
    %v559 = vrot.slane %v558, 2
    %v560 = vsel %vm197, %v558, %v559
    %v562 = vadd.f32 %v522, %v560
    %s563 = sld [smem:[#allocation9 + $0x77]]
    %v564 = vstv %s563
    %v565 = vmul.f32 %v564, %v132
    %567 = vrot.lane.b32.xlu0 %v565, 126
    %v568 = vpop.permute.xlu0 %567
    %v569 = vrot.slane %v568, 2
    %v570 = vsel %vm197, %v568, %v569
    %v572 = vadd.f32 %v532, %v570
    %s573 = sld [smem:[#allocation9 + $0xc]]
    %v574 = vstv %s573
    %v575 = vmul.f32 %v574, %v132
    %577 = vrot.lane.b32.xlu0 %v575, 108
    %v578 = vpop.permute.xlu0 %577
    %v579 = vrot.slane %v578, 2
    %v580 = vsel %vm238, %v578, %v579
    %v582 = vadd.f32 %v542, %v580
    %s583 = sld [smem:[#allocation9 + $0x30]]
    %v584 = vstv %s583
    %v585 = vmul.f32 %v584, %v132
    %587 = vrot.lane.b32.xlu0 %v585, 108
    %v588 = vpop.permute.xlu0 %587
    %v589 = vrot.slane %v588, 2
    %v590 = vsel %vm238, %v588, %v589
    %v592 = vadd.f32 %v552, %v590
    %s593 = sld [smem:[#allocation9 + $0x54]]
    %v594 = vstv %s593
    %v595 = vmul.f32 %v594, %v132
    %597 = vrot.lane.b32.xlu0 %v595, 108
    %v598 = vpop.permute.xlu0 %597
    %v599 = vrot.slane %v598, 2
    %v600 = vsel %vm238, %v598, %v599
    %v602 = vadd.f32 %v562, %v600
    %s603 = sld [smem:[#allocation9 + $0x78]]
    %v604 = vstv %s603
    %v605 = vmul.f32 %v604, %v132
    %607 = vrot.lane.b32.xlu0 %v605, 108
    %v608 = vpop.permute.xlu0 %607
    %v609 = vrot.slane %v608, 2
    %v610 = vsel %vm238, %v608, %v609
    %v612 = vadd.f32 %v572, %v610
    %s613 = sld [smem:[#allocation9 + $0xd]]
    %v614 = vstv %s613
    %v615 = vmul.f32 %v614, %v132
    %617 = vrot.lane.b32.xlu0 %v615, 107
    %v618 = vpop.permute.xlu0 %617
    %v619 = vrot.slane %v618, 2
    %v620 = vsel %vm279, %v618, %v619
    %v622 = vadd.f32 %v582, %v620
    %s623 = sld [smem:[#allocation9 + $0x31]]
    %v624 = vstv %s623
    %v625 = vmul.f32 %v624, %v132
    %627 = vrot.lane.b32.xlu0 %v625, 107
    %v628 = vpop.permute.xlu0 %627
    %v629 = vrot.slane %v628, 2
    %v630 = vsel %vm279, %v628, %v629
    %v632 = vadd.f32 %v592, %v630
    %s633 = sld [smem:[#allocation9 + $0x55]]
    %v634 = vstv %s633
    %v635 = vmul.f32 %v634, %v132
    %637 = vrot.lane.b32.xlu0 %v635, 107
    %v638 = vpop.permute.xlu0 %637
    %v639 = vrot.slane %v638, 2
    %v640 = vsel %vm279, %v638, %v639
    %v642 = vadd.f32 %v602, %v640
    %s643 = sld [smem:[#allocation9 + $0x79]]
    %v644 = vstv %s643
    %v645 = vmul.f32 %v644, %v132
    %647 = vrot.lane.b32.xlu0 %v645, 107
    %v648 = vpop.permute.xlu0 %647
    %v649 = vrot.slane %v648, 2
    %v650 = vsel %vm279, %v648, %v649
    %v652 = vadd.f32 %v612, %v650
    %s653 = sld [smem:[#allocation9 + $0xe]]
    %v654 = vstv %s653
    %v655 = vmul.f32 %v654, %v132
    %657 = vrot.lane.b32.xlu0 %v655, 106
    %v658 = vpop.permute.xlu0 %657
    %v659 = vrot.slane %v658, 2
    %v660 = vsel %vm320, %v658, %v659
    %v662 = vadd.f32 %v622, %v660
    %s663 = sld [smem:[#allocation9 + $0x32]]
    %v664 = vstv %s663
    %v665 = vmul.f32 %v664, %v132
    %667 = vrot.lane.b32.xlu0 %v665, 106
    %v668 = vpop.permute.xlu0 %667
    %v669 = vrot.slane %v668, 2
    %v670 = vsel %vm320, %v668, %v669
    %v672 = vadd.f32 %v632, %v670
    %s673 = sld [smem:[#allocation9 + $0x56]]
    %v674 = vstv %s673
    %v675 = vmul.f32 %v674, %v132
    %677 = vrot.lane.b32.xlu0 %v675, 106
    %v678 = vpop.permute.xlu0 %677
    %v679 = vrot.slane %v678, 2
    %v680 = vsel %vm320, %v678, %v679
    %v682 = vadd.f32 %v642, %v680
    %s683 = sld [smem:[#allocation9 + $0x7a]]
    %v684 = vstv %s683
    %v685 = vmul.f32 %v684, %v132
    %687 = vrot.lane.b32.xlu0 %v685, 106
    %v688 = vpop.permute.xlu0 %687
    %v689 = vrot.slane %v688, 2
    %v690 = vsel %vm320, %v688, %v689
    %v692 = vadd.f32 %v652, %v690
    %s693 = sld [smem:[#allocation9 + $0xf]]
    %v694 = vstv %s693
    %v695 = vmul.f32 %v694, %v132
    %697 = vrot.lane.b32.xlu0 %v695, 88
    %v698 = vpop.permute.xlu0 %697
    %v699 = vrot.slane %v698, 2
    %v700 = vsel %vm361, %v698, %v699
    %v702 = vadd.f32 %v662, %v700
    %s703 = sld [smem:[#allocation9 + $0x33]]
    %v704 = vstv %s703
    %v705 = vmul.f32 %v704, %v132
    %707 = vrot.lane.b32.xlu0 %v705, 88
    %v708 = vpop.permute.xlu0 %707
    %v709 = vrot.slane %v708, 2
    %v710 = vsel %vm361, %v708, %v709
    %v712 = vadd.f32 %v672, %v710
    %s713 = sld [smem:[#allocation9 + $0x57]]
    %v714 = vstv %s713
    %v715 = vmul.f32 %v714, %v132
    %717 = vrot.lane.b32.xlu0 %v715, 88
    %v718 = vpop.permute.xlu0 %717
    %v719 = vrot.slane %v718, 2
    %v720 = vsel %vm361, %v718, %v719
    %v722 = vadd.f32 %v682, %v720
    %s723 = sld [smem:[#allocation9 + $0x7b]]
    %v724 = vstv %s723
    %v725 = vmul.f32 %v724, %v132
    %727 = vrot.lane.b32.xlu0 %v725, 88
    %v728 = vpop.permute.xlu0 %727
    %v729 = vrot.slane %v728, 2
    %v730 = vsel %vm361, %v728, %v729
    %v732 = vadd.f32 %v692, %v730
    %s733 = sld [smem:[#allocation9 + $0x10]]
    %v734 = vstv %s733
    %v735 = vmul.f32 %v734, %v132
    %737 = vrot.lane.b32.xlu0 %v735, 87
    %v738 = vpop.permute.xlu0 %737
    %v739 = vrot.slane %v738, 2
    %v740 = vsel %vm402, %v738, %v739
    %v742 = vadd.f32 %v702, %v740
    %s743 = sld [smem:[#allocation9 + $0x34]]
    %v744 = vstv %s743
    %v745 = vmul.f32 %v744, %v132
    %747 = vrot.lane.b32.xlu0 %v745, 87
    %v748 = vpop.permute.xlu0 %747
    %v749 = vrot.slane %v748, 2
    %v750 = vsel %vm402, %v748, %v749
    %v752 = vadd.f32 %v712, %v750
    %s753 = sld [smem:[#allocation9 + $0x58]]
    %v754 = vstv %s753
    %v755 = vmul.f32 %v754, %v132
    %757 = vrot.lane.b32.xlu0 %v755, 87
    %v758 = vpop.permute.xlu0 %757
    %v759 = vrot.slane %v758, 2
    %v760 = vsel %vm402, %v758, %v759
    %v762 = vadd.f32 %v722, %v760
    %s763 = sld [smem:[#allocation9 + $0x7c]]
    %v764 = vstv %s763
    %v765 = vmul.f32 %v764, %v132
    %767 = vrot.lane.b32.xlu0 %v765, 87
    %v768 = vpop.permute.xlu0 %767
    %v769 = vrot.slane %v768, 2
    %v770 = vsel %vm402, %v768, %v769
    %v772 = vadd.f32 %v732, %v770
    %s773 = sld [smem:[#allocation9 + $0x11]]
    %v774 = vstv %s773
    %v775 = vmul.f32 %v774, %v132
    %777 = vrot.lane.b32.xlu0 %v775, 86
    %v778 = vpop.permute.xlu0 %777
    %v779 = vrot.slane %v778, 2
    %v780 = vsel %vm443, %v778, %v779
    %v782 = vadd.f32 %v742, %v780
    %s783 = sld [smem:[#allocation9 + $0x35]]
    %v784 = vstv %s783
    %v785 = vmul.f32 %v784, %v132
    %787 = vrot.lane.b32.xlu0 %v785, 86
    %v788 = vpop.permute.xlu0 %787
    %v789 = vrot.slane %v788, 2
    %v790 = vsel %vm443, %v788, %v789
    %v792 = vadd.f32 %v752, %v790
    %s793 = sld [smem:[#allocation9 + $0x59]]
    %v794 = vstv %s793
    %v795 = vmul.f32 %v794, %v132
    %797 = vrot.lane.b32.xlu0 %v795, 86
    %v798 = vpop.permute.xlu0 %797
    %v799 = vrot.slane %v798, 2
    %v800 = vsel %vm443, %v798, %v799
    %v802 = vadd.f32 %v762, %v800
    %s803 = sld [smem:[#allocation9 + $0x7d]]
    %v804 = vstv %s803
    %v805 = vmul.f32 %v804, %v132
    %807 = vrot.lane.b32.xlu0 %v805, 86
    %v808 = vpop.permute.xlu0 %807
    %v809 = vrot.slane %v808, 2
    %v810 = vsel %vm443, %v808, %v809
    %v812 = vadd.f32 %v772, %v810
    %s813 = sld [smem:[#allocation9 + $0x12]]
    %v814 = vstv %s813
    %v815 = vmul.f32 %v814, %v134
    %v816 = vadd.f32 %v782, %v815
    %s817 = sld [smem:[#allocation9 + $0x36]]
    %v818 = vstv %s817
    %v819 = vmul.f32 %v818, %v134
    %v820 = vadd.f32 %v792, %v819
    %s821 = sld [smem:[#allocation9 + $0x5a]]
    %v822 = vstv %s821
    %v823 = vmul.f32 %v822, %v134
    %v824 = vadd.f32 %v802, %v823
    %s825 = sld [smem:[#allocation9 + $0x7e]]
    %v826 = vstv %s825
    %v827 = vmul.f32 %v826, %v134
    %v828 = vadd.f32 %v812, %v827
    %s829 = sld [smem:[#allocation9 + $0x13]]
    %v830 = vstv %s829
    %v831 = vmul.f32 %v830, %v134
    %833 = vrot.lane.b32.xlu0 %v831, 127
    %v834 = vpop.permute.xlu0 %833
    %v835 = vrot.slane %v834, 2
    %v836 = vsel %vm156, %v834, %v835
    %v838 = vadd.f32 %v816, %v836
    %s839 = sld [smem:[#allocation9 + $0x37]]
    %v840 = vstv %s839
    %v841 = vmul.f32 %v840, %v134
    %843 = vrot.lane.b32.xlu0 %v841, 127
    %v844 = vpop.permute.xlu0 %843
    %v845 = vrot.slane %v844, 2
    %v846 = vsel %vm156, %v844, %v845
    %v848 = vadd.f32 %v820, %v846
    %s849 = sld [smem:[#allocation9 + $0x5b]]
    %v850 = vstv %s849
    %v851 = vmul.f32 %v850, %v134
    %853 = vrot.lane.b32.xlu0 %v851, 127
    %v854 = vpop.permute.xlu0 %853
    %v855 = vrot.slane %v854, 2
    %v856 = vsel %vm156, %v854, %v855
    %v858 = vadd.f32 %v824, %v856
    %s859 = sld [smem:[#allocation9 + $0x7f]]
    %v860 = vstv %s859
    %v861 = vmul.f32 %v860, %v134
    %863 = vrot.lane.b32.xlu0 %v861, 127
    %v864 = vpop.permute.xlu0 %863
    %v865 = vrot.slane %v864, 2
    %v866 = vsel %vm156, %v864, %v865
    %v868 = vadd.f32 %v828, %v866
    %s869 = sld [smem:[#allocation9 + $0x14]]
    %v870 = vstv %s869
    %v871 = vmul.f32 %v870, %v134
    %873 = vrot.lane.b32.xlu0 %v871, 126
    %v874 = vpop.permute.xlu0 %873
    %v875 = vrot.slane %v874, 2
    %v876 = vsel %vm197, %v874, %v875
    %v878 = vadd.f32 %v838, %v876
    %s879 = sld [smem:[#allocation9 + $0x38]]
    %v880 = vstv %s879
    %v881 = vmul.f32 %v880, %v134
    %883 = vrot.lane.b32.xlu0 %v881, 126
    %v884 = vpop.permute.xlu0 %883
    %v885 = vrot.slane %v884, 2
    %v886 = vsel %vm197, %v884, %v885
    %v888 = vadd.f32 %v848, %v886
    %s889 = sld [smem:[#allocation9 + $0x5c]]
    %v890 = vstv %s889
    %v891 = vmul.f32 %v890, %v134
    %893 = vrot.lane.b32.xlu0 %v891, 126
    %v894 = vpop.permute.xlu0 %893
    %v895 = vrot.slane %v894, 2
    %v896 = vsel %vm197, %v894, %v895
    %v898 = vadd.f32 %v858, %v896
    %s899 = sld [smem:[#allocation9 + $0x80]]
    %v900 = vstv %s899
    %v901 = vmul.f32 %v900, %v134
    %903 = vrot.lane.b32.xlu0 %v901, 126
    %v904 = vpop.permute.xlu0 %903
    %v905 = vrot.slane %v904, 2
    %v906 = vsel %vm197, %v904, %v905
    %v908 = vadd.f32 %v868, %v906
    %s909 = sld [smem:[#allocation9 + $0x15]]
    %v910 = vstv %s909
    %v911 = vmul.f32 %v910, %v134
    %913 = vrot.lane.b32.xlu0 %v911, 108
    %v914 = vpop.permute.xlu0 %913
    %v915 = vrot.slane %v914, 2
    %v916 = vsel %vm238, %v914, %v915
    %v918 = vadd.f32 %v878, %v916
    %s919 = sld [smem:[#allocation9 + $0x39]]
    %v920 = vstv %s919
    %v921 = vmul.f32 %v920, %v134
    %923 = vrot.lane.b32.xlu0 %v921, 108
    %v924 = vpop.permute.xlu0 %923
    %v925 = vrot.slane %v924, 2
    %v926 = vsel %vm238, %v924, %v925
    %v928 = vadd.f32 %v888, %v926
    %s929 = sld [smem:[#allocation9 + $0x5d]]
    %v930 = vstv %s929
    %v931 = vmul.f32 %v930, %v134
    %933 = vrot.lane.b32.xlu0 %v931, 108
    %v934 = vpop.permute.xlu0 %933
    %v935 = vrot.slane %v934, 2
    %v936 = vsel %vm238, %v934, %v935
    %v938 = vadd.f32 %v898, %v936
    %s939 = sld [smem:[#allocation9 + $0x81]]
    %v940 = vstv %s939
    %v941 = vmul.f32 %v940, %v134
    %943 = vrot.lane.b32.xlu0 %v941, 108
    %v944 = vpop.permute.xlu0 %943
    %v945 = vrot.slane %v944, 2
    %v946 = vsel %vm238, %v944, %v945
    %v948 = vadd.f32 %v908, %v946
    %s949 = sld [smem:[#allocation9 + $0x16]]
    %v950 = vstv %s949
    %v951 = vmul.f32 %v950, %v134
    %953 = vrot.lane.b32.xlu0 %v951, 107
    %v954 = vpop.permute.xlu0 %953
    %v955 = vrot.slane %v954, 2
    %v956 = vsel %vm279, %v954, %v955
    %v958 = vadd.f32 %v918, %v956
    %s959 = sld [smem:[#allocation9 + $0x3a]]
    %v960 = vstv %s959
    %v961 = vmul.f32 %v960, %v134
    %963 = vrot.lane.b32.xlu0 %v961, 107
    %v964 = vpop.permute.xlu0 %963
    %v965 = vrot.slane %v964, 2
    %v966 = vsel %vm279, %v964, %v965
    %v968 = vadd.f32 %v928, %v966
    %s969 = sld [smem:[#allocation9 + $0x5e]]
    %v970 = vstv %s969
    %v971 = vmul.f32 %v970, %v134
    %973 = vrot.lane.b32.xlu0 %v971, 107
    %v974 = vpop.permute.xlu0 %973
    %v975 = vrot.slane %v974, 2
    %v976 = vsel %vm279, %v974, %v975
    %v978 = vadd.f32 %v938, %v976
    %s979 = sld [smem:[#allocation9 + $0x82]]
    %v980 = vstv %s979
    %v981 = vmul.f32 %v980, %v134
    %983 = vrot.lane.b32.xlu0 %v981, 107
    %v984 = vpop.permute.xlu0 %983
    %v985 = vrot.slane %v984, 2
    %v986 = vsel %vm279, %v984, %v985
    %v988 = vadd.f32 %v948, %v986
    %s989 = sld [smem:[#allocation9 + $0x17]]
    %v990 = vstv %s989
    %v991 = vmul.f32 %v990, %v134
    %993 = vrot.lane.b32.xlu0 %v991, 106
    %v994 = vpop.permute.xlu0 %993
    %v995 = vrot.slane %v994, 2
    %v996 = vsel %vm320, %v994, %v995
    %v998 = vadd.f32 %v958, %v996
    %s999 = sld [smem:[#allocation9 + $0x3b]]
    %v1000 = vstv %s999
    %v1001 = vmul.f32 %v1000, %v134
    %1003 = vrot.lane.b32.xlu0 %v1001, 106
    %v1004 = vpop.permute.xlu0 %1003
    %v1005 = vrot.slane %v1004, 2
    %v1006 = vsel %vm320, %v1004, %v1005
    %v1008 = vadd.f32 %v968, %v1006
    %s1009 = sld [smem:[#allocation9 + $0x5f]]
    %v1010 = vstv %s1009
    %v1011 = vmul.f32 %v1010, %v134
    %1013 = vrot.lane.b32.xlu0 %v1011, 106
    %v1014 = vpop.permute.xlu0 %1013
    %v1015 = vrot.slane %v1014, 2
    %v1016 = vsel %vm320, %v1014, %v1015
    %v1018 = vadd.f32 %v978, %v1016
    %s1019 = sld [smem:[#allocation9 + $0x83]]
    %v1020 = vstv %s1019
    %v1021 = vmul.f32 %v1020, %v134
    %1023 = vrot.lane.b32.xlu0 %v1021, 106
    %v1024 = vpop.permute.xlu0 %1023
    %v1025 = vrot.slane %v1024, 2
    %v1026 = vsel %vm320, %v1024, %v1025
    %v1028 = vadd.f32 %v988, %v1026
    %s1029 = sld [smem:[#allocation9 + $0x18]]
    %v1030 = vstv %s1029
    %v1031 = vmul.f32 %v1030, %v134
    %1033 = vrot.lane.b32.xlu0 %v1031, 88
    %v1034 = vpop.permute.xlu0 %1033
    %v1035 = vrot.slane %v1034, 2
    %v1036 = vsel %vm361, %v1034, %v1035
    %v1038 = vadd.f32 %v998, %v1036
    %s1039 = sld [smem:[#allocation9 + $0x3c]]
    %v1040 = vstv %s1039
    %v1041 = vmul.f32 %v1040, %v134
    %1043 = vrot.lane.b32.xlu0 %v1041, 88
    %v1044 = vpop.permute.xlu0 %1043
    %v1045 = vrot.slane %v1044, 2
    %v1046 = vsel %vm361, %v1044, %v1045
    %v1048 = vadd.f32 %v1008, %v1046
    %s1049 = sld [smem:[#allocation9 + $0x60]]
    %v1050 = vstv %s1049
    %v1051 = vmul.f32 %v1050, %v134
    %1053 = vrot.lane.b32.xlu0 %v1051, 88
    %v1054 = vpop.permute.xlu0 %1053
    %v1055 = vrot.slane %v1054, 2
    %v1056 = vsel %vm361, %v1054, %v1055
    %v1058 = vadd.f32 %v1018, %v1056
    %s1059 = sld [smem:[#allocation9 + $0x84]]
    %v1060 = vstv %s1059
    %v1061 = vmul.f32 %v1060, %v134
    %1063 = vrot.lane.b32.xlu0 %v1061, 88
    %v1064 = vpop.permute.xlu0 %1063
    %v1065 = vrot.slane %v1064, 2
    %v1066 = vsel %vm361, %v1064, %v1065
    %v1068 = vadd.f32 %v1028, %v1066
    %s1069 = sld [smem:[#allocation9 + $0x19]]
    %v1070 = vstv %s1069
    %v1071 = vmul.f32 %v1070, %v134
    %1073 = vrot.lane.b32.xlu0 %v1071, 87
    %v1074 = vpop.permute.xlu0 %1073
    %v1075 = vrot.slane %v1074, 2
    %v1076 = vsel %vm402, %v1074, %v1075
    %v1078 = vadd.f32 %v1038, %v1076
    %s1079 = sld [smem:[#allocation9 + $0x3d]]
    %v1080 = vstv %s1079
    %v1081 = vmul.f32 %v1080, %v134
    %1083 = vrot.lane.b32.xlu0 %v1081, 87
    %v1084 = vpop.permute.xlu0 %1083
    %v1085 = vrot.slane %v1084, 2
    %v1086 = vsel %vm402, %v1084, %v1085
    %v1088 = vadd.f32 %v1048, %v1086
    %s1089 = sld [smem:[#allocation9 + $0x61]]
    %v1090 = vstv %s1089
    %v1091 = vmul.f32 %v1090, %v134
    %1093 = vrot.lane.b32.xlu0 %v1091, 87
    %v1094 = vpop.permute.xlu0 %1093
    %v1095 = vrot.slane %v1094, 2
    %v1096 = vsel %vm402, %v1094, %v1095
    %v1098 = vadd.f32 %v1058, %v1096
    %s1099 = sld [smem:[#allocation9 + $0x85]]
    %v1100 = vstv %s1099
    %v1101 = vmul.f32 %v1100, %v134
    %1103 = vrot.lane.b32.xlu0 %v1101, 87
    %v1104 = vpop.permute.xlu0 %1103
    %v1105 = vrot.slane %v1104, 2
    %v1106 = vsel %vm402, %v1104, %v1105
    %v1108 = vadd.f32 %v1068, %v1106
    %s1109 = sld [smem:[#allocation9 + $0x1a]]
    %v1110 = vstv %s1109
    %v1111 = vmul.f32 %v1110, %v134
    %1113 = vrot.lane.b32.xlu0 %v1111, 86
    %v1114 = vpop.permute.xlu0 %1113
    %v1115 = vrot.slane %v1114, 2
    %v1116 = vsel %vm443, %v1114, %v1115
    %v1118 = vadd.f32 %v1078, %v1116
    %s1119 = sld [smem:[#allocation9 + $0x3e]]
    %v1120 = vstv %s1119
    %v1121 = vmul.f32 %v1120, %v134
    %1123 = vrot.lane.b32.xlu0 %v1121, 86
    %v1124 = vpop.permute.xlu0 %1123
    %v1125 = vrot.slane %v1124, 2
    %v1126 = vsel %vm443, %v1124, %v1125
    %v1128 = vadd.f32 %v1088, %v1126
    %s1129 = sld [smem:[#allocation9 + $0x62]]
    %v1130 = vstv %s1129
    %v1131 = vmul.f32 %v1130, %v134
    %1133 = vrot.lane.b32.xlu0 %v1131, 86
    %v1134 = vpop.permute.xlu0 %1133
    %v1135 = vrot.slane %v1134, 2
    %v1136 = vsel %vm443, %v1134, %v1135
    %v1138 = vadd.f32 %v1098, %v1136
    %s1139 = sld [smem:[#allocation9 + $0x86]]
    %v1140 = vstv %s1139
    %v1141 = vmul.f32 %v1140, %v134
    %1143 = vrot.lane.b32.xlu0 %v1141, 86
    %v1144 = vpop.permute.xlu0 %1143
    %v1145 = vrot.slane %v1144, 2
    %v1146 = vsel %vm443, %v1144, %v1145
    %v1148 = vadd.f32 %v1108, %v1146
    %s1149 = sld [smem:[#allocation9 + $0x1b]]
    %v1150 = vstv %s1149
    %v1151 = vmul.f32 %v1150, %v136
    %v1152 = vadd.f32 %v1118, %v1151
    %s1153 = sld [smem:[#allocation9 + $0x3f]]
    %v1154 = vstv %s1153
    %v1155 = vmul.f32 %v1154, %v136
    %v1156 = vadd.f32 %v1128, %v1155
    %s1157 = sld [smem:[#allocation9 + $0x63]]
    %v1158 = vstv %s1157
    %v1159 = vmul.f32 %v1158, %v136
    %v1160 = vadd.f32 %v1138, %v1159
    %s1161 = sld [smem:[#allocation9 + $0x87]]
    %v1162 = vstv %s1161
    %v1163 = vmul.f32 %v1162, %v136
    %v1164 = vadd.f32 %v1148, %v1163
    %s1165 = sld [smem:[#allocation9 + $0x1c]]
    %v1166 = vstv %s1165
    %v1167 = vmul.f32 %v1166, %v136
    %1169 = vrot.lane.b32.xlu0 %v1167, 127
    %v1170 = vpop.permute.xlu0 %1169
    %v1171 = vrot.slane %v1170, 2
    %v1172 = vsel %vm156, %v1170, %v1171
    %v1174 = vadd.f32 %v1152, %v1172
    %s1175 = sld [smem:[#allocation9 + $0x40]]
    %v1176 = vstv %s1175
    %v1177 = vmul.f32 %v1176, %v136
    %1179 = vrot.lane.b32.xlu0 %v1177, 127
    %v1180 = vpop.permute.xlu0 %1179
    %v1181 = vrot.slane %v1180, 2
    %v1182 = vsel %vm156, %v1180, %v1181
    %v1184 = vadd.f32 %v1156, %v1182
    %s1185 = sld [smem:[#allocation9 + $0x64]]
    %v1186 = vstv %s1185
    %v1187 = vmul.f32 %v1186, %v136
    %1189 = vrot.lane.b32.xlu0 %v1187, 127
    %v1190 = vpop.permute.xlu0 %1189
    %v1191 = vrot.slane %v1190, 2
    %v1192 = vsel %vm156, %v1190, %v1191
    %v1194 = vadd.f32 %v1160, %v1192
    %s1195 = sld [smem:[#allocation9 + $0x88]]
    %v1196 = vstv %s1195
    %v1197 = vmul.f32 %v1196, %v136
    %1199 = vrot.lane.b32.xlu0 %v1197, 127
    %v1200 = vpop.permute.xlu0 %1199
    %v1201 = vrot.slane %v1200, 2
    %v1202 = vsel %vm156, %v1200, %v1201
    %v1204 = vadd.f32 %v1164, %v1202
    %s1205 = sld [smem:[#allocation9 + $0x1d]]
    %v1206 = vstv %s1205
    %v1207 = vmul.f32 %v1206, %v136
    %1209 = vrot.lane.b32.xlu0 %v1207, 126
    %v1210 = vpop.permute.xlu0 %1209
    %v1211 = vrot.slane %v1210, 2
    %v1212 = vsel %vm197, %v1210, %v1211
    %v1214 = vadd.f32 %v1174, %v1212
    %s1215 = sld [smem:[#allocation9 + $0x41]]
    %v1216 = vstv %s1215
    %v1217 = vmul.f32 %v1216, %v136
    %1219 = vrot.lane.b32.xlu0 %v1217, 126
    %v1220 = vpop.permute.xlu0 %1219
    %v1221 = vrot.slane %v1220, 2
    %v1222 = vsel %vm197, %v1220, %v1221
    %v1224 = vadd.f32 %v1184, %v1222
    %s1225 = sld [smem:[#allocation9 + $0x65]]
    %v1226 = vstv %s1225
    %v1227 = vmul.f32 %v1226, %v136
    %1229 = vrot.lane.b32.xlu0 %v1227, 126
    %v1230 = vpop.permute.xlu0 %1229
    %v1231 = vrot.slane %v1230, 2
    %v1232 = vsel %vm197, %v1230, %v1231
    %v1234 = vadd.f32 %v1194, %v1232
    %s1235 = sld [smem:[#allocation9 + $0x89]]
    %v1236 = vstv %s1235
    %v1237 = vmul.f32 %v1236, %v136
    %1239 = vrot.lane.b32.xlu0 %v1237, 126
    %v1240 = vpop.permute.xlu0 %1239
    %v1241 = vrot.slane %v1240, 2
    %v1242 = vsel %vm197, %v1240, %v1241
    %v1244 = vadd.f32 %v1204, %v1242
    %s1245 = sld [smem:[#allocation9 + $0x1e]]
    %v1246 = vstv %s1245
    %v1247 = vmul.f32 %v1246, %v136
    %1249 = vrot.lane.b32.xlu0 %v1247, 108
    %v1250 = vpop.permute.xlu0 %1249
    %v1251 = vrot.slane %v1250, 2
    %v1252 = vsel %vm238, %v1250, %v1251
    %v1254 = vadd.f32 %v1214, %v1252
    %s1255 = sld [smem:[#allocation9 + $0x42]]
    %v1256 = vstv %s1255
    %v1257 = vmul.f32 %v1256, %v136
    %1259 = vrot.lane.b32.xlu0 %v1257, 108
    %v1260 = vpop.permute.xlu0 %1259
    %v1261 = vrot.slane %v1260, 2
    %v1262 = vsel %vm238, %v1260, %v1261
    %v1264 = vadd.f32 %v1224, %v1262
    %s1265 = sld [smem:[#allocation9 + $0x66]]
    %v1266 = vstv %s1265
    %v1267 = vmul.f32 %v1266, %v136
    %1269 = vrot.lane.b32.xlu0 %v1267, 108
    %v1270 = vpop.permute.xlu0 %1269
    %v1271 = vrot.slane %v1270, 2
    %v1272 = vsel %vm238, %v1270, %v1271
    %v1274 = vadd.f32 %v1234, %v1272
    %s1275 = sld [smem:[#allocation9 + $0x8a]]
    %v1276 = vstv %s1275
    %v1277 = vmul.f32 %v1276, %v136
    %1279 = vrot.lane.b32.xlu0 %v1277, 108
    %v1280 = vpop.permute.xlu0 %1279
    %v1281 = vrot.slane %v1280, 2
    %v1282 = vsel %vm238, %v1280, %v1281
    %v1284 = vadd.f32 %v1244, %v1282
    %s1285 = sld [smem:[#allocation9 + $0x1f]]
    %v1286 = vstv %s1285
    %v1287 = vmul.f32 %v1286, %v136
    %1289 = vrot.lane.b32.xlu0 %v1287, 107
    %v1290 = vpop.permute.xlu0 %1289
    %v1291 = vrot.slane %v1290, 2
    %v1292 = vsel %vm279, %v1290, %v1291
    %v1294 = vadd.f32 %v1254, %v1292
    %s1295 = sld [smem:[#allocation9 + $0x43]]
    %v1296 = vstv %s1295
    %v1297 = vmul.f32 %v1296, %v136
    %1299 = vrot.lane.b32.xlu0 %v1297, 107
    %v1300 = vpop.permute.xlu0 %1299
    %v1301 = vrot.slane %v1300, 2
    %v1302 = vsel %vm279, %v1300, %v1301
    %v1304 = vadd.f32 %v1264, %v1302
    %s1305 = sld [smem:[#allocation9 + $0x67]]
    %v1306 = vstv %s1305
    %v1307 = vmul.f32 %v1306, %v136
    %1309 = vrot.lane.b32.xlu0 %v1307, 107
    %v1310 = vpop.permute.xlu0 %1309
    %v1311 = vrot.slane %v1310, 2
    %v1312 = vsel %vm279, %v1310, %v1311
    %v1314 = vadd.f32 %v1274, %v1312
    %s1315 = sld [smem:[#allocation9 + $0x8b]]
    %v1316 = vstv %s1315
    %v1317 = vmul.f32 %v1316, %v136
    %1319 = vrot.lane.b32.xlu0 %v1317, 107
    %v1320 = vpop.permute.xlu0 %1319
    %v1321 = vrot.slane %v1320, 2
    %v1322 = vsel %vm279, %v1320, %v1321
    %v1324 = vadd.f32 %v1284, %v1322
    %s1325 = sld [smem:[#allocation9 + $0x20]]
    %v1326 = vstv %s1325
    %v1327 = vmul.f32 %v1326, %v136
    %1329 = vrot.lane.b32.xlu0 %v1327, 106
    %v1330 = vpop.permute.xlu0 %1329
    %v1331 = vrot.slane %v1330, 2
    %v1332 = vsel %vm320, %v1330, %v1331
    %v1334 = vadd.f32 %v1294, %v1332
    %s1335 = sld [smem:[#allocation9 + $0x44]]
    %v1336 = vstv %s1335
    %v1337 = vmul.f32 %v1336, %v136
    %1339 = vrot.lane.b32.xlu0 %v1337, 106
    %v1340 = vpop.permute.xlu0 %1339
    %v1341 = vrot.slane %v1340, 2
    %v1342 = vsel %vm320, %v1340, %v1341
    %v1344 = vadd.f32 %v1304, %v1342
    %s1345 = sld [smem:[#allocation9 + $0x68]]
    %v1346 = vstv %s1345
    %v1347 = vmul.f32 %v1346, %v136
    %1349 = vrot.lane.b32.xlu0 %v1347, 106
    %v1350 = vpop.permute.xlu0 %1349
    %v1351 = vrot.slane %v1350, 2
    %v1352 = vsel %vm320, %v1350, %v1351
    %v1354 = vadd.f32 %v1314, %v1352
    %s1355 = sld [smem:[#allocation9 + $0x8c]]
    %v1356 = vstv %s1355
    %v1357 = vmul.f32 %v1356, %v136
    %1359 = vrot.lane.b32.xlu0 %v1357, 106
    %v1360 = vpop.permute.xlu0 %1359
    %v1361 = vrot.slane %v1360, 2
    %v1362 = vsel %vm320, %v1360, %v1361
    %v1364 = vadd.f32 %v1324, %v1362
    %s1365 = sld [smem:[#allocation9 + $0x21]]
    %v1366 = vstv %s1365
    %v1367 = vmul.f32 %v1366, %v136
    %1369 = vrot.lane.b32.xlu0 %v1367, 88
    %v1370 = vpop.permute.xlu0 %1369
    %v1371 = vrot.slane %v1370, 2
    %v1372 = vsel %vm361, %v1370, %v1371
    %v1374 = vadd.f32 %v1334, %v1372
    %s1375 = sld [smem:[#allocation9 + $0x45]]
    %v1376 = vstv %s1375
    %v1377 = vmul.f32 %v1376, %v136
    %1379 = vrot.lane.b32.xlu0 %v1377, 88
    %v1380 = vpop.permute.xlu0 %1379
    %v1381 = vrot.slane %v1380, 2
    %v1382 = vsel %vm361, %v1380, %v1381
    %v1384 = vadd.f32 %v1344, %v1382
    %s1385 = sld [smem:[#allocation9 + $0x69]]
    %v1386 = vstv %s1385
    %v1387 = vmul.f32 %v1386, %v136
    %1389 = vrot.lane.b32.xlu0 %v1387, 88
    %v1390 = vpop.permute.xlu0 %1389
    %v1391 = vrot.slane %v1390, 2
    %v1392 = vsel %vm361, %v1390, %v1391
    %v1394 = vadd.f32 %v1354, %v1392
    %s1395 = sld [smem:[#allocation9 + $0x8d]]
    %v1396 = vstv %s1395
    %v1397 = vmul.f32 %v1396, %v136
    %1399 = vrot.lane.b32.xlu0 %v1397, 88
    %v1400 = vpop.permute.xlu0 %1399
    %v1401 = vrot.slane %v1400, 2
    %v1402 = vsel %vm361, %v1400, %v1401
    %v1404 = vadd.f32 %v1364, %v1402
    %s1405 = sld [smem:[#allocation9 + $0x22]]
    %v1406 = vstv %s1405
    %v1407 = vmul.f32 %v1406, %v136
    %1409 = vrot.lane.b32.xlu0 %v1407, 87
    %v1410 = vpop.permute.xlu0 %1409
    %v1411 = vrot.slane %v1410, 2
    %v1412 = vsel %vm402, %v1410, %v1411
    %v1414 = vadd.f32 %v1374, %v1412
    %s1415 = sld [smem:[#allocation9 + $0x46]]
    %v1416 = vstv %s1415
    %v1417 = vmul.f32 %v1416, %v136
    %1419 = vrot.lane.b32.xlu0 %v1417, 87
    %v1420 = vpop.permute.xlu0 %1419
    %v1421 = vrot.slane %v1420, 2
    %v1422 = vsel %vm402, %v1420, %v1421
    %v1424 = vadd.f32 %v1384, %v1422
    %s1425 = sld [smem:[#allocation9 + $0x6a]]
    %v1426 = vstv %s1425
    %v1427 = vmul.f32 %v1426, %v136
    %1429 = vrot.lane.b32.xlu0 %v1427, 87
    %v1430 = vpop.permute.xlu0 %1429
    %v1431 = vrot.slane %v1430, 2
    %v1432 = vsel %vm402, %v1430, %v1431
    %v1434 = vadd.f32 %v1394, %v1432
    %s1435 = sld [smem:[#allocation9 + $0x8e]]
    %v1436 = vstv %s1435
    %v1437 = vmul.f32 %v1436, %v136
    %1439 = vrot.lane.b32.xlu0 %v1437, 87
    %v1440 = vpop.permute.xlu0 %1439
    %v1441 = vrot.slane %v1440, 2
    %v1442 = vsel %vm402, %v1440, %v1441
    %v1444 = vadd.f32 %v1404, %v1442
    %s1445 = sld [smem:[#allocation9 + $0x23]]
    %v1446 = vstv %s1445
    %v1447 = vmul.f32 %v1446, %v136
    %1449 = vrot.lane.b32.xlu0 %v1447, 86
    %v1450 = vpop.permute.xlu0 %1449
    %v1451 = vrot.slane %v1450, 2
    %v1452 = vsel %vm443, %v1450, %v1451
    %v1454 = vadd.f32 %v1414, %v1452
    %s1455 = sld [smem:[#allocation9 + $0x47]]
    %v1456 = vstv %s1455
    %v1457 = vmul.f32 %v1456, %v136
    %1459 = vrot.lane.b32.xlu0 %v1457, 86
    %v1460 = vpop.permute.xlu0 %1459
    %v1461 = vrot.slane %v1460, 2
    %v1462 = vsel %vm443, %v1460, %v1461
    %v1464 = vadd.f32 %v1424, %v1462
    %s1465 = sld [smem:[#allocation9 + $0x6b]]
    %v1466 = vstv %s1465
    %v1467 = vmul.f32 %v1466, %v136
    %1469 = vrot.lane.b32.xlu0 %v1467, 86
    %v1470 = vpop.permute.xlu0 %1469
    %v1471 = vrot.slane %v1470, 2
    %v1472 = vsel %vm443, %v1470, %v1471
    %v1474 = vadd.f32 %v1434, %v1472
    %s1475 = sld [smem:[#allocation9 + $0x8f]]
    %v1476 = vstv %s1475
    %v1477 = vmul.f32 %v1476, %v136
    %1479 = vrot.lane.b32.xlu0 %v1477, 86
    %v1480 = vpop.permute.xlu0 %1479
    %v1481 = vrot.slane %v1480, 2
    %v1482 = vsel %vm443, %v1480, %v1481
    %v1484 = vadd.f32 %v1444, %v1482
    %s1485 = sld [smem:[#allocation10]]
    %v1486 = vstv %s1485
    %v1487 = vadd.f32 %v1454, %v1486
    %s1488 = sld [smem:[#allocation10 + $0x1]]
    %v1489 = vstv %s1488
    %v1490 = vadd.f32 %v1464, %v1489
    %s1491 = sld [smem:[#allocation10 + $0x2]]
    %v1492 = vstv %s1491
    %v1493 = vadd.f32 %v1474, %v1492
    %s1494 = sld [smem:[#allocation10 + $0x3]]
    %v1495 = vstv %s1494
    %v1496 = vadd.f32 %v1484, %v1495
    %v1497 = vld [vmem:[%s2] sm:$0x7]
    %v1499 = vlaneseq
    %v1500 = vshrl.u32 %v1499, 7
    %v1501 = vsub.s32 0, %v1500
    %v1502 = vrot.slane %v1497, %v1501
    %v1503 = vlaneseq
    %v1504 = vshrl.u32 %v1503, 7
    %v1505 = vsub.s32 1, %v1504
    %v1506 = vrot.slane %v1497, %v1505
    %v1507 = vlaneseq
    %v1508 = vshrl.u32 %v1507, 7
    %v1509 = vsub.s32 2, %v1508
    %v1510 = vrot.slane %v1497, %v1509
    %v1511 = vcombine.low %v1502, %v1506
    %v1513 = vunpack.c.l.s4 1983009808
    %v1514 = vunpack.c.0.s8 %v1513
    %v1515 = vlaneseq
    %v1516 = vshrl.u32 %v1515, 7
    %v1517 = vsub.s32 %v1514, %v1516
    %v1518 = vrot.slane %v1511, %v1517
    %v1520 = vunpack.c.l.s4 1983009808
    %v1521 = vunpack.c.0.s8 %v1520
    %v1522 = vlaneseq
    %v1523 = vshrl.u32 %v1522, 7
    %v1524 = vsub.s32 %v1521, %v1523
    %v1525 = vrot.slane %v1510, %v1524
    %v1526 = vcombine.low %v1518, %v1525
    %v1528 = vmul.f32 %v1487, %v1526
    %v1529 = vmul.f32 %v1490, %v1526
    %v1530 = vmul.f32 %v1493, %v1526
    %v1531 = vmul.f32 %v1496, %v1526
    %v1533 = vcombine.high %v1528, %v1528
    %v1535 = vunpack.c.l.s4 1983009808
    %v1536 = vunpack.c.0.s8 %v1535
    %v1537 = vlaneseq
    %v1538 = vshrl.u32 %v1537, 7
    %v1539 = vsub.s32 %v1536, %v1538
    %v1540 = vrot.slane %v1528, %v1539
    %v1542 = vunpack.c.l.s4 1983009808
    %v1543 = vunpack.c.0.s8 %v1542
    %v1544 = vlaneseq
    %v1545 = vshrl.u32 %v1544, 7
    %v1546 = vsub.s32 %v1543, %v1545
    %v1547 = vrot.slane %v1533, %v1546
    %v1548 = vcombine.high %v1540, %v1540
    %vm1552 = vcmask 1041408
    %v1553 = vsel %vm1552, %v1540, 0.0
    %v1554 = vsel %vm1552, %v1548, 0.0
    %v1555 = vadd.f32 %v1553, %v1554
    %vm1556 = vcmask 861184
    %v1557 = vsel %vm1556, %v1547, 0.0
    %v1558 = vadd.f32 %v1555, %v1557
    %1559 = vadd.xlane.f32.xlu0 %v1558
    %v1560 = vpop.xlane.xlu0 %1559
    %v1561 = vmul.f32 %v1560, 0.00390625
    %v1563 = vcombine.high %v1529, %v1529
    %v1565 = vunpack.c.l.s4 1983009808
    %v1566 = vunpack.c.0.s8 %v1565
    %v1567 = vlaneseq
    %v1568 = vshrl.u32 %v1567, 7
    %v1569 = vsub.s32 %v1566, %v1568
    %v1570 = vrot.slane %v1529, %v1569
    %v1572 = vunpack.c.l.s4 1983009808
    %v1573 = vunpack.c.0.s8 %v1572
    %v1574 = vlaneseq
    %v1575 = vshrl.u32 %v1574, 7
    %v1576 = vsub.s32 %v1573, %v1575
    %v1577 = vrot.slane %v1563, %v1576
    %v1578 = vcombine.high %v1570, %v1570
    %v1582 = vsel %vm1552, %v1570, 0.0
    %v1583 = vsel %vm1552, %v1578, 0.0
    %v1584 = vadd.f32 %v1582, %v1583
    %v1585 = vsel %vm1556, %v1577, 0.0
    %v1586 = vadd.f32 %v1584, %v1585
    %1587 = vadd.xlane.f32.xlu0 %v1586
    %v1588 = vpop.xlane.xlu0 %1587
    %v1589 = vmul.f32 %v1588, 0.00390625
    %v1591 = vcombine.high %v1530, %v1530
    %v1593 = vunpack.c.l.s4 1983009808
    %v1594 = vunpack.c.0.s8 %v1593
    %v1595 = vlaneseq
    %v1596 = vshrl.u32 %v1595, 7
    %v1597 = vsub.s32 %v1594, %v1596
    %v1598 = vrot.slane %v1530, %v1597
    %v1600 = vunpack.c.l.s4 1983009808
    %v1601 = vunpack.c.0.s8 %v1600
    %v1602 = vlaneseq
    %v1603 = vshrl.u32 %v1602, 7
    %v1604 = vsub.s32 %v1601, %v1603
    %v1605 = vrot.slane %v1591, %v1604
    %v1606 = vcombine.high %v1598, %v1598
    %v1610 = vsel %vm1552, %v1598, 0.0
    %v1611 = vsel %vm1552, %v1606, 0.0
    %v1612 = vadd.f32 %v1610, %v1611
    %v1613 = vsel %vm1556, %v1605, 0.0
    %v1614 = vadd.f32 %v1612, %v1613
    %1615 = vadd.xlane.f32.xlu0 %v1614
    %v1616 = vpop.xlane.xlu0 %1615
    %v1617 = vmul.f32 %v1616, 0.00390625
    %v1619 = vcombine.high %v1531, %v1531
    %v1621 = vunpack.c.l.s4 1983009808
    %v1622 = vunpack.c.0.s8 %v1621
    %v1623 = vlaneseq
    %v1624 = vshrl.u32 %v1623, 7
    %v1625 = vsub.s32 %v1622, %v1624
    %v1626 = vrot.slane %v1531, %v1625
    %v1628 = vunpack.c.l.s4 1983009808
    %v1629 = vunpack.c.0.s8 %v1628
    %v1630 = vlaneseq
    %v1631 = vshrl.u32 %v1630, 7
    %v1632 = vsub.s32 %v1629, %v1631
    %v1633 = vrot.slane %v1619, %v1632
    %v1634 = vcombine.high %v1626, %v1626
    %v1638 = vsel %vm1552, %v1626, 0.0
    %v1639 = vsel %vm1552, %v1634, 0.0
    %v1640 = vadd.f32 %v1638, %v1639
    %v1641 = vsel %vm1556, %v1633, 0.0
    %v1642 = vadd.f32 %v1640, %v1641
    %1643 = vadd.xlane.f32.xlu0 %v1642
    %v1644 = vpop.xlane.xlu0 %1643
    %v1645 = vmul.f32 %v1644, 0.00390625
    %s1646 = sld [smem:[#allocation11]]
    %v1647 = vstv %s1646
    %v1648 = vmul.f32 %v1647, %v1528
    %s1649 = sld [smem:[#allocation11 + $0x24]]
    %v1650 = vstv %s1649
    %v1651 = vmul.f32 %v1650, %v1528
    %s1652 = sld [smem:[#allocation11 + $0x48]]
    %v1653 = vstv %s1652
    %v1654 = vmul.f32 %v1653, %v1528
    %s1655 = sld [smem:[#allocation11 + $0x6c]]
    %v1656 = vstv %s1655
    %v1657 = vmul.f32 %v1656, %v1528
    %s1658 = sld [smem:[#allocation11 + $0x1]]
    %v1659 = vstv %s1658
    %v1660 = vmul.f32 %v1659, %v1528
    %1662 = vrot.lane.b32.xlu0 %v1660, 127
    %v1663 = vpop.permute.xlu0 %1662
    %v1664 = vrot.slane %v1663, 2
    %v1665 = vsel %vm156, %v1663, %v1664
    %v1667 = vadd.f32 %v1648, %v1665
    %s1668 = sld [smem:[#allocation11 + $0x25]]
    %v1669 = vstv %s1668
    %v1670 = vmul.f32 %v1669, %v1528
    %1672 = vrot.lane.b32.xlu0 %v1670, 127
    %v1673 = vpop.permute.xlu0 %1672
    %v1674 = vrot.slane %v1673, 2
    %v1675 = vsel %vm156, %v1673, %v1674
    %v1677 = vadd.f32 %v1651, %v1675
    %s1678 = sld [smem:[#allocation11 + $0x49]]
    %v1679 = vstv %s1678
    %v1680 = vmul.f32 %v1679, %v1528
    %1682 = vrot.lane.b32.xlu0 %v1680, 127
    %v1683 = vpop.permute.xlu0 %1682
    %v1684 = vrot.slane %v1683, 2
    %v1685 = vsel %vm156, %v1683, %v1684
    %v1687 = vadd.f32 %v1654, %v1685
    %s1688 = sld [smem:[#allocation11 + $0x6d]]
    %v1689 = vstv %s1688
    %v1690 = vmul.f32 %v1689, %v1528
    %1692 = vrot.lane.b32.xlu0 %v1690, 127
    %v1693 = vpop.permute.xlu0 %1692
    %v1694 = vrot.slane %v1693, 2
    %v1695 = vsel %vm156, %v1693, %v1694
    %v1697 = vadd.f32 %v1657, %v1695
    %s1698 = sld [smem:[#allocation11 + $0x2]]
    %v1699 = vstv %s1698
    %v1700 = vmul.f32 %v1699, %v1528
    %1702 = vrot.lane.b32.xlu0 %v1700, 126
    %v1703 = vpop.permute.xlu0 %1702
    %v1704 = vrot.slane %v1703, 2
    %v1705 = vsel %vm197, %v1703, %v1704
    %v1707 = vadd.f32 %v1667, %v1705
    %s1708 = sld [smem:[#allocation11 + $0x26]]
    %v1709 = vstv %s1708
    %v1710 = vmul.f32 %v1709, %v1528
    %1712 = vrot.lane.b32.xlu0 %v1710, 126
    %v1713 = vpop.permute.xlu0 %1712
    %v1714 = vrot.slane %v1713, 2
    %v1715 = vsel %vm197, %v1713, %v1714
    %v1717 = vadd.f32 %v1677, %v1715
    %s1718 = sld [smem:[#allocation11 + $0x4a]]
    %v1719 = vstv %s1718
    %v1720 = vmul.f32 %v1719, %v1528
    %1722 = vrot.lane.b32.xlu0 %v1720, 126
    %v1723 = vpop.permute.xlu0 %1722
    %v1724 = vrot.slane %v1723, 2
    %v1725 = vsel %vm197, %v1723, %v1724
    %v1727 = vadd.f32 %v1687, %v1725
    %s1728 = sld [smem:[#allocation11 + $0x6e]]
    %v1729 = vstv %s1728
    %v1730 = vmul.f32 %v1729, %v1528
    %1732 = vrot.lane.b32.xlu0 %v1730, 126
    %v1733 = vpop.permute.xlu0 %1732
    %v1734 = vrot.slane %v1733, 2
    %v1735 = vsel %vm197, %v1733, %v1734
    %v1737 = vadd.f32 %v1697, %v1735
    %s1738 = sld [smem:[#allocation11 + $0x3]]
    %v1739 = vstv %s1738
    %v1740 = vmul.f32 %v1739, %v1528
    %1742 = vrot.lane.b32.xlu0 %v1740, 108
    %v1743 = vpop.permute.xlu0 %1742
    %v1744 = vrot.slane %v1743, 2
    %v1745 = vsel %vm238, %v1743, %v1744
    %v1747 = vadd.f32 %v1707, %v1745
    %s1748 = sld [smem:[#allocation11 + $0x27]]
    %v1749 = vstv %s1748
    %v1750 = vmul.f32 %v1749, %v1528
    %1752 = vrot.lane.b32.xlu0 %v1750, 108
    %v1753 = vpop.permute.xlu0 %1752
    %v1754 = vrot.slane %v1753, 2
    %v1755 = vsel %vm238, %v1753, %v1754
    %v1757 = vadd.f32 %v1717, %v1755
    %s1758 = sld [smem:[#allocation11 + $0x4b]]
    %v1759 = vstv %s1758
    %v1760 = vmul.f32 %v1759, %v1528
    %1762 = vrot.lane.b32.xlu0 %v1760, 108
    %v1763 = vpop.permute.xlu0 %1762
    %v1764 = vrot.slane %v1763, 2
    %v1765 = vsel %vm238, %v1763, %v1764
    %v1767 = vadd.f32 %v1727, %v1765
    %s1768 = sld [smem:[#allocation11 + $0x6f]]
    %v1769 = vstv %s1768
    %v1770 = vmul.f32 %v1769, %v1528
    %1772 = vrot.lane.b32.xlu0 %v1770, 108
    %v1773 = vpop.permute.xlu0 %1772
    %v1774 = vrot.slane %v1773, 2
    %v1775 = vsel %vm238, %v1773, %v1774
    %v1777 = vadd.f32 %v1737, %v1775
    %s1778 = sld [smem:[#allocation11 + $0x4]]
    %v1779 = vstv %s1778
    %v1780 = vmul.f32 %v1779, %v1528
    %1782 = vrot.lane.b32.xlu0 %v1780, 107
    %v1783 = vpop.permute.xlu0 %1782
    %v1784 = vrot.slane %v1783, 2
    %v1785 = vsel %vm279, %v1783, %v1784
    %v1787 = vadd.f32 %v1747, %v1785
    %s1788 = sld [smem:[#allocation11 + $0x28]]
    %v1789 = vstv %s1788
    %v1790 = vmul.f32 %v1789, %v1528
    %1792 = vrot.lane.b32.xlu0 %v1790, 107
    %v1793 = vpop.permute.xlu0 %1792
    %v1794 = vrot.slane %v1793, 2
    %v1795 = vsel %vm279, %v1793, %v1794
    %v1797 = vadd.f32 %v1757, %v1795
    %s1798 = sld [smem:[#allocation11 + $0x4c]]
    %v1799 = vstv %s1798
    %v1800 = vmul.f32 %v1799, %v1528
    %1802 = vrot.lane.b32.xlu0 %v1800, 107
    %v1803 = vpop.permute.xlu0 %1802
    %v1804 = vrot.slane %v1803, 2
    %v1805 = vsel %vm279, %v1803, %v1804
    %v1807 = vadd.f32 %v1767, %v1805
    %s1808 = sld [smem:[#allocation11 + $0x70]]
    %v1809 = vstv %s1808
    %v1810 = vmul.f32 %v1809, %v1528
    %1812 = vrot.lane.b32.xlu0 %v1810, 107
    %v1813 = vpop.permute.xlu0 %1812
    %v1814 = vrot.slane %v1813, 2
    %v1815 = vsel %vm279, %v1813, %v1814
    %v1817 = vadd.f32 %v1777, %v1815
    %s1818 = sld [smem:[#allocation11 + $0x5]]
    %v1819 = vstv %s1818
    %v1820 = vmul.f32 %v1819, %v1528
    %1822 = vrot.lane.b32.xlu0 %v1820, 106
    %v1823 = vpop.permute.xlu0 %1822
    %v1824 = vrot.slane %v1823, 2
    %v1825 = vsel %vm320, %v1823, %v1824
    %v1827 = vadd.f32 %v1787, %v1825
    %s1828 = sld [smem:[#allocation11 + $0x29]]
    %v1829 = vstv %s1828
    %v1830 = vmul.f32 %v1829, %v1528
    %1832 = vrot.lane.b32.xlu0 %v1830, 106
    %v1833 = vpop.permute.xlu0 %1832
    %v1834 = vrot.slane %v1833, 2
    %v1835 = vsel %vm320, %v1833, %v1834
    %v1837 = vadd.f32 %v1797, %v1835
    %s1838 = sld [smem:[#allocation11 + $0x4d]]
    %v1839 = vstv %s1838
    %v1840 = vmul.f32 %v1839, %v1528
    %1842 = vrot.lane.b32.xlu0 %v1840, 106
    %v1843 = vpop.permute.xlu0 %1842
    %v1844 = vrot.slane %v1843, 2
    %v1845 = vsel %vm320, %v1843, %v1844
    %v1847 = vadd.f32 %v1807, %v1845
    %s1848 = sld [smem:[#allocation11 + $0x71]]
    %v1849 = vstv %s1848
    %v1850 = vmul.f32 %v1849, %v1528
    %1852 = vrot.lane.b32.xlu0 %v1850, 106
    %v1853 = vpop.permute.xlu0 %1852
    %v1854 = vrot.slane %v1853, 2
    %v1855 = vsel %vm320, %v1853, %v1854
    %v1857 = vadd.f32 %v1817, %v1855
    %s1858 = sld [smem:[#allocation11 + $0x6]]
    %v1859 = vstv %s1858
    %v1860 = vmul.f32 %v1859, %v1528
    %1862 = vrot.lane.b32.xlu0 %v1860, 88
    %v1863 = vpop.permute.xlu0 %1862
    %v1864 = vrot.slane %v1863, 2
    %v1865 = vsel %vm361, %v1863, %v1864
    %v1867 = vadd.f32 %v1827, %v1865
    %s1868 = sld [smem:[#allocation11 + $0x2a]]
    %v1869 = vstv %s1868
    %v1870 = vmul.f32 %v1869, %v1528
    %1872 = vrot.lane.b32.xlu0 %v1870, 88
    %v1873 = vpop.permute.xlu0 %1872
    %v1874 = vrot.slane %v1873, 2
    %v1875 = vsel %vm361, %v1873, %v1874
    %v1877 = vadd.f32 %v1837, %v1875
    %s1878 = sld [smem:[#allocation11 + $0x4e]]
    %v1879 = vstv %s1878
    %v1880 = vmul.f32 %v1879, %v1528
    %1882 = vrot.lane.b32.xlu0 %v1880, 88
    %v1883 = vpop.permute.xlu0 %1882
    %v1884 = vrot.slane %v1883, 2
    %v1885 = vsel %vm361, %v1883, %v1884
    %v1887 = vadd.f32 %v1847, %v1885
    %s1888 = sld [smem:[#allocation11 + $0x72]]
    %v1889 = vstv %s1888
    %v1890 = vmul.f32 %v1889, %v1528
    %1892 = vrot.lane.b32.xlu0 %v1890, 88
    %v1893 = vpop.permute.xlu0 %1892
    %v1894 = vrot.slane %v1893, 2
    %v1895 = vsel %vm361, %v1893, %v1894
    %v1897 = vadd.f32 %v1857, %v1895
    %s1898 = sld [smem:[#allocation11 + $0x7]]
    %v1899 = vstv %s1898
    %v1900 = vmul.f32 %v1899, %v1528
    %1902 = vrot.lane.b32.xlu0 %v1900, 87
    %v1903 = vpop.permute.xlu0 %1902
    %v1904 = vrot.slane %v1903, 2
    %v1905 = vsel %vm402, %v1903, %v1904
    %v1907 = vadd.f32 %v1867, %v1905
    %s1908 = sld [smem:[#allocation11 + $0x2b]]
    %v1909 = vstv %s1908
    %v1910 = vmul.f32 %v1909, %v1528
    %1912 = vrot.lane.b32.xlu0 %v1910, 87
    %v1913 = vpop.permute.xlu0 %1912
    %v1914 = vrot.slane %v1913, 2
    %v1915 = vsel %vm402, %v1913, %v1914
    %v1917 = vadd.f32 %v1877, %v1915
    %s1918 = sld [smem:[#allocation11 + $0x4f]]
    %v1919 = vstv %s1918
    %v1920 = vmul.f32 %v1919, %v1528
    %1922 = vrot.lane.b32.xlu0 %v1920, 87
    %v1923 = vpop.permute.xlu0 %1922
    %v1924 = vrot.slane %v1923, 2
    %v1925 = vsel %vm402, %v1923, %v1924
    %v1927 = vadd.f32 %v1887, %v1925
    %s1928 = sld [smem:[#allocation11 + $0x73]]
    %v1929 = vstv %s1928
    %v1930 = vmul.f32 %v1929, %v1528
    %1932 = vrot.lane.b32.xlu0 %v1930, 87
    %v1933 = vpop.permute.xlu0 %1932
    %v1934 = vrot.slane %v1933, 2
    %v1935 = vsel %vm402, %v1933, %v1934
    %v1937 = vadd.f32 %v1897, %v1935
    %s1938 = sld [smem:[#allocation11 + $0x8]]
    %v1939 = vstv %s1938
    %v1940 = vmul.f32 %v1939, %v1528
    %1942 = vrot.lane.b32.xlu0 %v1940, 86
    %v1943 = vpop.permute.xlu0 %1942
    %v1944 = vrot.slane %v1943, 2
    %v1945 = vsel %vm443, %v1943, %v1944
    %v1947 = vadd.f32 %v1907, %v1945
    %s1948 = sld [smem:[#allocation11 + $0x2c]]
    %v1949 = vstv %s1948
    %v1950 = vmul.f32 %v1949, %v1528
    %1952 = vrot.lane.b32.xlu0 %v1950, 86
    %v1953 = vpop.permute.xlu0 %1952
    %v1954 = vrot.slane %v1953, 2
    %v1955 = vsel %vm443, %v1953, %v1954
    %v1957 = vadd.f32 %v1917, %v1955
    %s1958 = sld [smem:[#allocation11 + $0x50]]
    %v1959 = vstv %s1958
    %v1960 = vmul.f32 %v1959, %v1528
    %1962 = vrot.lane.b32.xlu0 %v1960, 86
    %v1963 = vpop.permute.xlu0 %1962
    %v1964 = vrot.slane %v1963, 2
    %v1965 = vsel %vm443, %v1963, %v1964
    %v1967 = vadd.f32 %v1927, %v1965
    %s1968 = sld [smem:[#allocation11 + $0x74]]
    %v1969 = vstv %s1968
    %v1970 = vmul.f32 %v1969, %v1528
    %1972 = vrot.lane.b32.xlu0 %v1970, 86
    %v1973 = vpop.permute.xlu0 %1972
    %v1974 = vrot.slane %v1973, 2
    %v1975 = vsel %vm443, %v1973, %v1974
    %v1977 = vadd.f32 %v1937, %v1975
    %s1978 = sld [smem:[#allocation11 + $0x9]]
    %v1979 = vstv %s1978
    %v1980 = vmul.f32 %v1979, %v1529
    %v1981 = vadd.f32 %v1947, %v1980
    %s1982 = sld [smem:[#allocation11 + $0x2d]]
    %v1983 = vstv %s1982
    %v1984 = vmul.f32 %v1983, %v1529
    %v1985 = vadd.f32 %v1957, %v1984
    %s1986 = sld [smem:[#allocation11 + $0x51]]
    %v1987 = vstv %s1986
    %v1988 = vmul.f32 %v1987, %v1529
    %v1989 = vadd.f32 %v1967, %v1988
    %s1990 = sld [smem:[#allocation11 + $0x75]]
    %v1991 = vstv %s1990
    %v1992 = vmul.f32 %v1991, %v1529
    %v1993 = vadd.f32 %v1977, %v1992
    %s1994 = sld [smem:[#allocation11 + $0xa]]
    %v1995 = vstv %s1994
    %v1996 = vmul.f32 %v1995, %v1529
    %1998 = vrot.lane.b32.xlu0 %v1996, 127
    %v1999 = vpop.permute.xlu0 %1998
    %v2000 = vrot.slane %v1999, 2
    %v2001 = vsel %vm156, %v1999, %v2000
    %v2003 = vadd.f32 %v1981, %v2001
    %s2004 = sld [smem:[#allocation11 + $0x2e]]
    %v2005 = vstv %s2004
    %v2006 = vmul.f32 %v2005, %v1529
    %2008 = vrot.lane.b32.xlu0 %v2006, 127
    %v2009 = vpop.permute.xlu0 %2008
    %v2010 = vrot.slane %v2009, 2
    %v2011 = vsel %vm156, %v2009, %v2010
    %v2013 = vadd.f32 %v1985, %v2011
    %s2014 = sld [smem:[#allocation11 + $0x52]]
    %v2015 = vstv %s2014
    %v2016 = vmul.f32 %v2015, %v1529
    %2018 = vrot.lane.b32.xlu0 %v2016, 127
    %v2019 = vpop.permute.xlu0 %2018
    %v2020 = vrot.slane %v2019, 2
    %v2021 = vsel %vm156, %v2019, %v2020
    %v2023 = vadd.f32 %v1989, %v2021
    %s2024 = sld [smem:[#allocation11 + $0x76]]
    %v2025 = vstv %s2024
    %v2026 = vmul.f32 %v2025, %v1529
    %2028 = vrot.lane.b32.xlu0 %v2026, 127
    %v2029 = vpop.permute.xlu0 %2028
    %v2030 = vrot.slane %v2029, 2
    %v2031 = vsel %vm156, %v2029, %v2030
    %v2033 = vadd.f32 %v1993, %v2031
    %s2034 = sld [smem:[#allocation11 + $0xb]]
    %v2035 = vstv %s2034
    %v2036 = vmul.f32 %v2035, %v1529
    %2038 = vrot.lane.b32.xlu0 %v2036, 126
    %v2039 = vpop.permute.xlu0 %2038
    %v2040 = vrot.slane %v2039, 2
    %v2041 = vsel %vm197, %v2039, %v2040
    %v2043 = vadd.f32 %v2003, %v2041
    %s2044 = sld [smem:[#allocation11 + $0x2f]]
    %v2045 = vstv %s2044
    %v2046 = vmul.f32 %v2045, %v1529
    %2048 = vrot.lane.b32.xlu0 %v2046, 126
    %v2049 = vpop.permute.xlu0 %2048
    %v2050 = vrot.slane %v2049, 2
    %v2051 = vsel %vm197, %v2049, %v2050
    %v2053 = vadd.f32 %v2013, %v2051
    %s2054 = sld [smem:[#allocation11 + $0x53]]
    %v2055 = vstv %s2054
    %v2056 = vmul.f32 %v2055, %v1529
    %2058 = vrot.lane.b32.xlu0 %v2056, 126
    %v2059 = vpop.permute.xlu0 %2058
    %v2060 = vrot.slane %v2059, 2
    %v2061 = vsel %vm197, %v2059, %v2060
    %v2063 = vadd.f32 %v2023, %v2061
    %s2064 = sld [smem:[#allocation11 + $0x77]]
    %v2065 = vstv %s2064
    %v2066 = vmul.f32 %v2065, %v1529
    %2068 = vrot.lane.b32.xlu0 %v2066, 126
    %v2069 = vpop.permute.xlu0 %2068
    %v2070 = vrot.slane %v2069, 2
    %v2071 = vsel %vm197, %v2069, %v2070
    %v2073 = vadd.f32 %v2033, %v2071
    %s2074 = sld [smem:[#allocation11 + $0xc]]
    %v2075 = vstv %s2074
    %v2076 = vmul.f32 %v2075, %v1529
    %2078 = vrot.lane.b32.xlu0 %v2076, 108
    %v2079 = vpop.permute.xlu0 %2078
    %v2080 = vrot.slane %v2079, 2
    %v2081 = vsel %vm238, %v2079, %v2080
    %v2083 = vadd.f32 %v2043, %v2081
    %s2084 = sld [smem:[#allocation11 + $0x30]]
    %v2085 = vstv %s2084
    %v2086 = vmul.f32 %v2085, %v1529
    %2088 = vrot.lane.b32.xlu0 %v2086, 108
    %v2089 = vpop.permute.xlu0 %2088
    %v2090 = vrot.slane %v2089, 2
    %v2091 = vsel %vm238, %v2089, %v2090
    %v2093 = vadd.f32 %v2053, %v2091
    %s2094 = sld [smem:[#allocation11 + $0x54]]
    %v2095 = vstv %s2094
    %v2096 = vmul.f32 %v2095, %v1529
    %2098 = vrot.lane.b32.xlu0 %v2096, 108
    %v2099 = vpop.permute.xlu0 %2098
    %v2100 = vrot.slane %v2099, 2
    %v2101 = vsel %vm238, %v2099, %v2100
    %v2103 = vadd.f32 %v2063, %v2101
    %s2104 = sld [smem:[#allocation11 + $0x78]]
    %v2105 = vstv %s2104
    %v2106 = vmul.f32 %v2105, %v1529
    %2108 = vrot.lane.b32.xlu0 %v2106, 108
    %v2109 = vpop.permute.xlu0 %2108
    %v2110 = vrot.slane %v2109, 2
    %v2111 = vsel %vm238, %v2109, %v2110
    %v2113 = vadd.f32 %v2073, %v2111
    %s2114 = sld [smem:[#allocation11 + $0xd]]
    %v2115 = vstv %s2114
    %v2116 = vmul.f32 %v2115, %v1529
    %2118 = vrot.lane.b32.xlu0 %v2116, 107
    %v2119 = vpop.permute.xlu0 %2118
    %v2120 = vrot.slane %v2119, 2
    %v2121 = vsel %vm279, %v2119, %v2120
    %v2123 = vadd.f32 %v2083, %v2121
    %s2124 = sld [smem:[#allocation11 + $0x31]]
    %v2125 = vstv %s2124
    %v2126 = vmul.f32 %v2125, %v1529
    %2128 = vrot.lane.b32.xlu0 %v2126, 107
    %v2129 = vpop.permute.xlu0 %2128
    %v2130 = vrot.slane %v2129, 2
    %v2131 = vsel %vm279, %v2129, %v2130
    %v2133 = vadd.f32 %v2093, %v2131
    %s2134 = sld [smem:[#allocation11 + $0x55]]
    %v2135 = vstv %s2134
    %v2136 = vmul.f32 %v2135, %v1529
    %2138 = vrot.lane.b32.xlu0 %v2136, 107
    %v2139 = vpop.permute.xlu0 %2138
    %v2140 = vrot.slane %v2139, 2
    %v2141 = vsel %vm279, %v2139, %v2140
    %v2143 = vadd.f32 %v2103, %v2141
    %s2144 = sld [smem:[#allocation11 + $0x79]]
    %v2145 = vstv %s2144
    %v2146 = vmul.f32 %v2145, %v1529
    %2148 = vrot.lane.b32.xlu0 %v2146, 107
    %v2149 = vpop.permute.xlu0 %2148
    %v2150 = vrot.slane %v2149, 2
    %v2151 = vsel %vm279, %v2149, %v2150
    %v2153 = vadd.f32 %v2113, %v2151
    %s2154 = sld [smem:[#allocation11 + $0xe]]
    %v2155 = vstv %s2154
    %v2156 = vmul.f32 %v2155, %v1529
    %2158 = vrot.lane.b32.xlu0 %v2156, 106
    %v2159 = vpop.permute.xlu0 %2158
    %v2160 = vrot.slane %v2159, 2
    %v2161 = vsel %vm320, %v2159, %v2160
    %v2163 = vadd.f32 %v2123, %v2161
    %s2164 = sld [smem:[#allocation11 + $0x32]]
    %v2165 = vstv %s2164
    %v2166 = vmul.f32 %v2165, %v1529
    %2168 = vrot.lane.b32.xlu0 %v2166, 106
    %v2169 = vpop.permute.xlu0 %2168
    %v2170 = vrot.slane %v2169, 2
    %v2171 = vsel %vm320, %v2169, %v2170
    %v2173 = vadd.f32 %v2133, %v2171
    %s2174 = sld [smem:[#allocation11 + $0x56]]
    %v2175 = vstv %s2174
    %v2176 = vmul.f32 %v2175, %v1529
    %2178 = vrot.lane.b32.xlu0 %v2176, 106
    %v2179 = vpop.permute.xlu0 %2178
    %v2180 = vrot.slane %v2179, 2
    %v2181 = vsel %vm320, %v2179, %v2180
    %v2183 = vadd.f32 %v2143, %v2181
    %s2184 = sld [smem:[#allocation11 + $0x7a]]
    %v2185 = vstv %s2184
    %v2186 = vmul.f32 %v2185, %v1529
    %2188 = vrot.lane.b32.xlu0 %v2186, 106
    %v2189 = vpop.permute.xlu0 %2188
    %v2190 = vrot.slane %v2189, 2
    %v2191 = vsel %vm320, %v2189, %v2190
    %v2193 = vadd.f32 %v2153, %v2191
    %s2194 = sld [smem:[#allocation11 + $0xf]]
    %v2195 = vstv %s2194
    %v2196 = vmul.f32 %v2195, %v1529
    %2198 = vrot.lane.b32.xlu0 %v2196, 88
    %v2199 = vpop.permute.xlu0 %2198
    %v2200 = vrot.slane %v2199, 2
    %v2201 = vsel %vm361, %v2199, %v2200
    %v2203 = vadd.f32 %v2163, %v2201
    %s2204 = sld [smem:[#allocation11 + $0x33]]
    %v2205 = vstv %s2204
    %v2206 = vmul.f32 %v2205, %v1529
    %2208 = vrot.lane.b32.xlu0 %v2206, 88
    %v2209 = vpop.permute.xlu0 %2208
    %v2210 = vrot.slane %v2209, 2
    %v2211 = vsel %vm361, %v2209, %v2210
    %v2213 = vadd.f32 %v2173, %v2211
    %s2214 = sld [smem:[#allocation11 + $0x57]]
    %v2215 = vstv %s2214
    %v2216 = vmul.f32 %v2215, %v1529
    %2218 = vrot.lane.b32.xlu0 %v2216, 88
    %v2219 = vpop.permute.xlu0 %2218
    %v2220 = vrot.slane %v2219, 2
    %v2221 = vsel %vm361, %v2219, %v2220
    %v2223 = vadd.f32 %v2183, %v2221
    %s2224 = sld [smem:[#allocation11 + $0x7b]]
    %v2225 = vstv %s2224
    %v2226 = vmul.f32 %v2225, %v1529
    %2228 = vrot.lane.b32.xlu0 %v2226, 88
    %v2229 = vpop.permute.xlu0 %2228
    %v2230 = vrot.slane %v2229, 2
    %v2231 = vsel %vm361, %v2229, %v2230
    %v2233 = vadd.f32 %v2193, %v2231
    %s2234 = sld [smem:[#allocation11 + $0x10]]
    %v2235 = vstv %s2234
    %v2236 = vmul.f32 %v2235, %v1529
    %2238 = vrot.lane.b32.xlu0 %v2236, 87
    %v2239 = vpop.permute.xlu0 %2238
    %v2240 = vrot.slane %v2239, 2
    %v2241 = vsel %vm402, %v2239, %v2240
    %v2243 = vadd.f32 %v2203, %v2241
    %s2244 = sld [smem:[#allocation11 + $0x34]]
    %v2245 = vstv %s2244
    %v2246 = vmul.f32 %v2245, %v1529
    %2248 = vrot.lane.b32.xlu0 %v2246, 87
    %v2249 = vpop.permute.xlu0 %2248
    %v2250 = vrot.slane %v2249, 2
    %v2251 = vsel %vm402, %v2249, %v2250
    %v2253 = vadd.f32 %v2213, %v2251
    %s2254 = sld [smem:[#allocation11 + $0x58]]
    %v2255 = vstv %s2254
    %v2256 = vmul.f32 %v2255, %v1529
    %2258 = vrot.lane.b32.xlu0 %v2256, 87
    %v2259 = vpop.permute.xlu0 %2258
    %v2260 = vrot.slane %v2259, 2
    %v2261 = vsel %vm402, %v2259, %v2260
    %v2263 = vadd.f32 %v2223, %v2261
    %s2264 = sld [smem:[#allocation11 + $0x7c]]
    %v2265 = vstv %s2264
    %v2266 = vmul.f32 %v2265, %v1529
    %2268 = vrot.lane.b32.xlu0 %v2266, 87
    %v2269 = vpop.permute.xlu0 %2268
    %v2270 = vrot.slane %v2269, 2
    %v2271 = vsel %vm402, %v2269, %v2270
    %v2273 = vadd.f32 %v2233, %v2271
    %s2274 = sld [smem:[#allocation11 + $0x11]]
    %v2275 = vstv %s2274
    %v2276 = vmul.f32 %v2275, %v1529
    %2278 = vrot.lane.b32.xlu0 %v2276, 86
    %v2279 = vpop.permute.xlu0 %2278
    %v2280 = vrot.slane %v2279, 2
    %v2281 = vsel %vm443, %v2279, %v2280
    %v2283 = vadd.f32 %v2243, %v2281
    %s2284 = sld [smem:[#allocation11 + $0x35]]
    %v2285 = vstv %s2284
    %v2286 = vmul.f32 %v2285, %v1529
    %2288 = vrot.lane.b32.xlu0 %v2286, 86
    %v2289 = vpop.permute.xlu0 %2288
    %v2290 = vrot.slane %v2289, 2
    %v2291 = vsel %vm443, %v2289, %v2290
    %v2293 = vadd.f32 %v2253, %v2291
    %s2294 = sld [smem:[#allocation11 + $0x59]]
    %v2295 = vstv %s2294
    %v2296 = vmul.f32 %v2295, %v1529
    %2298 = vrot.lane.b32.xlu0 %v2296, 86
    %v2299 = vpop.permute.xlu0 %2298
    %v2300 = vrot.slane %v2299, 2
    %v2301 = vsel %vm443, %v2299, %v2300
    %v2303 = vadd.f32 %v2263, %v2301
    %s2304 = sld [smem:[#allocation11 + $0x7d]]
    %v2305 = vstv %s2304
    %v2306 = vmul.f32 %v2305, %v1529
    %2308 = vrot.lane.b32.xlu0 %v2306, 86
    %v2309 = vpop.permute.xlu0 %2308
    %v2310 = vrot.slane %v2309, 2
    %v2311 = vsel %vm443, %v2309, %v2310
    %v2313 = vadd.f32 %v2273, %v2311
    %s2314 = sld [smem:[#allocation11 + $0x12]]
    %v2315 = vstv %s2314
    %v2316 = vmul.f32 %v2315, %v1530
    %v2317 = vadd.f32 %v2283, %v2316
    %s2318 = sld [smem:[#allocation11 + $0x36]]
    %v2319 = vstv %s2318
    %v2320 = vmul.f32 %v2319, %v1530
    %v2321 = vadd.f32 %v2293, %v2320
    %s2322 = sld [smem:[#allocation11 + $0x5a]]
    %v2323 = vstv %s2322
    %v2324 = vmul.f32 %v2323, %v1530
    %v2325 = vadd.f32 %v2303, %v2324
    %s2326 = sld [smem:[#allocation11 + $0x7e]]
    %v2327 = vstv %s2326
    %v2328 = vmul.f32 %v2327, %v1530
    %v2329 = vadd.f32 %v2313, %v2328
    %s2330 = sld [smem:[#allocation11 + $0x13]]
    %v2331 = vstv %s2330
    %v2332 = vmul.f32 %v2331, %v1530
    %2334 = vrot.lane.b32.xlu0 %v2332, 127
    %v2335 = vpop.permute.xlu0 %2334
    %v2336 = vrot.slane %v2335, 2
    %v2337 = vsel %vm156, %v2335, %v2336
    %v2339 = vadd.f32 %v2317, %v2337
    %s2340 = sld [smem:[#allocation11 + $0x37]]
    %v2341 = vstv %s2340
    %v2342 = vmul.f32 %v2341, %v1530
    %2344 = vrot.lane.b32.xlu0 %v2342, 127
    %v2345 = vpop.permute.xlu0 %2344
    %v2346 = vrot.slane %v2345, 2
    %v2347 = vsel %vm156, %v2345, %v2346
    %v2349 = vadd.f32 %v2321, %v2347
    %s2350 = sld [smem:[#allocation11 + $0x5b]]
    %v2351 = vstv %s2350
    %v2352 = vmul.f32 %v2351, %v1530
    %2354 = vrot.lane.b32.xlu0 %v2352, 127
    %v2355 = vpop.permute.xlu0 %2354
    %v2356 = vrot.slane %v2355, 2
    %v2357 = vsel %vm156, %v2355, %v2356
    %v2359 = vadd.f32 %v2325, %v2357
    %s2360 = sld [smem:[#allocation11 + $0x7f]]
    %v2361 = vstv %s2360
    %v2362 = vmul.f32 %v2361, %v1530
    %2364 = vrot.lane.b32.xlu0 %v2362, 127
    %v2365 = vpop.permute.xlu0 %2364
    %v2366 = vrot.slane %v2365, 2
    %v2367 = vsel %vm156, %v2365, %v2366
    %v2369 = vadd.f32 %v2329, %v2367
    %s2370 = sld [smem:[#allocation11 + $0x14]]
    %v2371 = vstv %s2370
    %v2372 = vmul.f32 %v2371, %v1530
    %2374 = vrot.lane.b32.xlu0 %v2372, 126
    %v2375 = vpop.permute.xlu0 %2374
    %v2376 = vrot.slane %v2375, 2
    %v2377 = vsel %vm197, %v2375, %v2376
    %v2379 = vadd.f32 %v2339, %v2377
    %s2380 = sld [smem:[#allocation11 + $0x38]]
    %v2381 = vstv %s2380
    %v2382 = vmul.f32 %v2381, %v1530
    %2384 = vrot.lane.b32.xlu0 %v2382, 126
    %v2385 = vpop.permute.xlu0 %2384
    %v2386 = vrot.slane %v2385, 2
    %v2387 = vsel %vm197, %v2385, %v2386
    %v2389 = vadd.f32 %v2349, %v2387
    %s2390 = sld [smem:[#allocation11 + $0x5c]]
    %v2391 = vstv %s2390
    %v2392 = vmul.f32 %v2391, %v1530
    %2394 = vrot.lane.b32.xlu0 %v2392, 126
    %v2395 = vpop.permute.xlu0 %2394
    %v2396 = vrot.slane %v2395, 2
    %v2397 = vsel %vm197, %v2395, %v2396
    %v2399 = vadd.f32 %v2359, %v2397
    %s2400 = sld [smem:[#allocation11 + $0x80]]
    %v2401 = vstv %s2400
    %v2402 = vmul.f32 %v2401, %v1530
    %2404 = vrot.lane.b32.xlu0 %v2402, 126
    %v2405 = vpop.permute.xlu0 %2404
    %v2406 = vrot.slane %v2405, 2
    %v2407 = vsel %vm197, %v2405, %v2406
    %v2409 = vadd.f32 %v2369, %v2407
    %s2410 = sld [smem:[#allocation11 + $0x15]]
    %v2411 = vstv %s2410
    %v2412 = vmul.f32 %v2411, %v1530
    %2414 = vrot.lane.b32.xlu0 %v2412, 108
    %v2415 = vpop.permute.xlu0 %2414
    %v2416 = vrot.slane %v2415, 2
    %v2417 = vsel %vm238, %v2415, %v2416
    %v2419 = vadd.f32 %v2379, %v2417
    %s2420 = sld [smem:[#allocation11 + $0x39]]
    %v2421 = vstv %s2420
    %v2422 = vmul.f32 %v2421, %v1530
    %2424 = vrot.lane.b32.xlu0 %v2422, 108
    %v2425 = vpop.permute.xlu0 %2424
    %v2426 = vrot.slane %v2425, 2
    %v2427 = vsel %vm238, %v2425, %v2426
    %v2429 = vadd.f32 %v2389, %v2427
    %s2430 = sld [smem:[#allocation11 + $0x5d]]
    %v2431 = vstv %s2430
    %v2432 = vmul.f32 %v2431, %v1530
    %2434 = vrot.lane.b32.xlu0 %v2432, 108
    %v2435 = vpop.permute.xlu0 %2434
    %v2436 = vrot.slane %v2435, 2
    %v2437 = vsel %vm238, %v2435, %v2436
    %v2439 = vadd.f32 %v2399, %v2437
    %s2440 = sld [smem:[#allocation11 + $0x81]]
    %v2441 = vstv %s2440
    %v2442 = vmul.f32 %v2441, %v1530
    %2444 = vrot.lane.b32.xlu0 %v2442, 108
    %v2445 = vpop.permute.xlu0 %2444
    %v2446 = vrot.slane %v2445, 2
    %v2447 = vsel %vm238, %v2445, %v2446
    %v2449 = vadd.f32 %v2409, %v2447
    %s2450 = sld [smem:[#allocation11 + $0x16]]
    %v2451 = vstv %s2450
    %v2452 = vmul.f32 %v2451, %v1530
    %2454 = vrot.lane.b32.xlu0 %v2452, 107
    %v2455 = vpop.permute.xlu0 %2454
    %v2456 = vrot.slane %v2455, 2
    %v2457 = vsel %vm279, %v2455, %v2456
    %v2459 = vadd.f32 %v2419, %v2457
    %s2460 = sld [smem:[#allocation11 + $0x3a]]
    %v2461 = vstv %s2460
    %v2462 = vmul.f32 %v2461, %v1530
    %2464 = vrot.lane.b32.xlu0 %v2462, 107
    %v2465 = vpop.permute.xlu0 %2464
    %v2466 = vrot.slane %v2465, 2
    %v2467 = vsel %vm279, %v2465, %v2466
    %v2469 = vadd.f32 %v2429, %v2467
    %s2470 = sld [smem:[#allocation11 + $0x5e]]
    %v2471 = vstv %s2470
    %v2472 = vmul.f32 %v2471, %v1530
    %2474 = vrot.lane.b32.xlu0 %v2472, 107
    %v2475 = vpop.permute.xlu0 %2474
    %v2476 = vrot.slane %v2475, 2
    %v2477 = vsel %vm279, %v2475, %v2476
    %v2479 = vadd.f32 %v2439, %v2477
    %s2480 = sld [smem:[#allocation11 + $0x82]]
    %v2481 = vstv %s2480
    %v2482 = vmul.f32 %v2481, %v1530
    %2484 = vrot.lane.b32.xlu0 %v2482, 107
    %v2485 = vpop.permute.xlu0 %2484
    %v2486 = vrot.slane %v2485, 2
    %v2487 = vsel %vm279, %v2485, %v2486
    %v2489 = vadd.f32 %v2449, %v2487
    %s2490 = sld [smem:[#allocation11 + $0x17]]
    %v2491 = vstv %s2490
    %v2492 = vmul.f32 %v2491, %v1530
    %2494 = vrot.lane.b32.xlu0 %v2492, 106
    %v2495 = vpop.permute.xlu0 %2494
    %v2496 = vrot.slane %v2495, 2
    %v2497 = vsel %vm320, %v2495, %v2496
    %v2499 = vadd.f32 %v2459, %v2497
    %s2500 = sld [smem:[#allocation11 + $0x3b]]
    %v2501 = vstv %s2500
    %v2502 = vmul.f32 %v2501, %v1530
    %2504 = vrot.lane.b32.xlu0 %v2502, 106
    %v2505 = vpop.permute.xlu0 %2504
    %v2506 = vrot.slane %v2505, 2
    %v2507 = vsel %vm320, %v2505, %v2506
    %v2509 = vadd.f32 %v2469, %v2507
    %s2510 = sld [smem:[#allocation11 + $0x5f]]
    %v2511 = vstv %s2510
    %v2512 = vmul.f32 %v2511, %v1530
    %2514 = vrot.lane.b32.xlu0 %v2512, 106
    %v2515 = vpop.permute.xlu0 %2514
    %v2516 = vrot.slane %v2515, 2
    %v2517 = vsel %vm320, %v2515, %v2516
    %v2519 = vadd.f32 %v2479, %v2517
    %s2520 = sld [smem:[#allocation11 + $0x83]]
    %v2521 = vstv %s2520
    %v2522 = vmul.f32 %v2521, %v1530
    %2524 = vrot.lane.b32.xlu0 %v2522, 106
    %v2525 = vpop.permute.xlu0 %2524
    %v2526 = vrot.slane %v2525, 2
    %v2527 = vsel %vm320, %v2525, %v2526
    %v2529 = vadd.f32 %v2489, %v2527
    %s2530 = sld [smem:[#allocation11 + $0x18]]
    %v2531 = vstv %s2530
    %v2532 = vmul.f32 %v2531, %v1530
    %2534 = vrot.lane.b32.xlu0 %v2532, 88
    %v2535 = vpop.permute.xlu0 %2534
    %v2536 = vrot.slane %v2535, 2
    %v2537 = vsel %vm361, %v2535, %v2536
    %v2539 = vadd.f32 %v2499, %v2537
    %s2540 = sld [smem:[#allocation11 + $0x3c]]
    %v2541 = vstv %s2540
    %v2542 = vmul.f32 %v2541, %v1530
    %2544 = vrot.lane.b32.xlu0 %v2542, 88
    %v2545 = vpop.permute.xlu0 %2544
    %v2546 = vrot.slane %v2545, 2
    %v2547 = vsel %vm361, %v2545, %v2546
    %v2549 = vadd.f32 %v2509, %v2547
    %s2550 = sld [smem:[#allocation11 + $0x60]]
    %v2551 = vstv %s2550
    %v2552 = vmul.f32 %v2551, %v1530
    %2554 = vrot.lane.b32.xlu0 %v2552, 88
    %v2555 = vpop.permute.xlu0 %2554
    %v2556 = vrot.slane %v2555, 2
    %v2557 = vsel %vm361, %v2555, %v2556
    %v2559 = vadd.f32 %v2519, %v2557
    %s2560 = sld [smem:[#allocation11 + $0x84]]
    %v2561 = vstv %s2560
    %v2562 = vmul.f32 %v2561, %v1530
    %2564 = vrot.lane.b32.xlu0 %v2562, 88
    %v2565 = vpop.permute.xlu0 %2564
    %v2566 = vrot.slane %v2565, 2
    %v2567 = vsel %vm361, %v2565, %v2566
    %v2569 = vadd.f32 %v2529, %v2567
    %s2570 = sld [smem:[#allocation11 + $0x19]]
    %v2571 = vstv %s2570
    %v2572 = vmul.f32 %v2571, %v1530
    %2574 = vrot.lane.b32.xlu0 %v2572, 87
    %v2575 = vpop.permute.xlu0 %2574
    %v2576 = vrot.slane %v2575, 2
    %v2577 = vsel %vm402, %v2575, %v2576
    %v2579 = vadd.f32 %v2539, %v2577
    %s2580 = sld [smem:[#allocation11 + $0x3d]]
    %v2581 = vstv %s2580
    %v2582 = vmul.f32 %v2581, %v1530
    %2584 = vrot.lane.b32.xlu0 %v2582, 87
    %v2585 = vpop.permute.xlu0 %2584
    %v2586 = vrot.slane %v2585, 2
    %v2587 = vsel %vm402, %v2585, %v2586
    %v2589 = vadd.f32 %v2549, %v2587
    %s2590 = sld [smem:[#allocation11 + $0x61]]
    %v2591 = vstv %s2590
    %v2592 = vmul.f32 %v2591, %v1530
    %2594 = vrot.lane.b32.xlu0 %v2592, 87
    %v2595 = vpop.permute.xlu0 %2594
    %v2596 = vrot.slane %v2595, 2
    %v2597 = vsel %vm402, %v2595, %v2596
    %v2599 = vadd.f32 %v2559, %v2597
    %s2600 = sld [smem:[#allocation11 + $0x85]]
    %v2601 = vstv %s2600
    %v2602 = vmul.f32 %v2601, %v1530
    %2604 = vrot.lane.b32.xlu0 %v2602, 87
    %v2605 = vpop.permute.xlu0 %2604
    %v2606 = vrot.slane %v2605, 2
    %v2607 = vsel %vm402, %v2605, %v2606
    %v2609 = vadd.f32 %v2569, %v2607
    %s2610 = sld [smem:[#allocation11 + $0x1a]]
    %v2611 = vstv %s2610
    %v2612 = vmul.f32 %v2611, %v1530
    %2614 = vrot.lane.b32.xlu0 %v2612, 86
    %v2615 = vpop.permute.xlu0 %2614
    %v2616 = vrot.slane %v2615, 2
    %v2617 = vsel %vm443, %v2615, %v2616
    %v2619 = vadd.f32 %v2579, %v2617
    %s2620 = sld [smem:[#allocation11 + $0x3e]]
    %v2621 = vstv %s2620
    %v2622 = vmul.f32 %v2621, %v1530
    %2624 = vrot.lane.b32.xlu0 %v2622, 86
    %v2625 = vpop.permute.xlu0 %2624
    %v2626 = vrot.slane %v2625, 2
    %v2627 = vsel %vm443, %v2625, %v2626
    %v2629 = vadd.f32 %v2589, %v2627
    %s2630 = sld [smem:[#allocation11 + $0x62]]
    %v2631 = vstv %s2630
    %v2632 = vmul.f32 %v2631, %v1530
    %2634 = vrot.lane.b32.xlu0 %v2632, 86
    %v2635 = vpop.permute.xlu0 %2634
    %v2636 = vrot.slane %v2635, 2
    %v2637 = vsel %vm443, %v2635, %v2636
    %v2639 = vadd.f32 %v2599, %v2637
    %s2640 = sld [smem:[#allocation11 + $0x86]]
    %v2641 = vstv %s2640
    %v2642 = vmul.f32 %v2641, %v1530
    %2644 = vrot.lane.b32.xlu0 %v2642, 86
    %v2645 = vpop.permute.xlu0 %2644
    %v2646 = vrot.slane %v2645, 2
    %v2647 = vsel %vm443, %v2645, %v2646
    %v2649 = vadd.f32 %v2609, %v2647
    %s2650 = sld [smem:[#allocation11 + $0x1b]]
    %v2651 = vstv %s2650
    %v2652 = vmul.f32 %v2651, %v1531
    %v2653 = vadd.f32 %v2619, %v2652
    %s2654 = sld [smem:[#allocation11 + $0x3f]]
    %v2655 = vstv %s2654
    %v2656 = vmul.f32 %v2655, %v1531
    %v2657 = vadd.f32 %v2629, %v2656
    %s2658 = sld [smem:[#allocation11 + $0x63]]
    %v2659 = vstv %s2658
    %v2660 = vmul.f32 %v2659, %v1531
    %v2661 = vadd.f32 %v2639, %v2660
    %s2662 = sld [smem:[#allocation11 + $0x87]]
    %v2663 = vstv %s2662
    %v2664 = vmul.f32 %v2663, %v1531
    %v2665 = vadd.f32 %v2649, %v2664
    %s2666 = sld [smem:[#allocation11 + $0x1c]]
    %v2667 = vstv %s2666
    %v2668 = vmul.f32 %v2667, %v1531
    %2670 = vrot.lane.b32.xlu0 %v2668, 127
    %v2671 = vpop.permute.xlu0 %2670
    %v2672 = vrot.slane %v2671, 2
    %v2673 = vsel %vm156, %v2671, %v2672
    %v2675 = vadd.f32 %v2653, %v2673
    %s2676 = sld [smem:[#allocation11 + $0x40]]
    %v2677 = vstv %s2676
    %v2678 = vmul.f32 %v2677, %v1531
    %2680 = vrot.lane.b32.xlu0 %v2678, 127
    %v2681 = vpop.permute.xlu0 %2680
    %v2682 = vrot.slane %v2681, 2
    %v2683 = vsel %vm156, %v2681, %v2682
    %v2685 = vadd.f32 %v2657, %v2683
    %s2686 = sld [smem:[#allocation11 + $0x64]]
    %v2687 = vstv %s2686
    %v2688 = vmul.f32 %v2687, %v1531
    %2690 = vrot.lane.b32.xlu0 %v2688, 127
    %v2691 = vpop.permute.xlu0 %2690
    %v2692 = vrot.slane %v2691, 2
    %v2693 = vsel %vm156, %v2691, %v2692
    %v2695 = vadd.f32 %v2661, %v2693
    %s2696 = sld [smem:[#allocation11 + $0x88]]
    %v2697 = vstv %s2696
    %v2698 = vmul.f32 %v2697, %v1531
    %2700 = vrot.lane.b32.xlu0 %v2698, 127
    %v2701 = vpop.permute.xlu0 %2700
    %v2702 = vrot.slane %v2701, 2
    %v2703 = vsel %vm156, %v2701, %v2702
    %v2705 = vadd.f32 %v2665, %v2703
    %s2706 = sld [smem:[#allocation11 + $0x1d]]
    %v2707 = vstv %s2706
    %v2708 = vmul.f32 %v2707, %v1531
    %2710 = vrot.lane.b32.xlu0 %v2708, 126
    %v2711 = vpop.permute.xlu0 %2710
    %v2712 = vrot.slane %v2711, 2
    %v2713 = vsel %vm197, %v2711, %v2712
    %v2715 = vadd.f32 %v2675, %v2713
    %s2716 = sld [smem:[#allocation11 + $0x41]]
    %v2717 = vstv %s2716
    %v2718 = vmul.f32 %v2717, %v1531
    %2720 = vrot.lane.b32.xlu0 %v2718, 126
    %v2721 = vpop.permute.xlu0 %2720
    %v2722 = vrot.slane %v2721, 2
    %v2723 = vsel %vm197, %v2721, %v2722
    %v2725 = vadd.f32 %v2685, %v2723
    %s2726 = sld [smem:[#allocation11 + $0x65]]
    %v2727 = vstv %s2726
    %v2728 = vmul.f32 %v2727, %v1531
    %2730 = vrot.lane.b32.xlu0 %v2728, 126
    %v2731 = vpop.permute.xlu0 %2730
    %v2732 = vrot.slane %v2731, 2
    %v2733 = vsel %vm197, %v2731, %v2732
    %v2735 = vadd.f32 %v2695, %v2733
    %s2736 = sld [smem:[#allocation11 + $0x89]]
    %v2737 = vstv %s2736
    %v2738 = vmul.f32 %v2737, %v1531
    %2740 = vrot.lane.b32.xlu0 %v2738, 126
    %v2741 = vpop.permute.xlu0 %2740
    %v2742 = vrot.slane %v2741, 2
    %v2743 = vsel %vm197, %v2741, %v2742
    %v2745 = vadd.f32 %v2705, %v2743
    %s2746 = sld [smem:[#allocation11 + $0x1e]]
    %v2747 = vstv %s2746
    %v2748 = vmul.f32 %v2747, %v1531
    %2750 = vrot.lane.b32.xlu0 %v2748, 108
    %v2751 = vpop.permute.xlu0 %2750
    %v2752 = vrot.slane %v2751, 2
    %v2753 = vsel %vm238, %v2751, %v2752
    %v2755 = vadd.f32 %v2715, %v2753
    %s2756 = sld [smem:[#allocation11 + $0x42]]
    %v2757 = vstv %s2756
    %v2758 = vmul.f32 %v2757, %v1531
    %2760 = vrot.lane.b32.xlu0 %v2758, 108
    %v2761 = vpop.permute.xlu0 %2760
    %v2762 = vrot.slane %v2761, 2
    %v2763 = vsel %vm238, %v2761, %v2762
    %v2765 = vadd.f32 %v2725, %v2763
    %s2766 = sld [smem:[#allocation11 + $0x66]]
    %v2767 = vstv %s2766
    %v2768 = vmul.f32 %v2767, %v1531
    %2770 = vrot.lane.b32.xlu0 %v2768, 108
    %v2771 = vpop.permute.xlu0 %2770
    %v2772 = vrot.slane %v2771, 2
    %v2773 = vsel %vm238, %v2771, %v2772
    %v2775 = vadd.f32 %v2735, %v2773
    %s2776 = sld [smem:[#allocation11 + $0x8a]]
    %v2777 = vstv %s2776
    %v2778 = vmul.f32 %v2777, %v1531
    %2780 = vrot.lane.b32.xlu0 %v2778, 108
    %v2781 = vpop.permute.xlu0 %2780
    %v2782 = vrot.slane %v2781, 2
    %v2783 = vsel %vm238, %v2781, %v2782
    %v2785 = vadd.f32 %v2745, %v2783
    %s2786 = sld [smem:[#allocation11 + $0x1f]]
    %v2787 = vstv %s2786
    %v2788 = vmul.f32 %v2787, %v1531
    %2790 = vrot.lane.b32.xlu0 %v2788, 107
    %v2791 = vpop.permute.xlu0 %2790
    %v2792 = vrot.slane %v2791, 2
    %v2793 = vsel %vm279, %v2791, %v2792
    %v2795 = vadd.f32 %v2755, %v2793
    %s2796 = sld [smem:[#allocation11 + $0x43]]
    %v2797 = vstv %s2796
    %v2798 = vmul.f32 %v2797, %v1531
    %2800 = vrot.lane.b32.xlu0 %v2798, 107
    %v2801 = vpop.permute.xlu0 %2800
    %v2802 = vrot.slane %v2801, 2
    %v2803 = vsel %vm279, %v2801, %v2802
    %v2805 = vadd.f32 %v2765, %v2803
    %s2806 = sld [smem:[#allocation11 + $0x67]]
    %v2807 = vstv %s2806
    %v2808 = vmul.f32 %v2807, %v1531
    %2810 = vrot.lane.b32.xlu0 %v2808, 107
    %v2811 = vpop.permute.xlu0 %2810
    %v2812 = vrot.slane %v2811, 2
    %v2813 = vsel %vm279, %v2811, %v2812
    %v2815 = vadd.f32 %v2775, %v2813
    %s2816 = sld [smem:[#allocation11 + $0x8b]]
    %v2817 = vstv %s2816
    %v2818 = vmul.f32 %v2817, %v1531
    %2820 = vrot.lane.b32.xlu0 %v2818, 107
    %v2821 = vpop.permute.xlu0 %2820
    %v2822 = vrot.slane %v2821, 2
    %v2823 = vsel %vm279, %v2821, %v2822
    %v2825 = vadd.f32 %v2785, %v2823
    %s2826 = sld [smem:[#allocation11 + $0x20]]
    %v2827 = vstv %s2826
    %v2828 = vmul.f32 %v2827, %v1531
    %2830 = vrot.lane.b32.xlu0 %v2828, 106
    %v2831 = vpop.permute.xlu0 %2830
    %v2832 = vrot.slane %v2831, 2
    %v2833 = vsel %vm320, %v2831, %v2832
    %v2835 = vadd.f32 %v2795, %v2833
    %s2836 = sld [smem:[#allocation11 + $0x44]]
    %v2837 = vstv %s2836
    %v2838 = vmul.f32 %v2837, %v1531
    %2840 = vrot.lane.b32.xlu0 %v2838, 106
    %v2841 = vpop.permute.xlu0 %2840
    %v2842 = vrot.slane %v2841, 2
    %v2843 = vsel %vm320, %v2841, %v2842
    %v2845 = vadd.f32 %v2805, %v2843
    %s2846 = sld [smem:[#allocation11 + $0x68]]
    %v2847 = vstv %s2846
    %v2848 = vmul.f32 %v2847, %v1531
    %2850 = vrot.lane.b32.xlu0 %v2848, 106
    %v2851 = vpop.permute.xlu0 %2850
    %v2852 = vrot.slane %v2851, 2
    %v2853 = vsel %vm320, %v2851, %v2852
    %v2855 = vadd.f32 %v2815, %v2853
    %s2856 = sld [smem:[#allocation11 + $0x8c]]
    %v2857 = vstv %s2856
    %v2858 = vmul.f32 %v2857, %v1531
    %2860 = vrot.lane.b32.xlu0 %v2858, 106
    %v2861 = vpop.permute.xlu0 %2860
    %v2862 = vrot.slane %v2861, 2
    %v2863 = vsel %vm320, %v2861, %v2862
    %v2865 = vadd.f32 %v2825, %v2863
    %s2866 = sld [smem:[#allocation11 + $0x21]]
    %v2867 = vstv %s2866
    %v2868 = vmul.f32 %v2867, %v1531
    %2870 = vrot.lane.b32.xlu0 %v2868, 88
    %v2871 = vpop.permute.xlu0 %2870
    %v2872 = vrot.slane %v2871, 2
    %v2873 = vsel %vm361, %v2871, %v2872
    %v2875 = vadd.f32 %v2835, %v2873
    %s2876 = sld [smem:[#allocation11 + $0x45]]
    %v2877 = vstv %s2876
    %v2878 = vmul.f32 %v2877, %v1531
    %2880 = vrot.lane.b32.xlu0 %v2878, 88
    %v2881 = vpop.permute.xlu0 %2880
    %v2882 = vrot.slane %v2881, 2
    %v2883 = vsel %vm361, %v2881, %v2882
    %v2885 = vadd.f32 %v2845, %v2883
    %s2886 = sld [smem:[#allocation11 + $0x69]]
    %v2887 = vstv %s2886
    %v2888 = vmul.f32 %v2887, %v1531
    %2890 = vrot.lane.b32.xlu0 %v2888, 88
    %v2891 = vpop.permute.xlu0 %2890
    %v2892 = vrot.slane %v2891, 2
    %v2893 = vsel %vm361, %v2891, %v2892
    %v2895 = vadd.f32 %v2855, %v2893
    %s2896 = sld [smem:[#allocation11 + $0x8d]]
    %v2897 = vstv %s2896
    %v2898 = vmul.f32 %v2897, %v1531
    %2900 = vrot.lane.b32.xlu0 %v2898, 88
    %v2901 = vpop.permute.xlu0 %2900
    %v2902 = vrot.slane %v2901, 2
    %v2903 = vsel %vm361, %v2901, %v2902
    %v2905 = vadd.f32 %v2865, %v2903
    %s2906 = sld [smem:[#allocation11 + $0x22]]
    %v2907 = vstv %s2906
    %v2908 = vmul.f32 %v2907, %v1531
    %2910 = vrot.lane.b32.xlu0 %v2908, 87
    %v2911 = vpop.permute.xlu0 %2910
    %v2912 = vrot.slane %v2911, 2
    %v2913 = vsel %vm402, %v2911, %v2912
    %v2915 = vadd.f32 %v2875, %v2913
    %s2916 = sld [smem:[#allocation11 + $0x46]]
    %v2917 = vstv %s2916
    %v2918 = vmul.f32 %v2917, %v1531
    %2920 = vrot.lane.b32.xlu0 %v2918, 87
    %v2921 = vpop.permute.xlu0 %2920
    %v2922 = vrot.slane %v2921, 2
    %v2923 = vsel %vm402, %v2921, %v2922
    %v2925 = vadd.f32 %v2885, %v2923
    %s2926 = sld [smem:[#allocation11 + $0x6a]]
    %v2927 = vstv %s2926
    %v2928 = vmul.f32 %v2927, %v1531
    %2930 = vrot.lane.b32.xlu0 %v2928, 87
    %v2931 = vpop.permute.xlu0 %2930
    %v2932 = vrot.slane %v2931, 2
    %v2933 = vsel %vm402, %v2931, %v2932
    %v2935 = vadd.f32 %v2895, %v2933
    %s2936 = sld [smem:[#allocation11 + $0x8e]]
    %v2937 = vstv %s2936
    %v2938 = vmul.f32 %v2937, %v1531
    %2940 = vrot.lane.b32.xlu0 %v2938, 87
    %v2941 = vpop.permute.xlu0 %2940
    %v2942 = vrot.slane %v2941, 2
    %v2943 = vsel %vm402, %v2941, %v2942
    %v2945 = vadd.f32 %v2905, %v2943
    %s2946 = sld [smem:[#allocation11 + $0x23]]
    %v2947 = vstv %s2946
    %v2948 = vmul.f32 %v2947, %v1531
    %2950 = vrot.lane.b32.xlu0 %v2948, 86
    %v2951 = vpop.permute.xlu0 %2950
    %v2952 = vrot.slane %v2951, 2
    %v2953 = vsel %vm443, %v2951, %v2952
    %v2955 = vadd.f32 %v2915, %v2953
    %s2956 = sld [smem:[#allocation11 + $0x47]]
    %v2957 = vstv %s2956
    %v2958 = vmul.f32 %v2957, %v1531
    %2960 = vrot.lane.b32.xlu0 %v2958, 86
    %v2961 = vpop.permute.xlu0 %2960
    %v2962 = vrot.slane %v2961, 2
    %v2963 = vsel %vm443, %v2961, %v2962
    %v2965 = vadd.f32 %v2925, %v2963
    %s2966 = sld [smem:[#allocation11 + $0x6b]]
    %v2967 = vstv %s2966
    %v2968 = vmul.f32 %v2967, %v1531
    %2970 = vrot.lane.b32.xlu0 %v2968, 86
    %v2971 = vpop.permute.xlu0 %2970
    %v2972 = vrot.slane %v2971, 2
    %v2973 = vsel %vm443, %v2971, %v2972
    %v2975 = vadd.f32 %v2935, %v2973
    %s2976 = sld [smem:[#allocation11 + $0x8f]]
    %v2977 = vstv %s2976
    %v2978 = vmul.f32 %v2977, %v1531
    %2980 = vrot.lane.b32.xlu0 %v2978, 86
    %v2981 = vpop.permute.xlu0 %2980
    %v2982 = vrot.slane %v2981, 2
    %v2983 = vsel %vm443, %v2981, %v2982
    %v2985 = vadd.f32 %v2945, %v2983
    %s2986 = sld [smem:[#allocation13]]
    %v2987 = vstv %s2986
    %v2988 = vadd.f32 %v2955, %v2987
    %s2989 = sld [smem:[#allocation13 + $0x1]]
    %v2990 = vstv %s2989
    %v2991 = vadd.f32 %v2965, %v2990
    %s2992 = sld [smem:[#allocation13 + $0x2]]
    %v2993 = vstv %s2992
    %v2994 = vadd.f32 %v2975, %v2993
    %s2995 = sld [smem:[#allocation13 + $0x3]]
    %v2996 = vstv %s2995
    %v2997 = vadd.f32 %v2985, %v2996
    %s2998 = sld [smem:[#allocation14]]
    %v2999 = vstv %s2998
    %v3000 = vmul.f32 %v2999, %v1561
    %s3001 = sld [smem:[#allocation14 + $0x1]]
    %v3002 = vstv %s3001
    %v3003 = vmul.f32 %v3002, %v1589
    %v3004 = vadd.f32 %v3000, %v3003
    %s3005 = sld [smem:[#allocation14 + $0x2]]
    %v3006 = vstv %s3005
    %v3007 = vmul.f32 %v3006, %v1617
    %v3008 = vadd.f32 %v3004, %v3007
    %s3009 = sld [smem:[#allocation14 + $0x3]]
    %v3010 = vstv %s3009
    %v3011 = vmul.f32 %v3010, %v1645
    %v3012 = vadd.f32 %v3008, %v3011
    %s3013 = sld [smem:[#allocation16]]
    %v3014 = vstv %s3013
    %v3015 = vadd.f32 %v3012, %v3014
    %v3016 = vld [vmem:[#allocation7] sm:$0x3f]
    %v3017 = vxor.u32 %v2988, 2147483648
    %v3018 = vmul.f32 %v3017, 1.442695
    %v3019 = vpow.pop %v3018
    %v3020 = vadd.f32 %v3019, 1.0
    %v3021 = vrcp.pop %v3020
    %v3022 = vmul.f32 1.0, %v3021
    %v3023 = vmul.f32 %v3016, %v3022
    %v3026 = vunpack.c.l.s4 269488144
    %v3027 = vunpack.c.0.s8 %v3026
    %v3028 = vlaneseq
    %v3029 = vshrl.u32 %v3028, 7
    %v3030 = vsub.s32 %v3027, %v3029
    %v3031 = vrot.slane %v3015, %v3030
    %v3033 = vadd.f32 %v3023, %v3031
    %vm3034 = vcmask 1043458
    %vm3035 = vmor %vm3034, %vm1552
    %vm3036 = vcmask 521220
    %vm3037 = vmor %vm3036, %vm3035
    %3038 = vst.msk [vmem:[#allocation17] sm:$0x3f] %vm3037, %v3033
    %s3039 = sld [smem:[#allocation14 + $0x4]]
    %v3040 = vstv %s3039
    %v3041 = vmul.f32 %v3040, %v1561
    %s3042 = sld [smem:[#allocation14 + $0x5]]
    %v3043 = vstv %s3042
    %v3044 = vmul.f32 %v3043, %v1589
    %v3045 = vadd.f32 %v3041, %v3044
    %s3046 = sld [smem:[#allocation14 + $0x6]]
    %v3047 = vstv %s3046
    %v3048 = vmul.f32 %v3047, %v1617
    %v3049 = vadd.f32 %v3045, %v3048
    %s3050 = sld [smem:[#allocation14 + $0x7]]
    %v3051 = vstv %s3050
    %v3052 = vmul.f32 %v3051, %v1645
    %v3053 = vadd.f32 %v3049, %v3052
    %s3054 = sld [smem:[#allocation16 + $0x1]]
    %v3055 = vstv %s3054
    %v3056 = vadd.f32 %v3053, %v3055
    %s3057 = scalar_lea.vmem [#allocation7], 6
    %v3058 = vld [vmem:[%s3057] sm:$0x3f]
    %v3059 = vxor.u32 %v2991, 2147483648
    %v3060 = vmul.f32 %v3059, 1.442695
    %v3061 = vpow.pop %v3060
    %v3062 = vadd.f32 %v3061, 1.0
    %v3063 = vrcp.pop %v3062
    %v3064 = vmul.f32 1.0, %v3063
    %v3065 = vmul.f32 %v3058, %v3064
    %v3068 = vunpack.c.l.s4 269488144
    %v3069 = vunpack.c.0.s8 %v3068
    %v3070 = vlaneseq
    %v3071 = vshrl.u32 %v3070, 7
    %v3072 = vsub.s32 %v3069, %v3071
    %v3073 = vrot.slane %v3056, %v3072
    %v3075 = vadd.f32 %v3065, %v3073
    %s3076 = scalar_lea.vmem [#allocation17], 6
    %3077 = vst.msk [vmem:[%s3076] sm:$0x3f] %vm3037, %v3075
    %s3078 = sld [smem:[#allocation14 + $0x8]]
    %v3079 = vstv %s3078
    %v3080 = vmul.f32 %v3079, %v1561
    %s3081 = sld [smem:[#allocation14 + $0x9]]
    %v3082 = vstv %s3081
    %v3083 = vmul.f32 %v3082, %v1589
    %v3084 = vadd.f32 %v3080, %v3083
    %s3085 = sld [smem:[#allocation14 + $0xa]]
    %v3086 = vstv %s3085
    %v3087 = vmul.f32 %v3086, %v1617
    %v3088 = vadd.f32 %v3084, %v3087
    %s3089 = sld [smem:[#allocation14 + $0xb]]
    %v3090 = vstv %s3089
    %v3091 = vmul.f32 %v3090, %v1645
    %v3092 = vadd.f32 %v3088, %v3091
    %s3093 = sld [smem:[#allocation16 + $0x2]]
    %v3094 = vstv %s3093
    %v3095 = vadd.f32 %v3092, %v3094
    %s3096 = scalar_lea.vmem [#allocation7], 12
    %v3097 = vld [vmem:[%s3096] sm:$0x3f]
    %v3098 = vxor.u32 %v2994, 2147483648
    %v3099 = vmul.f32 %v3098, 1.442695
    %v3100 = vpow.pop %v3099
    %v3101 = vadd.f32 %v3100, 1.0
    %v3102 = vrcp.pop %v3101
    %v3103 = vmul.f32 1.0, %v3102
    %v3104 = vmul.f32 %v3097, %v3103
    %v3107 = vunpack.c.l.s4 269488144
    %v3108 = vunpack.c.0.s8 %v3107
    %v3109 = vlaneseq
    %v3110 = vshrl.u32 %v3109, 7
    %v3111 = vsub.s32 %v3108, %v3110
    %v3112 = vrot.slane %v3095, %v3111
    %v3114 = vadd.f32 %v3104, %v3112
    %s3115 = scalar_lea.vmem [#allocation17], 12
    %3116 = vst.msk [vmem:[%s3115] sm:$0x3f] %vm3037, %v3114
    %s3117 = sld [smem:[#allocation14 + $0xc]]
    %v3118 = vstv %s3117
    %v3119 = vmul.f32 %v3118, %v1561
    %s3120 = sld [smem:[#allocation14 + $0xd]]
    %v3121 = vstv %s3120
    %v3122 = vmul.f32 %v3121, %v1589
    %v3123 = vadd.f32 %v3119, %v3122
    %s3124 = sld [smem:[#allocation14 + $0xe]]
    %v3125 = vstv %s3124
    %v3126 = vmul.f32 %v3125, %v1617
    %v3127 = vadd.f32 %v3123, %v3126
    %s3128 = sld [smem:[#allocation14 + $0xf]]
    %v3129 = vstv %s3128
    %v3130 = vmul.f32 %v3129, %v1645
    %v3131 = vadd.f32 %v3127, %v3130
    %s3132 = sld [smem:[#allocation16 + $0x3]]
    %v3133 = vstv %s3132
    %v3134 = vadd.f32 %v3131, %v3133
    %s3135 = scalar_lea.vmem [#allocation7], 18
    %v3136 = vld [vmem:[%s3135] sm:$0x3f]
    %v3137 = vxor.u32 %v2997, 2147483648
    %v3138 = vmul.f32 %v3137, 1.442695
    %v3139 = vpow.pop %v3138
    %v3140 = vadd.f32 %v3139, 1.0
    %v3141 = vrcp.pop %v3140
    %v3142 = vmul.f32 1.0, %v3141
    %v3143 = vmul.f32 %v3136, %v3142
    %v3146 = vunpack.c.l.s4 269488144
    %v3147 = vunpack.c.0.s8 %v3146
    %v3148 = vlaneseq
    %v3149 = vshrl.u32 %v3148, 7
    %v3150 = vsub.s32 %v3147, %v3149
    %v3151 = vrot.slane %v3134, %v3150
    %v3153 = vadd.f32 %v3143, %v3151
    %s3154 = scalar_lea.vmem [#allocation17], 18
    %3155 = vst.msk [vmem:[%s3154] sm:$0x3f] %vm3037, %v3153
    // Predicated region
    $region70: #{tpu_custom_call.1} parent=1 // pred_check
      _
    $region71: #{tpu_custom_call.1} parent=1 // pred_check_branch
      %3157 = sbr.rel (0) target = $region73
    $region72: #{tpu_custom_call.1} parent=1 // pred_region
      %s3159 = ssub.s32 384, 384
      %3160 = vsyncadd [#allocation4], %s3159
      %s3161 = sshll.u32 [#allocation17], 4
      %s3162 = int_to_ptr.vmem [resolvable:$true] %s3161
      %3167 = dma.vmem_to_hbm [thread:$0]  %s3162, 384, %s9, [#allocation4], 96, 96, 6
    $region73: #{tpu_custom_call.1} parent=1 // pred_fallthru
      _
    // Predicated region
    $region74: #{tpu_custom_call.1} parent=1 // pred_check
      _
    $region75: #{tpu_custom_call.1} parent=1 // pred_check_branch
      %3169 = sbr.rel (0) target = $region77
    $region76: #{tpu_custom_call.1} parent=1 // pred_region
      %3170 = dma.done [#allocation4], 384
    $region77: #{tpu_custom_call.1} parent=1 // pred_fallthru
      _
    %3171 = vsyncpa [#allocation3], 1
    %3172 = vsyncpa [#allocation8], 1
    %3173 = vsyncpa [#allocation4], 1
    %3174 = vsyncpa [#allocation5], 1
    %3175 = vsyncpa [#allocation6], 1
    %3176 = vsyncpa [#allocation12], 1
    %3177 = vsyncpa [#allocation15], 1

</llo_original>
